<compile_context>
chip_gen: v6e
topology: v6e:2x2x1
jax: 0.10.0
libtpu: 0.0.40
codegen_flags: <defaults>
</compile_context>

<pallas_src>
import functools

import jax
import jax.numpy as jnp
from jax.experimental import pallas as pl


# ----------------------------- Pallas kernels -----------------------------

def _backbone_gate_kernel(x_ref, w1_ref, b1_ref, w2_ref, o_ref):
    """Fused: patch matmul + bias + ReLU (backbone stand-in) -> 1x1 gate conv.
    The (rows x cnn_features) intermediate never leaves vregs/VMEM."""
    feat = jnp.dot(x_ref[...].astype(jnp.bfloat16), w1_ref[...],
                   preferred_element_type=jnp.float32) + b1_ref[...]
    feat = jnp.maximum(feat, 0.0)
    o_ref[...] = jnp.dot(feat.astype(jnp.bfloat16), w2_ref[...],
                         preferred_element_type=jnp.float32).astype(o_ref.dtype)


def backbone_gate(patches, w1, b1, w2):
    M = patches.shape[0]
    N = w2.shape[1]
    # TODO(synk): at real sizes add an M-tiling grid and vmem_limit_bytes here.
    return pl.pallas_call(
        _backbone_gate_kernel,
        out_shape=jax.ShapeDtypeStruct((M, N), jnp.float32),
    )(patches, w1, b1, w2)


def _gru_bidir_layer(x, wih, bih, whh, bhh, *, T, B, H):
    """One bidirectional GRU layer on a traced (T*B, I) sequence value.

    torch.nn.GRU semantics: gate order r,z,n; n = tanh(x_n + r*(W_hn h + b_hn));
    h' = (1-z)*n + z*h; zero initial states.  The combined hidden state is
    h2 = [h_fwd | h_bwd] (B, 2H); the block-diagonal, gate-interleaved whh
    yields gh = [r_f r_b z_f z_b n_f n_b] from a single matmul per step.
    Returns the time-aligned (T*B, 2H) output [fwd_t | bwd_t].
    """
    H2 = 2 * H
    # Packed input-gate matmul for both directions (off the recurrence chain).
    # Columns: 0:3H fwd [r z n], 3H:6H bwd [r z n].
    xg = jnp.dot(x.astype(jnp.bfloat16), wih,
                 preferred_element_type=jnp.float32) + bih

    # Per-step pre-activations in the interleaved layout [r_f r_b z_f z_b n_f n_b];
    # fwd reads time t, bwd reads time T-1-t. No scratch, static slices only.
    xg_steps = []
    for t in range(T):
        s = T - 1 - t
        xf = xg[t * B:(t + 1) * B, :]
        xb = xg[s * B:(s + 1) * B, :]
        xg_steps.append(jnp.concatenate(
            [xf[:, 0:H],          xb[:, 3 * H:4 * H],
             xf[:, H:2 * H],      xb[:, 4 * H:5 * H],
             xf[:, 2 * H:3 * H],  xb[:, 5 * H:6 * H]], axis=-1))

    # TODO(synk): for real sequence lengths use lax.fori_loop(unroll=2..4).
    h2 = jnp.zeros((B, H2), jnp.float32)
    hs = []
    for t in range(T):
        gh = jnp.dot(h2.astype(jnp.bfloat16), whh,
                     preferred_element_type=jnp.float32) + bhh       # (B, 6H)
        xg_t = xg_steps[t]
        r = jax.nn.sigmoid(xg_t[:, 0:H2] + gh[:, 0:H2])
        z = jax.nn.sigmoid(xg_t[:, H2:2 * H2] + gh[:, H2:2 * H2])
        n = jnp.tanh(xg_t[:, 2 * H2:3 * H2] + r * gh[:, 2 * H2:3 * H2])
        h2 = (1.0 - z) * n + z * h2
        hs.append(h2)

    # Output at original time t: [h_fwd(t) | h_bwd(t)] (torch bidirectional concat).
    rows = [jnp.concatenate([hs[t][:, 0:H], hs[T - 1 - t][:, H:H2]], axis=-1)
            for t in range(T)]
    return jnp.concatenate(rows, axis=0)                              # (T*B, 2H)


def _gru_stack_fc_kernel(x_ref,
                         wih0_ref, bih0_ref, whh0_ref, bhh0_ref,
                         wih1_ref, bih1_ref, whh1_ref, bhh1_ref,
                         fcw_ref, fcb_ref, o_ref, *, T, B, H):
    """Fused 2-layer bidirectional GRU + FC + log-softmax (one pallas_call).
    Inter-layer sequences stay resident in VMEM/vregs; the only store is a
    lane-dense (T*B, 128) padded log-prob slab (padded bias = -1e30)."""
    h1 = _gru_bidir_layer(x_ref[...], wih0_ref[...], bih0_ref[...],
                          whh0_ref[...], bhh0_ref[...], T=T, B=B, H=H)
    h2 = _gru_bidir_layer(h1, wih1_ref[...], bih1_ref[...],
                          whh1_ref[...], bhh1_ref[...], T=T, B=B, H=H)
    logits = jnp.dot(h2.astype(jnp.bfloat16), fcw_ref[...],
                     preferred_element_type=jnp.float32) + fcb_ref[...]
    m = jnp.max(logits, axis=-1, keepdims=True)
    lse = m + jnp.log(jnp.sum(jnp.exp(logits - m), axis=-1, keepdims=True))
    o_ref[...] = (logits - lse).astype(o_ref.dtype)


def gru_stack_fc(x2d, params, *, T, B, H):
    l0, l1 = params["gru_l0"], params["gru_l1"]
    ncp = params["fc_w"].shape[1]
    return pl.pallas_call(
        functools.partial(_gru_stack_fc_kernel, T=T, B=B, H=H),
        out_shape=jax.ShapeDtypeStruct((T * B, ncp), jnp.float32),
    )(x2d, l0["wih"], l0["bih"], l0["whh"], l0["bhh"],
      l1["wih"], l1["bih"], l1["whh"], l1["bhh"],
      params["fc_w"], params["fc_b"])


# ----------------------------- JAX glue -----------------------------------

def crnn_forward(x, params, *, num_classes):
    """x: (N, C, H, W) float32 — NCHW, matching the PyTorch reference input."""
    N, C, H, W = x.shape
    P = 8  # backbone output stride (resnet18 out_indices=(2,) => stride 8)
    Hp, Wp = H // P, W // P

    # TODO(synk): the timm resnet18 `features_only` pretrained backbone is
    # replaced by a single stride-8 patch conv + ReLU stand-in (same output
    # stride / channel count); exact resnet weights are not reproducible here.
    x_nhwc = jnp.transpose(x, (0, 2, 3, 1))
    patches = x_nhwc.reshape(N, Hp, P, Wp, P, C)
    # (Wp, N, Hp, P, P, C): sequence-major row order so the gated features come
    # out already in torch's permute(3,0,2,1)+reshape layout (Wp, N, Hp*F).
    patches = patches.transpose(3, 0, 1, 2, 4, 5).reshape(Wp * N * Hp, P * P * C)

    F_rnn = params["gate_w"].shape[1]
    gated = backbone_gate(patches, params["backbone_w"], params["backbone_b"],
                          params["gate_w"])                        # (Wp*N*Hp, F)
    x2d = gated.reshape(Wp * N, Hp * F_rnn)                        # contiguous/free

    T, B = Wp, N
    Hh = params["gru_l0"]["whh"].shape[0] // 2
    out = gru_stack_fc(x2d, params, T=T, B=B, H=Hh)                # (T*B, NC_pad)
    ncp = out.shape[1]
    return out.reshape(T, B, ncp)[:, :, :num_classes]


# ----------------------------- parameters ----------------------------------

def init_params(key, *, in_ch=3, patch=8, cnn_features=16, rnn_features=8,
                hp=4, hidden=32, num_classes=11):
    """Torch-layout parameters (w_ih:(3H,I), w_hh:(3H,H), gate order r,z,n)."""
    input_size = hp * rnn_features  # == GRU input_size (576 in the original cfg)
    ks = jax.random.split(key, 9)

    def nrm(k, shape, scale=0.1):
        return scale * jax.random.normal(k, shape, dtype=jnp.float32)

    def gru_dir(k, isz, h):
        k1, k2, k3, k4 = jax.random.split(k, 4)
        return {"w_ih": nrm(k1, (3 * h, isz)), "b_ih": nrm(k2, (3 * h,)),
                "w_hh": nrm(k3, (3 * h, h)), "b_hh": nrm(k4, (3 * h,))}

    return {
        "backbone_w": nrm(ks[0], (patch * patch * in_ch, cnn_features)),
        "backbone_b": nrm(ks[1], (cnn_features,)),
        "gate_w": nrm(ks[2], (cnn_features, rnn_features)),
        "gru_l0": {"fwd": gru_dir(ks[3], input_size, hidden),
                   "bwd": gru_dir(ks[4], input_size, hidden)},
        "gru_l1": {"fwd": gru_dir(ks[5], 2 * hidden, hidden),
                   "bwd": gru_dir(ks[6], 2 * hidden, hidden)},
        "fc_w": nrm(ks[7], (2 * hidden, num_classes)),
        "fc_b": nrm(ks[8], (num_classes,)),
    }


def prepare_params(params):
    """One-time packing (outside jit):
      * GRU: transpose torch-layout weights; pack fwd/bwd input weights as
        (I, 6H); pack w_hh block-diagonally with gate-interleaved columns
        [r_f r_b z_f z_b n_f n_b] -> (2H, 6H); biases to (1, 6H).
      * FC: pad classes to a multiple of 128 lanes (zero weight cols, -1e30
        bias) so the final store is lane-dense; real classes sliced in JAX.
      * Matmul operands cast to bf16; elementwise math stays f32."""
    H = params["gru_l0"]["fwd"]["w_hh"].shape[1]

    def pack_layer(layer):
        f, b = layer["fwd"], layer["bwd"]
        wih = jnp.concatenate([f["w_ih"].T, b["w_ih"].T], axis=1)      # (I, 6H)
        bih = jnp.concatenate([f["b_ih"], b["b_ih"]]).reshape(1, -1)
        whf, whb = f["w_hh"].T, b["w_hh"].T                            # (H, 3H)
        Z = jnp.zeros((H, H), jnp.float32)
        blocks = []
        for g in range(3):                                             # r, z, n
            top = jnp.concatenate([whf[:, g * H:(g + 1) * H], Z], axis=1)
            bot = jnp.concatenate([Z, whb[:, g * H:(g + 1) * H]], axis=1)
            blocks.append(jnp.concatenate([top, bot], axis=0))         # (2H, 2H)
        whh = jnp.concatenate(blocks, axis=1)                          # (2H, 6H)
        bhh = jnp.concatenate(
            [jnp.concatenate([f["b_hh"][g * H:(g + 1) * H],
                              b["b_hh"][g * H:(g + 1) * H]]) for g in range(3)]
        ).reshape(1, -1)
        return {"wih": wih.astype(jnp.bfloat16), "bih": bih,
                "whh": whh.astype(jnp.bfloat16), "bhh": bhh}

    nc = params["fc_w"].shape[1]
    ncp = ((nc + 127) // 128) * 128
    fc_w = jnp.zeros((params["fc_w"].shape[0], ncp), jnp.float32)
    fc_w = fc_w.at[:, :nc].set(params["fc_w"])
    fc_b = jnp.full((1, ncp), -1e30, jnp.float32)
    fc_b = fc_b.at[0, :nc].set(params["fc_b"])

    return {
        "backbone_w": params["backbone_w"].astype(jnp.bfloat16),
        "backbone_b": params["backbone_b"].reshape(1, -1),
        "gate_w": params["gate_w"].astype(jnp.bfloat16),
        "gru_l0": pack_layer(params["gru_l0"]),
        "gru_l1": pack_layer(params["gru_l1"]),
        "fc_w": fc_w.astype(jnp.bfloat16),
        "fc_b": fc_b,
    }


if __name__ == "__main__":
    key = jax.random.PRNGKey(0)
    k_x, k_p = jax.random.split(key)

    N, C, H, W = 2, 3, 32, 64          # small shapes; seq_len = W/8 = 8
    NUM_CLASSES = 11
    x = jax.random.normal(k_x, (N, C, H, W), dtype=jnp.float32)
    params = prepare_params(
        init_params(k_p, in_ch=C, hp=H // 8, num_classes=NUM_CLASSES))

    fwd = jax.jit(functools.partial(crnn_forward, num_classes=NUM_CLASSES))
    out = jax.block_until_ready(fwd(x, params))

    assert out.shape == (W // 8, N, NUM_CLASSES), out.shape
    assert bool(jnp.all(jnp.isfinite(out)))
    # log-softmax rows must normalize to 1 in prob space
    assert bool(jnp.allclose(jnp.sum(jnp.exp(out), axis=2), 1.0, atol=1e-4))
    print("KERNEL_OK")
</pallas_src>

<mosaic_0001>
module attributes {stable_mosaic.version = 11 : i64} {
  func.func @_backbone_gate_kernel(%arg0: memref<64x192xf32, #tpu.memory_space<vmem>>, %arg1: memref<192x16xbf16, #tpu.memory_space<vmem>>, %arg2: memref<1x16xf32, #tpu.memory_space<vmem>>, %arg3: memref<16x8xbf16, #tpu.memory_space<vmem>>, %arg4: memref<64x8xf32, #tpu.memory_space<vmem>>) attributes {dimension_semantics = [], scalar_prefetch = 0 : i64, scratch_operands = 0 : i64, tpu.core_type = #tpu.core_type<tc>} {
    %c0 = arith.constant 0 : index
    %c0_0 = arith.constant 0 : index
    %0 = vector.load %arg0[%c0, %c0_0] : memref<64x192xf32, #tpu.memory_space<vmem>>, vector<64x192xf32>
    %1 = arith.truncf %0 : vector<64x192xf32> to vector<64x192xbf16>
    %c0_1 = arith.constant 0 : index
    %c0_2 = arith.constant 0 : index
    %2 = vector.load %arg1[%c0_1, %c0_2] : memref<192x16xbf16, #tpu.memory_space<vmem>>, vector<192x16xbf16>
    %cst = arith.constant dense<0.000000e+00> : vector<64x16xf32>
    %3 = tpu.matmul %1, %2, %cst {dimension_numbers = #tpu.dot_dimension_numbers<[1], [0], [0], [1], [0, 0, 1, 1], [], []>} : vector<64x192xbf16>, vector<192x16xbf16>, vector<64x16xf32> -> vector<64x16xf32>
    %c0_3 = arith.constant 0 : index
    %c0_4 = arith.constant 0 : index
    %4 = vector.load %arg2[%c0_3, %c0_4] : memref<1x16xf32, #tpu.memory_space<vmem>>, vector<1x16xf32>
    %5 = vector.broadcast %4 : vector<1x16xf32> to vector<64x16xf32>
    %6 = arith.addf %3, %5 : vector<64x16xf32>
    %cst_5 = arith.constant 0.000000e+00 : f32
    %7 = vector.broadcast %cst_5 : f32 to vector<64x16xf32>
    %8 = arith.maximumf %6, %7 : vector<64x16xf32>
    %9 = arith.truncf %8 : vector<64x16xf32> to vector<64x16xbf16>
    %c0_6 = arith.constant 0 : index
    %c0_7 = arith.constant 0 : index
    %10 = vector.load %arg3[%c0_6, %c0_7] : memref<16x8xbf16, #tpu.memory_space<vmem>>, vector<16x8xbf16>
    %cst_8 = arith.constant dense<0.000000e+00> : vector<64x8xf32>
    %11 = tpu.matmul %9, %10, %cst_8 {dimension_numbers = #tpu.dot_dimension_numbers<[1], [0], [0], [1], [0, 0, 1, 1], [], []>} : vector<64x16xbf16>, vector<16x8xbf16>, vector<64x8xf32> -> vector<64x8xf32>
    %c0_9 = arith.constant 0 : index
    %c0_10 = arith.constant 0 : index
    %12 = vector.load %arg4[%c0_9, %c0_10] : memref<64x8xf32, #tpu.memory_space<vmem>>, vector<64x8xf32>
    tpu.vector_store %arg4[%c0_9, %c0_10], %11 {strides = array<i32>} : memref<64x8xf32, #tpu.memory_space<vmem>>, vector<64x8xf32>,
    return
  }
}

module attributes {stable_mosaic.version = 11 : i64} {
  func.func @_gru_stack_fc_kernel(%arg0: memref<16x32xf32, #tpu.memory_space<vmem>>, %arg1: memref<32x192xbf16, #tpu.memory_space<vmem>>, %arg2: memref<1x192xf32, #tpu.memory_space<vmem>>, %arg3: memref<64x192xbf16, #tpu.memory_space<vmem>>, %arg4: memref<1x192xf32, #tpu.memory_space<vmem>>, %arg5: memref<64x192xbf16, #tpu.memory_space<vmem>>, %arg6: memref<1x192xf32, #tpu.memory_space<vmem>>, %arg7: memref<64x192xbf16, #tpu.memory_space<vmem>>, %arg8: memref<1x192xf32, #tpu.memory_space<vmem>>, %arg9: memref<64x128xbf16, #tpu.memory_space<vmem>>, %arg10: memref<1x128xf32, #tpu.memory_space<vmem>>, %arg11: memref<16x128xf32, #tpu.memory_space<vmem>>) attributes {dimension_semantics = [], scalar_prefetch = 0 : i64, scratch_operands = 0 : i64, tpu.core_type = #tpu.core_type<tc>} {
    %c0 = arith.constant 0 : index
    %c0_0 = arith.constant 0 : index
    %0 = vector.load %arg0[%c0, %c0_0] : memref<16x32xf32, #tpu.memory_space<vmem>>, vector<16x32xf32>
    %c0_1 = arith.constant 0 : index
    %c0_2 = arith.constant 0 : index
    %1 = vector.load %arg1[%c0_1, %c0_2] : memref<32x192xbf16, #tpu.memory_space<vmem>>, vector<32x192xbf16>
    %c0_3 = arith.constant 0 : index
    %c0_4 = arith.constant 0 : index
    %2 = vector.load %arg2[%c0_3, %c0_4] : memref<1x192xf32, #tpu.memory_space<vmem>>, vector<1x192xf32>
    %c0_5 = arith.constant 0 : index
    %c0_6 = arith.constant 0 : index
    %3 = vector.load %arg3[%c0_5, %c0_6] : memref<64x192xbf16, #tpu.memory_space<vmem>>, vector<64x192xbf16>
    %c0_7 = arith.constant 0 : index
    %c0_8 = arith.constant 0 : index
    %4 = vector.load %arg4[%c0_7, %c0_8] : memref<1x192xf32, #tpu.memory_space<vmem>>, vector<1x192xf32>
    %5 = arith.truncf %0 : vector<16x32xf32> to vector<16x32xbf16>
    %cst = arith.constant dense<0.000000e+00> : vector<16x192xf32>
    %6 = tpu.matmul %5, %1, %cst {dimension_numbers = #tpu.dot_dimension_numbers<[1], [0], [0], [1], [0, 0, 1, 1], [], []>} : vector<16x32xbf16>, vector<32x192xbf16>, vector<16x192xf32> -> vector<16x192xf32>
    %7 = vector.broadcast %2 : vector<1x192xf32> to vector<16x192xf32>
    %8 = arith.addf %6, %7 : vector<16x192xf32>
    %9 = vector.extract_strided_slice %8 {offsets = [0, 0], sizes = [2, 192], strides = [1, 1]} : vector<16x192xf32> to vector<2x192xf32>
    %10 = vector.extract_strided_slice %8 {offsets = [14, 0], sizes = [2, 192], strides = [1, 1]} : vector<16x192xf32> to vector<2x192xf32>
    %11 = vector.extract_strided_slice %9 {offsets = [0, 0], sizes = [2, 32], strides = [1, 1]} : vector<2x192xf32> to vector<2x32xf32>
    %12 = vector.extract_strided_slice %10 {offsets = [0, 96], sizes = [2, 32], strides = [1, 1]} : vector<2x192xf32> to vector<2x32xf32>
    %13 = vector.extract_strided_slice %9 {offsets = [0, 32], sizes = [2, 32], strides = [1, 1]} : vector<2x192xf32> to vector<2x32xf32>
    %14 = vector.extract_strided_slice %10 {offsets = [0, 128], sizes = [2, 32], strides = [1, 1]} : vector<2x192xf32> to vector<2x32xf32>
    %15 = vector.extract_strided_slice %9 {offsets = [0, 64], sizes = [2, 32], strides = [1, 1]} : vector<2x192xf32> to vector<2x32xf32>
    %16 = vector.extract_strided_slice %10 {offsets = [0, 160], sizes = [2, 32], strides = [1, 1]} : vector<2x192xf32> to vector<2x32xf32>
    %17 = tpu.concatenate %11, %12, %13, %14, %15, %16 in 1 : vector<2x32xf32>, vector<2x32xf32>, vector<2x32xf32>, vector<2x32xf32>, vector<2x32xf32>, vector<2x32xf32> -> vector<2x192xf32>
    %18 = vector.extract_strided_slice %8 {offsets = [2, 0], sizes = [2, 192], strides = [1, 1]} : vector<16x192xf32> to vector<2x192xf32>
    %19 = vector.extract_strided_slice %8 {offsets = [12, 0], sizes = [2, 192], strides = [1, 1]} : vector<16x192xf32> to vector<2x192xf32>
    %20 = vector.extract_strided_slice %18 {offsets = [0, 0], sizes = [2, 32], strides = [1, 1]} : vector<2x192xf32> to vector<2x32xf32>
    %21 = vector.extract_strided_slice %19 {offsets = [0, 96], sizes = [2, 32], strides = [1, 1]} : vector<2x192xf32> to vector<2x32xf32>
    %22 = vector.extract_strided_slice %18 {offsets = [0, 32], sizes = [2, 32], strides = [1, 1]} : vector<2x192xf32> to vector<2x32xf32>
    %23 = vector.extract_strided_slice %19 {offsets = [0, 128], sizes = [2, 32], strides = [1, 1]} : vector<2x192xf32> to vector<2x32xf32>
    %24 = vector.extract_strided_slice %18 {offsets = [0, 64], sizes = [2, 32], strides = [1, 1]} : vector<2x192xf32> to vector<2x32xf32>
    %25 = vector.extract_strided_slice %19 {offsets = [0, 160], sizes = [2, 32], strides = [1, 1]} : vector<2x192xf32> to vector<2x32xf32>
    %26 = tpu.concatenate %20, %21, %22, %23, %24, %25 in 1 : vector<2x32xf32>, vector<2x32xf32>, vector<2x32xf32>, vector<2x32xf32>, vector<2x32xf32>, vector<2x32xf32> -> vector<2x192xf32>
    %27 = vector.extract_strided_slice %8 {offsets = [4, 0], sizes = [2, 192], strides = [1, 1]} : vector<16x192xf32> to vector<2x192xf32>
    %28 = vector.extract_strided_slice %8 {offsets = [10, 0], sizes = [2, 192], strides = [1, 1]} : vector<16x192xf32> to vector<2x192xf32>
    %29 = vector.extract_strided_slice %27 {offsets = [0, 0], sizes = [2, 32], strides = [1, 1]} : vector<2x192xf32> to vector<2x32xf32>
    %30 = vector.extract_strided_slice %28 {offsets = [0, 96], sizes = [2, 32], strides = [1, 1]} : vector<2x192xf32> to vector<2x32xf32>
    %31 = vector.extract_strided_slice %27 {offsets = [0, 32], sizes = [2, 32], strides = [1, 1]} : vector<2x192xf32> to vector<2x32xf32>
    %32 = vector.extract_strided_slice %28 {offsets = [0, 128], sizes = [2, 32], strides = [1, 1]} : vector<2x192xf32> to vector<2x32xf32>
    %33 = vector.extract_strided_slice %27 {offsets = [0, 64], sizes = [2, 32], strides = [1, 1]} : vector<2x192xf32> to vector<2x32xf32>
    %34 = vector.extract_strided_slice %28 {offsets = [0, 160], sizes = [2, 32], strides = [1, 1]} : vector<2x192xf32> to vector<2x32xf32>
    %35 = tpu.concatenate %29, %30, %31, %32, %33, %34 in 1 : vector<2x32xf32>, vector<2x32xf32>, vector<2x32xf32>, vector<2x32xf32>, vector<2x32xf32>, vector<2x32xf32> -> vector<2x192xf32>
    %36 = vector.extract_strided_slice %8 {offsets = [6, 0], sizes = [2, 192], strides = [1, 1]} : vector<16x192xf32> to vector<2x192xf32>
    %37 = vector.extract_strided_slice %8 {offsets = [8, 0], sizes = [2, 192], strides = [1, 1]} : vector<16x192xf32> to vector<2x192xf32>
    %38 = vector.extract_strided_slice %36 {offsets = [0, 0], sizes = [2, 32], strides = [1, 1]} : vector<2x192xf32> to vector<2x32xf32>
    %39 = vector.extract_strided_slice %37 {offsets = [0, 96], sizes = [2, 32], strides = [1, 1]} : vector<2x192xf32> to vector<2x32xf32>
    %40 = vector.extract_strided_slice %36 {offsets = [0, 32], sizes = [2, 32], strides = [1, 1]} : vector<2x192xf32> to vector<2x32xf32>
    %41 = vector.extract_strided_slice %37 {offsets = [0, 128], sizes = [2, 32], strides = [1, 1]} : vector<2x192xf32> to vector<2x32xf32>
    %42 = vector.extract_strided_slice %36 {offsets = [0, 64], sizes = [2, 32], strides = [1, 1]} : vector<2x192xf32> to vector<2x32xf32>
    %43 = vector.extract_strided_slice %37 {offsets = [0, 160], sizes = [2, 32], strides = [1, 1]} : vector<2x192xf32> to vector<2x32xf32>
    %44 = tpu.concatenate %38, %39, %40, %41, %42, %43 in 1 : vector<2x32xf32>, vector<2x32xf32>, vector<2x32xf32>, vector<2x32xf32>, vector<2x32xf32>, vector<2x32xf32> -> vector<2x192xf32>
    %45 = vector.extract_strided_slice %8 {offsets = [8, 0], sizes = [2, 192], strides = [1, 1]} : vector<16x192xf32> to vector<2x192xf32>
    %46 = vector.extract_strided_slice %8 {offsets = [6, 0], sizes = [2, 192], strides = [1, 1]} : vector<16x192xf32> to vector<2x192xf32>
    %47 = vector.extract_strided_slice %45 {offsets = [0, 0], sizes = [2, 32], strides = [1, 1]} : vector<2x192xf32> to vector<2x32xf32>
    %48 = vector.extract_strided_slice %46 {offsets = [0, 96], sizes = [2, 32], strides = [1, 1]} : vector<2x192xf32> to vector<2x32xf32>
    %49 = vector.extract_strided_slice %45 {offsets = [0, 32], sizes = [2, 32], strides = [1, 1]} : vector<2x192xf32> to vector<2x32xf32>
    %50 = vector.extract_strided_slice %46 {offsets = [0, 128], sizes = [2, 32], strides = [1, 1]} : vector<2x192xf32> to vector<2x32xf32>
    %51 = vector.extract_strided_slice %45 {offsets = [0, 64], sizes = [2, 32], strides = [1, 1]} : vector<2x192xf32> to vector<2x32xf32>
    %52 = vector.extract_strided_slice %46 {offsets = [0, 160], sizes = [2, 32], strides = [1, 1]} : vector<2x192xf32> to vector<2x32xf32>
    %53 = tpu.concatenate %47, %48, %49, %50, %51, %52 in 1 : vector<2x32xf32>, vector<2x32xf32>, vector<2x32xf32>, vector<2x32xf32>, vector<2x32xf32>, vector<2x32xf32> -> vector<2x192xf32>
    %54 = vector.extract_strided_slice %8 {offsets = [10, 0], sizes = [2, 192], strides = [1, 1]} : vector<16x192xf32> to vector<2x192xf32>
    %55 = vector.extract_strided_slice %8 {offsets = [4, 0], sizes = [2, 192], strides = [1, 1]} : vector<16x192xf32> to vector<2x192xf32>
    %56 = vector.extract_strided_slice %54 {offsets = [0, 0], sizes = [2, 32], strides = [1, 1]} : vector<2x192xf32> to vector<2x32xf32>
    %57 = vector.extract_strided_slice %55 {offsets = [0, 96], sizes = [2, 32], strides = [1, 1]} : vector<2x192xf32> to vector<2x32xf32>
    %58 = vector.extract_strided_slice %54 {offsets = [0, 32], sizes = [2, 32], strides = [1, 1]} : vector<2x192xf32> to vector<2x32xf32>
    %59 = vector.extract_strided_slice %55 {offsets = [0, 128], sizes = [2, 32], strides = [1, 1]} : vector<2x192xf32> to vector<2x32xf32>
    %60 = vector.extract_strided_slice %54 {offsets = [0, 64], sizes = [2, 32], strides = [1, 1]} : vector<2x192xf32> to vector<2x32xf32>
    %61 = vector.extract_strided_slice %55 {offsets = [0, 160], sizes = [2, 32], strides = [1, 1]} : vector<2x192xf32> to vector<2x32xf32>
    %62 = tpu.concatenate %56, %57, %58, %59, %60, %61 in 1 : vector<2x32xf32>, vector<2x32xf32>, vector<2x32xf32>, vector<2x32xf32>, vector<2x32xf32>, vector<2x32xf32> -> vector<2x192xf32>
    %63 = vector.extract_strided_slice %8 {offsets = [12, 0], sizes = [2, 192], strides = [1, 1]} : vector<16x192xf32> to vector<2x192xf32>
    %64 = vector.extract_strided_slice %8 {offsets = [2, 0], sizes = [2, 192], strides = [1, 1]} : vector<16x192xf32> to vector<2x192xf32>
    %65 = vector.extract_strided_slice %63 {offsets = [0, 0], sizes = [2, 32], strides = [1, 1]} : vector<2x192xf32> to vector<2x32xf32>
    %66 = vector.extract_strided_slice %64 {offsets = [0, 96], sizes = [2, 32], strides = [1, 1]} : vector<2x192xf32> to vector<2x32xf32>
    %67 = vector.extract_strided_slice %63 {offsets = [0, 32], sizes = [2, 32], strides = [1, 1]} : vector<2x192xf32> to vector<2x32xf32>
    %68 = vector.extract_strided_slice %64 {offsets = [0, 128], sizes = [2, 32], strides = [1, 1]} : vector<2x192xf32> to vector<2x32xf32>
    %69 = vector.extract_strided_slice %63 {offsets = [0, 64], sizes = [2, 32], strides = [1, 1]} : vector<2x192xf32> to vector<2x32xf32>
    %70 = vector.extract_strided_slice %64 {offsets = [0, 160], sizes = [2, 32], strides = [1, 1]} : vector<2x192xf32> to vector<2x32xf32>
    %71 = tpu.concatenate %65, %66, %67, %68, %69, %70 in 1 : vector<2x32xf32>, vector<2x32xf32>, vector<2x32xf32>, vector<2x32xf32>, vector<2x32xf32>, vector<2x32xf32> -> vector<2x192xf32>
    %72 = vector.extract_strided_slice %8 {offsets = [14, 0], sizes = [2, 192], strides = [1, 1]} : vector<16x192xf32> to vector<2x192xf32>
    %73 = vector.extract_strided_slice %8 {offsets = [0, 0], sizes = [2, 192], strides = [1, 1]} : vector<16x192xf32> to vector<2x192xf32>
    %74 = vector.extract_strided_slice %72 {offsets = [0, 0], sizes = [2, 32], strides = [1, 1]} : vector<2x192xf32> to vector<2x32xf32>
    %75 = vector.extract_strided_slice %73 {offsets = [0, 96], sizes = [2, 32], strides = [1, 1]} : vector<2x192xf32> to vector<2x32xf32>
    %76 = vector.extract_strided_slice %72 {offsets = [0, 32], sizes = [2, 32], strides = [1, 1]} : vector<2x192xf32> to vector<2x32xf32>
    %77 = vector.extract_strided_slice %73 {offsets = [0, 128], sizes = [2, 32], strides = [1, 1]} : vector<2x192xf32> to vector<2x32xf32>
    %78 = vector.extract_strided_slice %72 {offsets = [0, 64], sizes = [2, 32], strides = [1, 1]} : vector<2x192xf32> to vector<2x32xf32>
    %79 = vector.extract_strided_slice %73 {offsets = [0, 160], sizes = [2, 32], strides = [1, 1]} : vector<2x192xf32> to vector<2x32xf32>
    %80 = tpu.concatenate %74, %75, %76, %77, %78, %79 in 1 : vector<2x32xf32>, vector<2x32xf32>, vector<2x32xf32>, vector<2x32xf32>, vector<2x32xf32>, vector<2x32xf32> -> vector<2x192xf32>
    %cst_9 = arith.constant 0.000000e+00 : f32
    %81 = vector.broadcast %cst_9 : f32 to vector<2x64xf32>
    %82 = arith.truncf %81 : vector<2x64xf32> to vector<2x64xbf16>
    %cst_10 = arith.constant dense<0.000000e+00> : vector<2x192xf32>
    %83 = tpu.matmul %82, %3, %cst_10 {dimension_numbers = #tpu.dot_dimension_numbers<[1], [0], [0], [1], [0, 0, 1, 1], [], []>} : vector<2x64xbf16>, vector<64x192xbf16>, vector<2x192xf32> -> vector<2x192xf32>
    %84 = vector.broadcast %4 : vector<1x192xf32> to vector<2x192xf32>
    %85 = arith.addf %83, %84 : vector<2x192xf32>
    %86 = vector.extract_strided_slice %17 {offsets = [0, 0], sizes = [2, 64], strides = [1, 1]} : vector<2x192xf32> to vector<2x64xf32>
    %87 = vector.extract_strided_slice %85 {offsets = [0, 0], sizes = [2, 64], strides = [1, 1]} : vector<2x192xf32> to vector<2x64xf32>
    %88 = arith.addf %86, %87 : vector<2x64xf32>
    %89 = arith.negf %88 : vector<2x64xf32>
    %90 = math.exp %89 : vector<2x64xf32>
    %cst_11 = arith.constant 1.000000e+00 : f32
    %91 = vector.broadcast %cst_11 : f32 to vector<2x64xf32>
    %92 = arith.addf %91, %90 : vector<2x64xf32>
    %93 = arith.divf %91, %92 : vector<2x64xf32>
    %94 = vector.extract_strided_slice %17 {offsets = [0, 64], sizes = [2, 64], strides = [1, 1]} : vector<2x192xf32> to vector<2x64xf32>
    %95 = vector.extract_strided_slice %85 {offsets = [0, 64], sizes = [2, 64], strides = [1, 1]} : vector<2x192xf32> to vector<2x64xf32>
    %96 = arith.addf %94, %95 : vector<2x64xf32>
    %97 = arith.negf %96 : vector<2x64xf32>
    %98 = math.exp %97 : vector<2x64xf32>
    %cst_12 = arith.constant 1.000000e+00 : f32
    %99 = vector.broadcast %cst_12 : f32 to vector<2x64xf32>
    %100 = arith.addf %99, %98 : vector<2x64xf32>
    %101 = arith.divf %99, %100 : vector<2x64xf32>
    %102 = vector.extract_strided_slice %17 {offsets = [0, 128], sizes = [2, 64], strides = [1, 1]} : vector<2x192xf32> to vector<2x64xf32>
    %103 = vector.extract_strided_slice %85 {offsets = [0, 128], sizes = [2, 64], strides = [1, 1]} : vector<2x192xf32> to vector<2x64xf32>
    %104 = arith.mulf %93, %103 : vector<2x64xf32>
    %105 = arith.addf %102, %104 : vector<2x64xf32>
    %106 = math.tanh %105 : vector<2x64xf32>
    %cst_13 = arith.constant 1.000000e+00 : f32
    %107 = vector.broadcast %cst_13 : f32 to vector<2x64xf32>
    %108 = arith.subf %107, %101 : vector<2x64xf32>
    %109 = arith.mulf %108, %106 : vector<2x64xf32>
    %110 = arith.mulf %101, %81 : vector<2x64xf32>
    %111 = arith.addf %109, %110 : vector<2x64xf32>
    %112 = arith.truncf %111 : vector<2x64xf32> to vector<2x64xbf16>
    %cst_14 = arith.constant dense<0.000000e+00> : vector<2x192xf32>
    %113 = tpu.matmul %112, %3, %cst_14 {dimension_numbers = #tpu.dot_dimension_numbers<[1], [0], [0], [1], [0, 0, 1, 1], [], []>} : vector<2x64xbf16>, vector<64x192xbf16>, vector<2x192xf32> -> vector<2x192xf32>
    %114 = vector.broadcast %4 : vector<1x192xf32> to vector<2x192xf32>
    %115 = arith.addf %113, %114 : vector<2x192xf32>
    %116 = vector.extract_strided_slice %26 {offsets = [0, 0], sizes = [2, 64], strides = [1, 1]} : vector<2x192xf32> to vector<2x64xf32>
    %117 = vector.extract_strided_slice %115 {offsets = [0, 0], sizes = [2, 64], strides = [1, 1]} : vector<2x192xf32> to vector<2x64xf32>
    %118 = arith.addf %116, %117 : vector<2x64xf32>
    %119 = arith.negf %118 : vector<2x64xf32>
    %120 = math.exp %119 : vector<2x64xf32>
    %cst_15 = arith.constant 1.000000e+00 : f32
    %121 = vector.broadcast %cst_15 : f32 to vector<2x64xf32>
    %122 = arith.addf %121, %120 : vector<2x64xf32>
    %123 = arith.divf %121, %122 : vector<2x64xf32>
    %124 = vector.extract_strided_slice %26 {offsets = [0, 64], sizes = [2, 64], strides = [1, 1]} : vector<2x192xf32> to vector<2x64xf32>
    %125 = vector.extract_strided_slice %115 {offsets = [0, 64], sizes = [2, 64], strides = [1, 1]} : vector<2x192xf32> to vector<2x64xf32>
    %126 = arith.addf %124, %125 : vector<2x64xf32>
    %127 = arith.negf %126 : vector<2x64xf32>
    %128 = math.exp %127 : vector<2x64xf32>
    %cst_16 = arith.constant 1.000000e+00 : f32
    %129 = vector.broadcast %cst_16 : f32 to vector<2x64xf32>
    %130 = arith.addf %129, %128 : vector<2x64xf32>
    %131 = arith.divf %129, %130 : vector<2x64xf32>
    %132 = vector.extract_strided_slice %26 {offsets = [0, 128], sizes = [2, 64], strides = [1, 1]} : vector<2x192xf32> to vector<2x64xf32>
    %133 = vector.extract_strided_slice %115 {offsets = [0, 128], sizes = [2, 64], strides = [1, 1]} : vector<2x192xf32> to vector<2x64xf32>
    %134 = arith.mulf %123, %133 : vector<2x64xf32>
    %135 = arith.addf %132, %134 : vector<2x64xf32>
    %136 = math.tanh %135 : vector<2x64xf32>
    %cst_17 = arith.constant 1.000000e+00 : f32
    %137 = vector.broadcast %cst_17 : f32 to vector<2x64xf32>
    %138 = arith.subf %137, %131 : vector<2x64xf32>
    %139 = arith.mulf %138, %136 : vector<2x64xf32>
    %140 = arith.mulf %131, %111 : vector<2x64xf32>
    %141 = arith.addf %139, %140 : vector<2x64xf32>
    %142 = arith.truncf %141 : vector<2x64xf32> to vector<2x64xbf16>
    %cst_18 = arith.constant dense<0.000000e+00> : vector<2x192xf32>
    %143 = tpu.matmul %142, %3, %cst_18 {dimension_numbers = #tpu.dot_dimension_numbers<[1], [0], [0], [1], [0, 0, 1, 1], [], []>} : vector<2x64xbf16>, vector<64x192xbf16>, vector<2x192xf32> -> vector<2x192xf32>
    %144 = vector.broadcast %4 : vector<1x192xf32> to vector<2x192xf32>
    %145 = arith.addf %143, %144 : vector<2x192xf32>
    %146 = vector.extract_strided_slice %35 {offsets = [0, 0], sizes = [2, 64], strides = [1, 1]} : vector<2x192xf32> to vector<2x64xf32>
    %147 = vector.extract_strided_slice %145 {offsets = [0, 0], sizes = [2, 64], strides = [1, 1]} : vector<2x192xf32> to vector<2x64xf32>
    %148 = arith.addf %146, %147 : vector<2x64xf32>
    %149 = arith.negf %148 : vector<2x64xf32>
    %150 = math.exp %149 : vector<2x64xf32>
    %cst_19 = arith.constant 1.000000e+00 : f32
    %151 = vector.broadcast %cst_19 : f32 to vector<2x64xf32>
    %152 = arith.addf %151, %150 : vector<2x64xf32>
    %153 = arith.divf %151, %152 : vector<2x64xf32>
    %154 = vector.extract_strided_slice %35 {offsets = [0, 64], sizes = [2, 64], strides = [1, 1]} : vector<2x192xf32> to vector<2x64xf32>
    %155 = vector.extract_strided_slice %145 {offsets = [0, 64], sizes = [2, 64], strides = [1, 1]} : vector<2x192xf32> to vector<2x64xf32>
    %156 = arith.addf %154, %155 : vector<2x64xf32>
    %157 = arith.negf %156 : vector<2x64xf32>
    %158 = math.exp %157 : vector<2x64xf32>
    %cst_20 = arith.constant 1.000000e+00 : f32
    %159 = vector.broadcast %cst_20 : f32 to vector<2x64xf32>
    %160 = arith.addf %159, %158 : vector<2x64xf32>
    %161 = arith.divf %159, %160 : vector<2x64xf32>
    %162 = vector.extract_strided_slice %35 {offsets = [0, 128], sizes = [2, 64], strides = [1, 1]} : vector<2x192xf32> to vector<2x64xf32>
    %163 = vector.extract_strided_slice %145 {offsets = [0, 128], sizes = [2, 64], strides = [1, 1]} : vector<2x192xf32> to vector<2x64xf32>
    %164 = arith.mulf %153, %163 : vector<2x64xf32>
    %165 = arith.addf %162, %164 : vector<2x64xf32>
    %166 = math.tanh %165 : vector<2x64xf32>
    %cst_21 = arith.constant 1.000000e+00 : f32
    %167 = vector.broadcast %cst_21 : f32 to vector<2x64xf32>
    %168 = arith.subf %167, %161 : vector<2x64xf32>
    %169 = arith.mulf %168, %166 : vector<2x64xf32>
    %170 = arith.mulf %161, %141 : vector<2x64xf32>
    %171 = arith.addf %169, %170 : vector<2x64xf32>
    %172 = arith.truncf %171 : vector<2x64xf32> to vector<2x64xbf16>
    %cst_22 = arith.constant dense<0.000000e+00> : vector<2x192xf32>
    %173 = tpu.matmul %172, %3, %cst_22 {dimension_numbers = #tpu.dot_dimension_numbers<[1], [0], [0], [1], [0, 0, 1, 1], [], []>} : vector<2x64xbf16>, vector<64x192xbf16>, vector<2x192xf32> -> vector<2x192xf32>
    %174 = vector.broadcast %4 : vector<1x192xf32> to vector<2x192xf32>
    %175 = arith.addf %173, %174 : vector<2x192xf32>
    %176 = vector.extract_strided_slice %44 {offsets = [0, 0], sizes = [2, 64], strides = [1, 1]} : vector<2x192xf32> to vector<2x64xf32>
    %177 = vector.extract_strided_slice %175 {offsets = [0, 0], sizes = [2, 64], strides = [1, 1]} : vector<2x192xf32> to vector<2x64xf32>
    %178 = arith.addf %176, %177 : vector<2x64xf32>
    %179 = arith.negf %178 : vector<2x64xf32>
    %180 = math.exp %179 : vector<2x64xf32>
    %cst_23 = arith.constant 1.000000e+00 : f32
    %181 = vector.broadcast %cst_23 : f32 to vector<2x64xf32>
    %182 = arith.addf %181, %180 : vector<2x64xf32>
    %183 = arith.divf %181, %182 : vector<2x64xf32>
    %184 = vector.extract_strided_slice %44 {offsets = [0, 64], sizes = [2, 64], strides = [1, 1]} : vector<2x192xf32> to vector<2x64xf32>
    %185 = vector.extract_strided_slice %175 {offsets = [0, 64], sizes = [2, 64], strides = [1, 1]} : vector<2x192xf32> to vector<2x64xf32>
    %186 = arith.addf %184, %185 : vector<2x64xf32>
    %187 = arith.negf %186 : vector<2x64xf32>
    %188 = math.exp %187 : vector<2x64xf32>
    %cst_24 = arith.constant 1.000000e+00 : f32
    %189 = vector.broadcast %cst_24 : f32 to vector<2x64xf32>
    %190 = arith.addf %189, %188 : vector<2x64xf32>
    %191 = arith.divf %189, %190 : vector<2x64xf32>
    %192 = vector.extract_strided_slice %44 {offsets = [0, 128], sizes = [2, 64], strides = [1, 1]} : vector<2x192xf32> to vector<2x64xf32>
    %193 = vector.extract_strided_slice %175 {offsets = [0, 128], sizes = [2, 64], strides = [1, 1]} : vector<2x192xf32> to vector<2x64xf32>
    %194 = arith.mulf %183, %193 : vector<2x64xf32>
    %195 = arith.addf %192, %194 : vector<2x64xf32>
    %196 = math.tanh %195 : vector<2x64xf32>
    %cst_25 = arith.constant 1.000000e+00 : f32
    %197 = vector.broadcast %cst_25 : f32 to vector<2x64xf32>
    %198 = arith.subf %197, %191 : vector<2x64xf32>
    %199 = arith.mulf %198, %196 : vector<2x64xf32>
    %200 = arith.mulf %191, %171 : vector<2x64xf32>
    %201 = arith.addf %199, %200 : vector<2x64xf32>
    %202 = arith.truncf %201 : vector<2x64xf32> to vector<2x64xbf16>
    %cst_26 = arith.constant dense<0.000000e+00> : vector<2x192xf32>
    %203 = tpu.matmul %202, %3, %cst_26 {dimension_numbers = #tpu.dot_dimension_numbers<[1], [0], [0], [1], [0, 0, 1, 1], [], []>} : vector<2x64xbf16>, vector<64x192xbf16>, vector<2x192xf32> -> vector<2x192xf32>
    %204 = vector.broadcast %4 : vector<1x192xf32> to vector<2x192xf32>
    %205 = arith.addf %203, %204 : vector<2x192xf32>
    %206 = vector.extract_strided_slice %53 {offsets = [0, 0], sizes = [2, 64], strides = [1, 1]} : vector<2x192xf32> to vector<2x64xf32>
    %207 = vector.extract_strided_slice %205 {offsets = [0, 0], sizes = [2, 64], strides = [1, 1]} : vector<2x192xf32> to vector<2x64xf32>
    %208 = arith.addf %206, %207 : vector<2x64xf32>
    %209 = arith.negf %208 : vector<2x64xf32>
    %210 = math.exp %209 : vector<2x64xf32>
    %cst_27 = arith.constant 1.000000e+00 : f32
    %211 = vector.broadcast %cst_27 : f32 to vector<2x64xf32>
    %212 = arith.addf %211, %210 : vector<2x64xf32>
    %213 = arith.divf %211, %212 : vector<2x64xf32>
    %214 = vector.extract_strided_slice %53 {offsets = [0, 64], sizes = [2, 64], strides = [1, 1]} : vector<2x192xf32> to vector<2x64xf32>
    %215 = vector.extract_strided_slice %205 {offsets = [0, 64], sizes = [2, 64], strides = [1, 1]} : vector<2x192xf32> to vector<2x64xf32>
    %216 = arith.addf %214, %215 : vector<2x64xf32>
    %217 = arith.negf %216 : vector<2x64xf32>
    %218 = math.exp %217 : vector<2x64xf32>
    %cst_28 = arith.constant 1.000000e+00 : f32
    %219 = vector.broadcast %cst_28 : f32 to vector<2x64xf32>
    %220 = arith.addf %219, %218 : vector<2x64xf32>
    %221 = arith.divf %219, %220 : vector<2x64xf32>
    %222 = vector.extract_strided_slice %53 {offsets = [0, 128], sizes = [2, 64], strides = [1, 1]} : vector<2x192xf32> to vector<2x64xf32>
    %223 = vector.extract_strided_slice %205 {offsets = [0, 128], sizes = [2, 64], strides = [1, 1]} : vector<2x192xf32> to vector<2x64xf32>
    %224 = arith.mulf %213, %223 : vector<2x64xf32>
    %225 = arith.addf %222, %224 : vector<2x64xf32>
    %226 = math.tanh %225 : vector<2x64xf32>
    %cst_29 = arith.constant 1.000000e+00 : f32
    %227 = vector.broadcast %cst_29 : f32 to vector<2x64xf32>
    %228 = arith.subf %227, %221 : vector<2x64xf32>
    %229 = arith.mulf %228, %226 : vector<2x64xf32>
    %230 = arith.mulf %221, %201 : vector<2x64xf32>
    %231 = arith.addf %229, %230 : vector<2x64xf32>
    %232 = arith.truncf %231 : vector<2x64xf32> to vector<2x64xbf16>
    %cst_30 = arith.constant dense<0.000000e+00> : vector<2x192xf32>
    %233 = tpu.matmul %232, %3, %cst_30 {dimension_numbers = #tpu.dot_dimension_numbers<[1], [0], [0], [1], [0, 0, 1, 1], [], []>} : vector<2x64xbf16>, vector<64x192xbf16>, vector<2x192xf32> -> vector<2x192xf32>
    %234 = vector.broadcast %4 : vector<1x192xf32> to vector<2x192xf32>
    %235 = arith.addf %233, %234 : vector<2x192xf32>
    %236 = vector.extract_strided_slice %62 {offsets = [0, 0], sizes = [2, 64], strides = [1, 1]} : vector<2x192xf32> to vector<2x64xf32>
    %237 = vector.extract_strided_slice %235 {offsets = [0, 0], sizes = [2, 64], strides = [1, 1]} : vector<2x192xf32> to vector<2x64xf32>
    %238 = arith.addf %236, %237 : vector<2x64xf32>
    %239 = arith.negf %238 : vector<2x64xf32>
    %240 = math.exp %239 : vector<2x64xf32>
    %cst_31 = arith.constant 1.000000e+00 : f32
    %241 = vector.broadcast %cst_31 : f32 to vector<2x64xf32>
    %242 = arith.addf %241, %240 : vector<2x64xf32>
    %243 = arith.divf %241, %242 : vector<2x64xf32>
    %244 = vector.extract_strided_slice %62 {offsets = [0, 64], sizes = [2, 64], strides = [1, 1]} : vector<2x192xf32> to vector<2x64xf32>
    %245 = vector.extract_strided_slice %235 {offsets = [0, 64], sizes = [2, 64], strides = [1, 1]} : vector<2x192xf32> to vector<2x64xf32>
    %246 = arith.addf %244, %245 : vector<2x64xf32>
    %247 = arith.negf %246 : vector<2x64xf32>
    %248 = math.exp %247 : vector<2x64xf32>
    %cst_32 = arith.constant 1.000000e+00 : f32
    %249 = vector.broadcast %cst_32 : f32 to vector<2x64xf32>
    %250 = arith.addf %249, %248 : vector<2x64xf32>
    %251 = arith.divf %249, %250 : vector<2x64xf32>
    %252 = vector.extract_strided_slice %62 {offsets = [0, 128], sizes = [2, 64], strides = [1, 1]} : vector<2x192xf32> to vector<2x64xf32>
    %253 = vector.extract_strided_slice %235 {offsets = [0, 128], sizes = [2, 64], strides = [1, 1]} : vector<2x192xf32> to vector<2x64xf32>
    %254 = arith.mulf %243, %253 : vector<2x64xf32>
    %255 = arith.addf %252, %254 : vector<2x64xf32>
    %256 = math.tanh %255 : vector<2x64xf32>
    %cst_33 = arith.constant 1.000000e+00 : f32
    %257 = vector.broadcast %cst_33 : f32 to vector<2x64xf32>
    %258 = arith.subf %257, %251 : vector<2x64xf32>
    %259 = arith.mulf %258, %256 : vector<2x64xf32>
    %260 = arith.mulf %251, %231 : vector<2x64xf32>
    %261 = arith.addf %259, %260 : vector<2x64xf32>
    %262 = arith.truncf %261 : vector<2x64xf32> to vector<2x64xbf16>
    %cst_34 = arith.constant dense<0.000000e+00> : vector<2x192xf32>
    %263 = tpu.matmul %262, %3, %cst_34 {dimension_numbers = #tpu.dot_dimension_numbers<[1], [0], [0], [1], [0, 0, 1, 1], [], []>} : vector<2x64xbf16>, vector<64x192xbf16>, vector<2x192xf32> -> vector<2x192xf32>
    %264 = vector.broadcast %4 : vector<1x192xf32> to vector<2x192xf32>
    %265 = arith.addf %263, %264 : vector<2x192xf32>
    %266 = vector.extract_strided_slice %71 {offsets = [0, 0], sizes = [2, 64], strides = [1, 1]} : vector<2x192xf32> to vector<2x64xf32>
    %267 = vector.extract_strided_slice %265 {offsets = [0, 0], sizes = [2, 64], strides = [1, 1]} : vector<2x192xf32> to vector<2x64xf32>
    %268 = arith.addf %266, %267 : vector<2x64xf32>
    %269 = arith.negf %268 : vector<2x64xf32>
    %270 = math.exp %269 : vector<2x64xf32>
    %cst_35 = arith.constant 1.000000e+00 : f32
    %271 = vector.broadcast %cst_35 : f32 to vector<2x64xf32>
    %272 = arith.addf %271, %270 : vector<2x64xf32>
    %273 = arith.divf %271, %272 : vector<2x64xf32>
    %274 = vector.extract_strided_slice %71 {offsets = [0, 64], sizes = [2, 64], strides = [1, 1]} : vector<2x192xf32> to vector<2x64xf32>
    %275 = vector.extract_strided_slice %265 {offsets = [0, 64], sizes = [2, 64], strides = [1, 1]} : vector<2x192xf32> to vector<2x64xf32>
    %276 = arith.addf %274, %275 : vector<2x64xf32>
    %277 = arith.negf %276 : vector<2x64xf32>
    %278 = math.exp %277 : vector<2x64xf32>
    %cst_36 = arith.constant 1.000000e+00 : f32
    %279 = vector.broadcast %cst_36 : f32 to vector<2x64xf32>
    %280 = arith.addf %279, %278 : vector<2x64xf32>
    %281 = arith.divf %279, %280 : vector<2x64xf32>
    %282 = vector.extract_strided_slice %71 {offsets = [0, 128], sizes = [2, 64], strides = [1, 1]} : vector<2x192xf32> to vector<2x64xf32>
    %283 = vector.extract_strided_slice %265 {offsets = [0, 128], sizes = [2, 64], strides = [1, 1]} : vector<2x192xf32> to vector<2x64xf32>
    %284 = arith.mulf %273, %283 : vector<2x64xf32>
    %285 = arith.addf %282, %284 : vector<2x64xf32>
    %286 = math.tanh %285 : vector<2x64xf32>
    %cst_37 = arith.constant 1.000000e+00 : f32
    %287 = vector.broadcast %cst_37 : f32 to vector<2x64xf32>
    %288 = arith.subf %287, %281 : vector<2x64xf32>
    %289 = arith.mulf %288, %286 : vector<2x64xf32>
    %290 = arith.mulf %281, %261 : vector<2x64xf32>
    %291 = arith.addf %289, %290 : vector<2x64xf32>
    %292 = arith.truncf %291 : vector<2x64xf32> to vector<2x64xbf16>
    %cst_38 = arith.constant dense<0.000000e+00> : vector<2x192xf32>
    %293 = tpu.matmul %292, %3, %cst_38 {dimension_numbers = #tpu.dot_dimension_numbers<[1], [0], [0], [1], [0, 0, 1, 1], [], []>} : vector<2x64xbf16>, vector<64x192xbf16>, vector<2x192xf32> -> vector<2x192xf32>
    %294 = vector.broadcast %4 : vector<1x192xf32> to vector<2x192xf32>
    %295 = arith.addf %293, %294 : vector<2x192xf32>
    %296 = vector.extract_strided_slice %80 {offsets = [0, 0], sizes = [2, 64], strides = [1, 1]} : vector<2x192xf32> to vector<2x64xf32>
    %297 = vector.extract_strided_slice %295 {offsets = [0, 0], sizes = [2, 64], strides = [1, 1]} : vector<2x192xf32> to vector<2x64xf32>
    %298 = arith.addf %296, %297 : vector<2x64xf32>
    %299 = arith.negf %298 : vector<2x64xf32>
    %300 = math.exp %299 : vector<2x64xf32>
    %cst_39 = arith.constant 1.000000e+00 : f32
    %301 = vector.broadcast %cst_39 : f32 to vector<2x64xf32>
    %302 = arith.addf %301, %300 : vector<2x64xf32>
    %303 = arith.divf %301, %302 : vector<2x64xf32>
    %304 = vector.extract_strided_slice %80 {offsets = [0, 64], sizes = [2, 64], strides = [1, 1]} : vector<2x192xf32> to vector<2x64xf32>
    %305 = vector.extract_strided_slice %295 {offsets = [0, 64], sizes = [2, 64], strides = [1, 1]} : vector<2x192xf32> to vector<2x64xf32>
    %306 = arith.addf %304, %305 : vector<2x64xf32>
    %307 = arith.negf %306 : vector<2x64xf32>
    %308 = math.exp %307 : vector<2x64xf32>
    %cst_40 = arith.constant 1.000000e+00 : f32
    %309 = vector.broadcast %cst_40 : f32 to vector<2x64xf32>
    %310 = arith.addf %309, %308 : vector<2x64xf32>
    %311 = arith.divf %309, %310 : vector<2x64xf32>
    %312 = vector.extract_strided_slice %80 {offsets = [0, 128], sizes = [2, 64], strides = [1, 1]} : vector<2x192xf32> to vector<2x64xf32>
    %313 = vector.extract_strided_slice %295 {offsets = [0, 128], sizes = [2, 64], strides = [1, 1]} : vector<2x192xf32> to vector<2x64xf32>
    %314 = arith.mulf %303, %313 : vector<2x64xf32>
    %315 = arith.addf %312, %314 : vector<2x64xf32>
    %316 = math.tanh %315 : vector<2x64xf32>
    %cst_41 = arith.constant 1.000000e+00 : f32
    %317 = vector.broadcast %cst_41 : f32 to vector<2x64xf32>
    %318 = arith.subf %317, %311 : vector<2x64xf32>
    %319 = arith.mulf %318, %316 : vector<2x64xf32>
    %320 = arith.mulf %311, %291 : vector<2x64xf32>
    %321 = arith.addf %319, %320 : vector<2x64xf32>
    %322 = vector.extract_strided_slice %111 {offsets = [0, 0], sizes = [2, 32], strides = [1, 1]} : vector<2x64xf32> to vector<2x32xf32>
    %323 = vector.extract_strided_slice %321 {offsets = [0, 32], sizes = [2, 32], strides = [1, 1]} : vector<2x64xf32> to vector<2x32xf32>
    %324 = tpu.concatenate %322, %323 in 1 : vector<2x32xf32>, vector<2x32xf32> -> vector<2x64xf32>
    %325 = vector.extract_strided_slice %141 {offsets = [0, 0], sizes = [2, 32], strides = [1, 1]} : vector<2x64xf32> to vector<2x32xf32>
    %326 = vector.extract_strided_slice %291 {offsets = [0, 32], sizes = [2, 32], strides = [1, 1]} : vector<2x64xf32> to vector<2x32xf32>
    %327 = tpu.concatenate %325, %326 in 1 : vector<2x32xf32>, vector<2x32xf32> -> vector<2x64xf32>
    %328 = vector.extract_strided_slice %171 {offsets = [0, 0], sizes = [2, 32], strides = [1, 1]} : vector<2x64xf32> to vector<2x32xf32>
    %329 = vector.extract_strided_slice %261 {offsets = [0, 32], sizes = [2, 32], strides = [1, 1]} : vector<2x64xf32> to vector<2x32xf32>
    %330 = tpu.concatenate %328, %329 in 1 : vector<2x32xf32>, vector<2x32xf32> -> vector<2x64xf32>
    %331 = vector.extract_strided_slice %201 {offsets = [0, 0], sizes = [2, 32], strides = [1, 1]} : vector<2x64xf32> to vector<2x32xf32>
    %332 = vector.extract_strided_slice %231 {offsets = [0, 32], sizes = [2, 32], strides = [1, 1]} : vector<2x64xf32> to vector<2x32xf32>
    %333 = tpu.concatenate %331, %332 in 1 : vector<2x32xf32>, vector<2x32xf32> -> vector<2x64xf32>
    %334 = vector.extract_strided_slice %231 {offsets = [0, 0], sizes = [2, 32], strides = [1, 1]} : vector<2x64xf32> to vector<2x32xf32>
    %335 = vector.extract_strided_slice %201 {offsets = [0, 32], sizes = [2, 32], strides = [1, 1]} : vector<2x64xf32> to vector<2x32xf32>
    %336 = tpu.concatenate %334, %335 in 1 : vector<2x32xf32>, vector<2x32xf32> -> vector<2x64xf32>
    %337 = vector.extract_strided_slice %261 {offsets = [0, 0], sizes = [2, 32], strides = [1, 1]} : vector<2x64xf32> to vector<2x32xf32>
    %338 = vector.extract_strided_slice %171 {offsets = [0, 32], sizes = [2, 32], strides = [1, 1]} : vector<2x64xf32> to vector<2x32xf32>
    %339 = tpu.concatenate %337, %338 in 1 : vector<2x32xf32>, vector<2x32xf32> -> vector<2x64xf32>
    %340 = vector.extract_strided_slice %291 {offsets = [0, 0], sizes = [2, 32], strides = [1, 1]} : vector<2x64xf32> to vector<2x32xf32>
    %341 = vector.extract_strided_slice %141 {offsets = [0, 32], sizes = [2, 32], strides = [1, 1]} : vector<2x64xf32> to vector<2x32xf32>
    %342 = tpu.concatenate %340, %341 in 1 : vector<2x32xf32>, vector<2x32xf32> -> vector<2x64xf32>
    %343 = vector.extract_strided_slice %321 {offsets = [0, 0], sizes = [2, 32], strides = [1, 1]} : vector<2x64xf32> to vector<2x32xf32>
    %344 = vector.extract_strided_slice %111 {offsets = [0, 32], sizes = [2, 32], strides = [1, 1]} : vector<2x64xf32> to vector<2x32xf32>
    %345 = tpu.concatenate %343, %344 in 1 : vector<2x32xf32>, vector<2x32xf32> -> vector<2x64xf32>
    %346 = tpu.concatenate %324, %327, %330, %333, %336, %339, %342, %345 in 0 : vector<2x64xf32>, vector<2x64xf32>, vector<2x64xf32>, vector<2x64xf32>, vector<2x64xf32>, vector<2x64xf32>, vector<2x64xf32>, vector<2x64xf32> -> vector<16x64xf32>
    %c0_42 = arith.constant 0 : index
    %c0_43 = arith.constant 0 : index
    %347 = vector.load %arg5[%c0_42, %c0_43] : memref<64x192xbf16, #tpu.memory_space<vmem>>, vector<64x192xbf16>
    %c0_44 = arith.constant 0 : index
    %c0_45 = arith.constant 0 : index
    %348 = vector.load %arg6[%c0_44, %c0_45] : memref<1x192xf32, #tpu.memory_space<vmem>>, vector<1x192xf32>
    %c0_46 = arith.constant 0 : index
    %c0_47 = arith.constant 0 : index
    %349 = vector.load %arg7[%c0_46, %c0_47] : memref<64x192xbf16, #tpu.memory_space<vmem>>, vector<64x192xbf16>
    %c0_48 = arith.constant 0 : index
    %c0_49 = arith.constant 0 : index
    %350 = vector.load %arg8[%c0_48, %c0_49] : memref<1x192xf32, #tpu.memory_space<vmem>>, vector<1x192xf32>
    %351 = arith.truncf %346 : vector<16x64xf32> to vector<16x64xbf16>
    %cst_50 = arith.constant dense<0.000000e+00> : vector<16x192xf32>
    %352 = tpu.matmul %351, %347, %cst_50 {dimension_numbers = #tpu.dot_dimension_numbers<[1], [0], [0], [1], [0, 0, 1, 1], [], []>} : vector<16x64xbf16>, vector<64x192xbf16>, vector<16x192xf32> -> vector<16x192xf32>
    %353 = vector.broadcast %348 : vector<1x192xf32> to vector<16x192xf32>
    %354 = arith.addf %352, %353 : vector<16x192xf32>
    %355 = vector.extract_strided_slice %354 {offsets = [0, 0], sizes = [2, 192], strides = [1, 1]} : vector<16x192xf32> to vector<2x192xf32>
    %356 = vector.extract_strided_slice %354 {offsets = [14, 0], sizes = [2, 192], strides = [1, 1]} : vector<16x192xf32> to vector<2x192xf32>
    %357 = vector.extract_strided_slice %355 {offsets = [0, 0], sizes = [2, 32], strides = [1, 1]} : vector<2x192xf32> to vector<2x32xf32>
    %358 = vector.extract_strided_slice %356 {offsets = [0, 96], sizes = [2, 32], strides = [1, 1]} : vector<2x192xf32> to vector<2x32xf32>
    %359 = vector.extract_strided_slice %355 {offsets = [0, 32], sizes = [2, 32], strides = [1, 1]} : vector<2x192xf32> to vector<2x32xf32>
    %360 = vector.extract_strided_slice %356 {offsets = [0, 128], sizes = [2, 32], strides = [1, 1]} : vector<2x192xf32> to vector<2x32xf32>
    %361 = vector.extract_strided_slice %355 {offsets = [0, 64], sizes = [2, 32], strides = [1, 1]} : vector<2x192xf32> to vector<2x32xf32>
    %362 = vector.extract_strided_slice %356 {offsets = [0, 160], sizes = [2, 32], strides = [1, 1]} : vector<2x192xf32> to vector<2x32xf32>
    %363 = tpu.concatenate %357, %358, %359, %360, %361, %362 in 1 : vector<2x32xf32>, vector<2x32xf32>, vector<2x32xf32>, vector<2x32xf32>, vector<2x32xf32>, vector<2x32xf32> -> vector<2x192xf32>
    %364 = vector.extract_strided_slice %354 {offsets = [2, 0], sizes = [2, 192], strides = [1, 1]} : vector<16x192xf32> to vector<2x192xf32>
    %365 = vector.extract_strided_slice %354 {offsets = [12, 0], sizes = [2, 192], strides = [1, 1]} : vector<16x192xf32> to vector<2x192xf32>
    %366 = vector.extract_strided_slice %364 {offsets = [0, 0], sizes = [2, 32], strides = [1, 1]} : vector<2x192xf32> to vector<2x32xf32>
    %367 = vector.extract_strided_slice %365 {offsets = [0, 96], sizes = [2, 32], strides = [1, 1]} : vector<2x192xf32> to vector<2x32xf32>
    %368 = vector.extract_strided_slice %364 {offsets = [0, 32], sizes = [2, 32], strides = [1, 1]} : vector<2x192xf32> to vector<2x32xf32>
    %369 = vector.extract_strided_slice %365 {offsets = [0, 128], sizes = [2, 32], strides = [1, 1]} : vector<2x192xf32> to vector<2x32xf32>
    %370 = vector.extract_strided_slice %364 {offsets = [0, 64], sizes = [2, 32], strides = [1, 1]} : vector<2x192xf32> to vector<2x32xf32>
    %371 = vector.extract_strided_slice %365 {offsets = [0, 160], sizes = [2, 32], strides = [1, 1]} : vector<2x192xf32> to vector<2x32xf32>
    %372 = tpu.concatenate %366, %367, %368, %369, %370, %371 in 1 : vector<2x32xf32>, vector<2x32xf32>, vector<2x32xf32>, vector<2x32xf32>, vector<2x32xf32>, vector<2x32xf32> -> vector<2x192xf32>
    %373 = vector.extract_strided_slice %354 {offsets = [4, 0], sizes = [2, 192], strides = [1, 1]} : vector<16x192xf32> to vector<2x192xf32>
    %374 = vector.extract_strided_slice %354 {offsets = [10, 0], sizes = [2, 192], strides = [1, 1]} : vector<16x192xf32> to vector<2x192xf32>
    %375 = vector.extract_strided_slice %373 {offsets = [0, 0], sizes = [2, 32], strides = [1, 1]} : vector<2x192xf32> to vector<2x32xf32>
    %376 = vector.extract_strided_slice %374 {offsets = [0, 96], sizes = [2, 32], strides = [1, 1]} : vector<2x192xf32> to vector<2x32xf32>
    %377 = vector.extract_strided_slice %373 {offsets = [0, 32], sizes = [2, 32], strides = [1, 1]} : vector<2x192xf32> to vector<2x32xf32>
    %378 = vector.extract_strided_slice %374 {offsets = [0, 128], sizes = [2, 32], strides = [1, 1]} : vector<2x192xf32> to vector<2x32xf32>
    %379 = vector.extract_strided_slice %373 {offsets = [0, 64], sizes = [2, 32], strides = [1, 1]} : vector<2x192xf32> to vector<2x32xf32>
    %380 = vector.extract_strided_slice %374 {offsets = [0, 160], sizes = [2, 32], strides = [1, 1]} : vector<2x192xf32> to vector<2x32xf32>
    %381 = tpu.concatenate %375, %376, %377, %378, %379, %380 in 1 : vector<2x32xf32>, vector<2x32xf32>, vector<2x32xf32>, vector<2x32xf32>, vector<2x32xf32>, vector<2x32xf32> -> vector<2x192xf32>
    %382 = vector.extract_strided_slice %354 {offsets = [6, 0], sizes = [2, 192], strides = [1, 1]} : vector<16x192xf32> to vector<2x192xf32>
    %383 = vector.extract_strided_slice %354 {offsets = [8, 0], sizes = [2, 192], strides = [1, 1]} : vector<16x192xf32> to vector<2x192xf32>
    %384 = vector.extract_strided_slice %382 {offsets = [0, 0], sizes = [2, 32], strides = [1, 1]} : vector<2x192xf32> to vector<2x32xf32>
    %385 = vector.extract_strided_slice %383 {offsets = [0, 96], sizes = [2, 32], strides = [1, 1]} : vector<2x192xf32> to vector<2x32xf32>
    %386 = vector.extract_strided_slice %382 {offsets = [0, 32], sizes = [2, 32], strides = [1, 1]} : vector<2x192xf32> to vector<2x32xf32>
    %387 = vector.extract_strided_slice %383 {offsets = [0, 128], sizes = [2, 32], strides = [1, 1]} : vector<2x192xf32> to vector<2x32xf32>
    %388 = vector.extract_strided_slice %382 {offsets = [0, 64], sizes = [2, 32], strides = [1, 1]} : vector<2x192xf32> to vector<2x32xf32>
    %389 = vector.extract_strided_slice %383 {offsets = [0, 160], sizes = [2, 32], strides = [1, 1]} : vector<2x192xf32> to vector<2x32xf32>
    %390 = tpu.concatenate %384, %385, %386, %387, %388, %389 in 1 : vector<2x32xf32>, vector<2x32xf32>, vector<2x32xf32>, vector<2x32xf32>, vector<2x32xf32>, vector<2x32xf32> -> vector<2x192xf32>
    %391 = vector.extract_strided_slice %354 {offsets = [8, 0], sizes = [2, 192], strides = [1, 1]} : vector<16x192xf32> to vector<2x192xf32>
    %392 = vector.extract_strided_slice %354 {offsets = [6, 0], sizes = [2, 192], strides = [1, 1]} : vector<16x192xf32> to vector<2x192xf32>
    %393 = vector.extract_strided_slice %391 {offsets = [0, 0], sizes = [2, 32], strides = [1, 1]} : vector<2x192xf32> to vector<2x32xf32>
    %394 = vector.extract_strided_slice %392 {offsets = [0, 96], sizes = [2, 32], strides = [1, 1]} : vector<2x192xf32> to vector<2x32xf32>
    %395 = vector.extract_strided_slice %391 {offsets = [0, 32], sizes = [2, 32], strides = [1, 1]} : vector<2x192xf32> to vector<2x32xf32>
    %396 = vector.extract_strided_slice %392 {offsets = [0, 128], sizes = [2, 32], strides = [1, 1]} : vector<2x192xf32> to vector<2x32xf32>
    %397 = vector.extract_strided_slice %391 {offsets = [0, 64], sizes = [2, 32], strides = [1, 1]} : vector<2x192xf32> to vector<2x32xf32>
    %398 = vector.extract_strided_slice %392 {offsets = [0, 160], sizes = [2, 32], strides = [1, 1]} : vector<2x192xf32> to vector<2x32xf32>
    %399 = tpu.concatenate %393, %394, %395, %396, %397, %398 in 1 : vector<2x32xf32>, vector<2x32xf32>, vector<2x32xf32>, vector<2x32xf32>, vector<2x32xf32>, vector<2x32xf32> -> vector<2x192xf32>
    %400 = vector.extract_strided_slice %354 {offsets = [10, 0], sizes = [2, 192], strides = [1, 1]} : vector<16x192xf32> to vector<2x192xf32>
    %401 = vector.extract_strided_slice %354 {offsets = [4, 0], sizes = [2, 192], strides = [1, 1]} : vector<16x192xf32> to vector<2x192xf32>
    %402 = vector.extract_strided_slice %400 {offsets = [0, 0], sizes = [2, 32], strides = [1, 1]} : vector<2x192xf32> to vector<2x32xf32>
    %403 = vector.extract_strided_slice %401 {offsets = [0, 96], sizes = [2, 32], strides = [1, 1]} : vector<2x192xf32> to vector<2x32xf32>
    %404 = vector.extract_strided_slice %400 {offsets = [0, 32], sizes = [2, 32], strides = [1, 1]} : vector<2x192xf32> to vector<2x32xf32>
    %405 = vector.extract_strided_slice %401 {offsets = [0, 128], sizes = [2, 32], strides = [1, 1]} : vector<2x192xf32> to vector<2x32xf32>
    %406 = vector.extract_strided_slice %400 {offsets = [0, 64], sizes = [2, 32], strides = [1, 1]} : vector<2x192xf32> to vector<2x32xf32>
    %407 = vector.extract_strided_slice %401 {offsets = [0, 160], sizes = [2, 32], strides = [1, 1]} : vector<2x192xf32> to vector<2x32xf32>
    %408 = tpu.concatenate %402, %403, %404, %405, %406, %407 in 1 : vector<2x32xf32>, vector<2x32xf32>, vector<2x32xf32>, vector<2x32xf32>, vector<2x32xf32>, vector<2x32xf32> -> vector<2x192xf32>
    %409 = vector.extract_strided_slice %354 {offsets = [12, 0], sizes = [2, 192], strides = [1, 1]} : vector<16x192xf32> to vector<2x192xf32>
    %410 = vector.extract_strided_slice %354 {offsets = [2, 0], sizes = [2, 192], strides = [1, 1]} : vector<16x192xf32> to vector<2x192xf32>
    %411 = vector.extract_strided_slice %409 {offsets = [0, 0], sizes = [2, 32], strides = [1, 1]} : vector<2x192xf32> to vector<2x32xf32>
    %412 = vector.extract_strided_slice %410 {offsets = [0, 96], sizes = [2, 32], strides = [1, 1]} : vector<2x192xf32> to vector<2x32xf32>
    %413 = vector.extract_strided_slice %409 {offsets = [0, 32], sizes = [2, 32], strides = [1, 1]} : vector<2x192xf32> to vector<2x32xf32>
    %414 = vector.extract_strided_slice %410 {offsets = [0, 128], sizes = [2, 32], strides = [1, 1]} : vector<2x192xf32> to vector<2x32xf32>
    %415 = vector.extract_strided_slice %409 {offsets = [0, 64], sizes = [2, 32], strides = [1, 1]} : vector<2x192xf32> to vector<2x32xf32>
    %416 = vector.extract_strided_slice %410 {offsets = [0, 160], sizes = [2, 32], strides = [1, 1]} : vector<2x192xf32> to vector<2x32xf32>
    %417 = tpu.concatenate %411, %412, %413, %414, %415, %416 in 1 : vector<2x32xf32>, vector<2x32xf32>, vector<2x32xf32>, vector<2x32xf32>, vector<2x32xf32>, vector<2x32xf32> -> vector<2x192xf32>
    %418 = vector.extract_strided_slice %354 {offsets = [14, 0], sizes = [2, 192], strides = [1, 1]} : vector<16x192xf32> to vector<2x192xf32>
    %419 = vector.extract_strided_slice %354 {offsets = [0, 0], sizes = [2, 192], strides = [1, 1]} : vector<16x192xf32> to vector<2x192xf32>
    %420 = vector.extract_strided_slice %418 {offsets = [0, 0], sizes = [2, 32], strides = [1, 1]} : vector<2x192xf32> to vector<2x32xf32>
    %421 = vector.extract_strided_slice %419 {offsets = [0, 96], sizes = [2, 32], strides = [1, 1]} : vector<2x192xf32> to vector<2x32xf32>
    %422 = vector.extract_strided_slice %418 {offsets = [0, 32], sizes = [2, 32], strides = [1, 1]} : vector<2x192xf32> to vector<2x32xf32>
    %423 = vector.extract_strided_slice %419 {offsets = [0, 128], sizes = [2, 32], strides = [1, 1]} : vector<2x192xf32> to vector<2x32xf32>
    %424 = vector.extract_strided_slice %418 {offsets = [0, 64], sizes = [2, 32], strides = [1, 1]} : vector<2x192xf32> to vector<2x32xf32>
    %425 = vector.extract_strided_slice %419 {offsets = [0, 160], sizes = [2, 32], strides = [1, 1]} : vector<2x192xf32> to vector<2x32xf32>
    %426 = tpu.concatenate %420, %421, %422, %423, %424, %425 in 1 : vector<2x32xf32>, vector<2x32xf32>, vector<2x32xf32>, vector<2x32xf32>, vector<2x32xf32>, vector<2x32xf32> -> vector<2x192xf32>
    %cst_51 = arith.constant 0.000000e+00 : f32
    %427 = vector.broadcast %cst_51 : f32 to vector<2x64xf32>
    %428 = arith.truncf %427 : vector<2x64xf32> to vector<2x64xbf16>
    %cst_52 = arith.constant dense<0.000000e+00> : vector<2x192xf32>
    %429 = tpu.matmul %428, %349, %cst_52 {dimension_numbers = #tpu.dot_dimension_numbers<[1], [0], [0], [1], [0, 0, 1, 1], [], []>} : vector<2x64xbf16>, vector<64x192xbf16>, vector<2x192xf32> -> vector<2x192xf32>
    %430 = vector.broadcast %350 : vector<1x192xf32> to vector<2x192xf32>
    %431 = arith.addf %429, %430 : vector<2x192xf32>
    %432 = vector.extract_strided_slice %363 {offsets = [0, 0], sizes = [2, 64], strides = [1, 1]} : vector<2x192xf32> to vector<2x64xf32>
    %433 = vector.extract_strided_slice %431 {offsets = [0, 0], sizes = [2, 64], strides = [1, 1]} : vector<2x192xf32> to vector<2x64xf32>
    %434 = arith.addf %432, %433 : vector<2x64xf32>
    %435 = arith.negf %434 : vector<2x64xf32>
    %436 = math.exp %435 : vector<2x64xf32>
    %cst_53 = arith.constant 1.000000e+00 : f32
    %437 = vector.broadcast %cst_53 : f32 to vector<2x64xf32>
    %438 = arith.addf %437, %436 : vector<2x64xf32>
    %439 = arith.divf %437, %438 : vector<2x64xf32>
    %440 = vector.extract_strided_slice %363 {offsets = [0, 64], sizes = [2, 64], strides = [1, 1]} : vector<2x192xf32> to vector<2x64xf32>
    %441 = vector.extract_strided_slice %431 {offsets = [0, 64], sizes = [2, 64], strides = [1, 1]} : vector<2x192xf32> to vector<2x64xf32>
    %442 = arith.addf %440, %441 : vector<2x64xf32>
    %443 = arith.negf %442 : vector<2x64xf32>
    %444 = math.exp %443 : vector<2x64xf32>
    %cst_54 = arith.constant 1.000000e+00 : f32
    %445 = vector.broadcast %cst_54 : f32 to vector<2x64xf32>
    %446 = arith.addf %445, %444 : vector<2x64xf32>
    %447 = arith.divf %445, %446 : vector<2x64xf32>
    %448 = vector.extract_strided_slice %363 {offsets = [0, 128], sizes = [2, 64], strides = [1, 1]} : vector<2x192xf32> to vector<2x64xf32>
    %449 = vector.extract_strided_slice %431 {offsets = [0, 128], sizes = [2, 64], strides = [1, 1]} : vector<2x192xf32> to vector<2x64xf32>
    %450 = arith.mulf %439, %449 : vector<2x64xf32>
    %451 = arith.addf %448, %450 : vector<2x64xf32>
    %452 = math.tanh %451 : vector<2x64xf32>
    %cst_55 = arith.constant 1.000000e+00 : f32
    %453 = vector.broadcast %cst_55 : f32 to vector<2x64xf32>
    %454 = arith.subf %453, %447 : vector<2x64xf32>
    %455 = arith.mulf %454, %452 : vector<2x64xf32>
    %456 = arith.mulf %447, %427 : vector<2x64xf32>
    %457 = arith.addf %455, %456 : vector<2x64xf32>
    %458 = arith.truncf %457 : vector<2x64xf32> to vector<2x64xbf16>
    %cst_56 = arith.constant dense<0.000000e+00> : vector<2x192xf32>
    %459 = tpu.matmul %458, %349, %cst_56 {dimension_numbers = #tpu.dot_dimension_numbers<[1], [0], [0], [1], [0, 0, 1, 1], [], []>} : vector<2x64xbf16>, vector<64x192xbf16>, vector<2x192xf32> -> vector<2x192xf32>
    %460 = vector.broadcast %350 : vector<1x192xf32> to vector<2x192xf32>
    %461 = arith.addf %459, %460 : vector<2x192xf32>
    %462 = vector.extract_strided_slice %372 {offsets = [0, 0], sizes = [2, 64], strides = [1, 1]} : vector<2x192xf32> to vector<2x64xf32>
    %463 = vector.extract_strided_slice %461 {offsets = [0, 0], sizes = [2, 64], strides = [1, 1]} : vector<2x192xf32> to vector<2x64xf32>
    %464 = arith.addf %462, %463 : vector<2x64xf32>
    %465 = arith.negf %464 : vector<2x64xf32>
    %466 = math.exp %465 : vector<2x64xf32>
    %cst_57 = arith.constant 1.000000e+00 : f32
    %467 = vector.broadcast %cst_57 : f32 to vector<2x64xf32>
    %468 = arith.addf %467, %466 : vector<2x64xf32>
    %469 = arith.divf %467, %468 : vector<2x64xf32>
    %470 = vector.extract_strided_slice %372 {offsets = [0, 64], sizes = [2, 64], strides = [1, 1]} : vector<2x192xf32> to vector<2x64xf32>
    %471 = vector.extract_strided_slice %461 {offsets = [0, 64], sizes = [2, 64], strides = [1, 1]} : vector<2x192xf32> to vector<2x64xf32>
    %472 = arith.addf %470, %471 : vector<2x64xf32>
    %473 = arith.negf %472 : vector<2x64xf32>
    %474 = math.exp %473 : vector<2x64xf32>
    %cst_58 = arith.constant 1.000000e+00 : f32
    %475 = vector.broadcast %cst_58 : f32 to vector<2x64xf32>
    %476 = arith.addf %475, %474 : vector<2x64xf32>
    %477 = arith.divf %475, %476 : vector<2x64xf32>
    %478 = vector.extract_strided_slice %372 {offsets = [0, 128], sizes = [2, 64], strides = [1, 1]} : vector<2x192xf32> to vector<2x64xf32>
    %479 = vector.extract_strided_slice %461 {offsets = [0, 128], sizes = [2, 64], strides = [1, 1]} : vector<2x192xf32> to vector<2x64xf32>
    %480 = arith.mulf %469, %479 : vector<2x64xf32>
    %481 = arith.addf %478, %480 : vector<2x64xf32>
    %482 = math.tanh %481 : vector<2x64xf32>
    %cst_59 = arith.constant 1.000000e+00 : f32
    %483 = vector.broadcast %cst_59 : f32 to vector<2x64xf32>
    %484 = arith.subf %483, %477 : vector<2x64xf32>
    %485 = arith.mulf %484, %482 : vector<2x64xf32>
    %486 = arith.mulf %477, %457 : vector<2x64xf32>
    %487 = arith.addf %485, %486 : vector<2x64xf32>
    %488 = arith.truncf %487 : vector<2x64xf32> to vector<2x64xbf16>
    %cst_60 = arith.constant dense<0.000000e+00> : vector<2x192xf32>
    %489 = tpu.matmul %488, %349, %cst_60 {dimension_numbers = #tpu.dot_dimension_numbers<[1], [0], [0], [1], [0, 0, 1, 1], [], []>} : vector<2x64xbf16>, vector<64x192xbf16>, vector<2x192xf32> -> vector<2x192xf32>
    %490 = vector.broadcast %350 : vector<1x192xf32> to vector<2x192xf32>
    %491 = arith.addf %489, %490 : vector<2x192xf32>
    %492 = vector.extract_strided_slice %381 {offsets = [0, 0], sizes = [2, 64], strides = [1, 1]} : vector<2x192xf32> to vector<2x64xf32>
    %493 = vector.extract_strided_slice %491 {offsets = [0, 0], sizes = [2, 64], strides = [1, 1]} : vector<2x192xf32> to vector<2x64xf32>
    %494 = arith.addf %492, %493 : vector<2x64xf32>
    %495 = arith.negf %494 : vector<2x64xf32>
    %496 = math.exp %495 : vector<2x64xf32>
    %cst_61 = arith.constant 1.000000e+00 : f32
    %497 = vector.broadcast %cst_61 : f32 to vector<2x64xf32>
    %498 = arith.addf %497, %496 : vector<2x64xf32>
    %499 = arith.divf %497, %498 : vector<2x64xf32>
    %500 = vector.extract_strided_slice %381 {offsets = [0, 64], sizes = [2, 64], strides = [1, 1]} : vector<2x192xf32> to vector<2x64xf32>
    %501 = vector.extract_strided_slice %491 {offsets = [0, 64], sizes = [2, 64], strides = [1, 1]} : vector<2x192xf32> to vector<2x64xf32>
    %502 = arith.addf %500, %501 : vector<2x64xf32>
    %503 = arith.negf %502 : vector<2x64xf32>
    %504 = math.exp %503 : vector<2x64xf32>
    %cst_62 = arith.constant 1.000000e+00 : f32
    %505 = vector.broadcast %cst_62 : f32 to vector<2x64xf32>
    %506 = arith.addf %505, %504 : vector<2x64xf32>
    %507 = arith.divf %505, %506 : vector<2x64xf32>
    %508 = vector.extract_strided_slice %381 {offsets = [0, 128], sizes = [2, 64], strides = [1, 1]} : vector<2x192xf32> to vector<2x64xf32>
    %509 = vector.extract_strided_slice %491 {offsets = [0, 128], sizes = [2, 64], strides = [1, 1]} : vector<2x192xf32> to vector<2x64xf32>
    %510 = arith.mulf %499, %509 : vector<2x64xf32>
    %511 = arith.addf %508, %510 : vector<2x64xf32>
    %512 = math.tanh %511 : vector<2x64xf32>
    %cst_63 = arith.constant 1.000000e+00 : f32
    %513 = vector.broadcast %cst_63 : f32 to vector<2x64xf32>
    %514 = arith.subf %513, %507 : vector<2x64xf32>
    %515 = arith.mulf %514, %512 : vector<2x64xf32>
    %516 = arith.mulf %507, %487 : vector<2x64xf32>
    %517 = arith.addf %515, %516 : vector<2x64xf32>
    %518 = arith.truncf %517 : vector<2x64xf32> to vector<2x64xbf16>
    %cst_64 = arith.constant dense<0.000000e+00> : vector<2x192xf32>
    %519 = tpu.matmul %518, %349, %cst_64 {dimension_numbers = #tpu.dot_dimension_numbers<[1], [0], [0], [1], [0, 0, 1, 1], [], []>} : vector<2x64xbf16>, vector<64x192xbf16>, vector<2x192xf32> -> vector<2x192xf32>
    %520 = vector.broadcast %350 : vector<1x192xf32> to vector<2x192xf32>
    %521 = arith.addf %519, %520 : vector<2x192xf32>
    %522 = vector.extract_strided_slice %390 {offsets = [0, 0], sizes = [2, 64], strides = [1, 1]} : vector<2x192xf32> to vector<2x64xf32>
    %523 = vector.extract_strided_slice %521 {offsets = [0, 0], sizes = [2, 64], strides = [1, 1]} : vector<2x192xf32> to vector<2x64xf32>
    %524 = arith.addf %522, %523 : vector<2x64xf32>
    %525 = arith.negf %524 : vector<2x64xf32>
    %526 = math.exp %525 : vector<2x64xf32>
    %cst_65 = arith.constant 1.000000e+00 : f32
    %527 = vector.broadcast %cst_65 : f32 to vector<2x64xf32>
    %528 = arith.addf %527, %526 : vector<2x64xf32>
    %529 = arith.divf %527, %528 : vector<2x64xf32>
    %530 = vector.extract_strided_slice %390 {offsets = [0, 64], sizes = [2, 64], strides = [1, 1]} : vector<2x192xf32> to vector<2x64xf32>
    %531 = vector.extract_strided_slice %521 {offsets = [0, 64], sizes = [2, 64], strides = [1, 1]} : vector<2x192xf32> to vector<2x64xf32>
    %532 = arith.addf %530, %531 : vector<2x64xf32>
    %533 = arith.negf %532 : vector<2x64xf32>
    %534 = math.exp %533 : vector<2x64xf32>
    %cst_66 = arith.constant 1.000000e+00 : f32
    %535 = vector.broadcast %cst_66 : f32 to vector<2x64xf32>
    %536 = arith.addf %535, %534 : vector<2x64xf32>
    %537 = arith.divf %535, %536 : vector<2x64xf32>
    %538 = vector.extract_strided_slice %390 {offsets = [0, 128], sizes = [2, 64], strides = [1, 1]} : vector<2x192xf32> to vector<2x64xf32>
    %539 = vector.extract_strided_slice %521 {offsets = [0, 128], sizes = [2, 64], strides = [1, 1]} : vector<2x192xf32> to vector<2x64xf32>
    %540 = arith.mulf %529, %539 : vector<2x64xf32>
    %541 = arith.addf %538, %540 : vector<2x64xf32>
    %542 = math.tanh %541 : vector<2x64xf32>
    %cst_67 = arith.constant 1.000000e+00 : f32
    %543 = vector.broadcast %cst_67 : f32 to vector<2x64xf32>
    %544 = arith.subf %543, %537 : vector<2x64xf32>
    %545 = arith.mulf %544, %542 : vector<2x64xf32>
    %546 = arith.mulf %537, %517 : vector<2x64xf32>
    %547 = arith.addf %545, %546 : vector<2x64xf32>
    %548 = arith.truncf %547 : vector<2x64xf32> to vector<2x64xbf16>
    %cst_68 = arith.constant dense<0.000000e+00> : vector<2x192xf32>
    %549 = tpu.matmul %548, %349, %cst_68 {dimension_numbers = #tpu.dot_dimension_numbers<[1], [0], [0], [1], [0, 0, 1, 1], [], []>} : vector<2x64xbf16>, vector<64x192xbf16>, vector<2x192xf32> -> vector<2x192xf32>
    %550 = vector.broadcast %350 : vector<1x192xf32> to vector<2x192xf32>
    %551 = arith.addf %549, %550 : vector<2x192xf32>
    %552 = vector.extract_strided_slice %399 {offsets = [0, 0], sizes = [2, 64], strides = [1, 1]} : vector<2x192xf32> to vector<2x64xf32>
    %553 = vector.extract_strided_slice %551 {offsets = [0, 0], sizes = [2, 64], strides = [1, 1]} : vector<2x192xf32> to vector<2x64xf32>
    %554 = arith.addf %552, %553 : vector<2x64xf32>
    %555 = arith.negf %554 : vector<2x64xf32>
    %556 = math.exp %555 : vector<2x64xf32>
    %cst_69 = arith.constant 1.000000e+00 : f32
    %557 = vector.broadcast %cst_69 : f32 to vector<2x64xf32>
    %558 = arith.addf %557, %556 : vector<2x64xf32>
    %559 = arith.divf %557, %558 : vector<2x64xf32>
    %560 = vector.extract_strided_slice %399 {offsets = [0, 64], sizes = [2, 64], strides = [1, 1]} : vector<2x192xf32> to vector<2x64xf32>
    %561 = vector.extract_strided_slice %551 {offsets = [0, 64], sizes = [2, 64], strides = [1, 1]} : vector<2x192xf32> to vector<2x64xf32>
    %562 = arith.addf %560, %561 : vector<2x64xf32>
    %563 = arith.negf %562 : vector<2x64xf32>
    %564 = math.exp %563 : vector<2x64xf32>
    %cst_70 = arith.constant 1.000000e+00 : f32
    %565 = vector.broadcast %cst_70 : f32 to vector<2x64xf32>
    %566 = arith.addf %565, %564 : vector<2x64xf32>
    %567 = arith.divf %565, %566 : vector<2x64xf32>
    %568 = vector.extract_strided_slice %399 {offsets = [0, 128], sizes = [2, 64], strides = [1, 1]} : vector<2x192xf32> to vector<2x64xf32>
    %569 = vector.extract_strided_slice %551 {offsets = [0, 128], sizes = [2, 64], strides = [1, 1]} : vector<2x192xf32> to vector<2x64xf32>
    %570 = arith.mulf %559, %569 : vector<2x64xf32>
    %571 = arith.addf %568, %570 : vector<2x64xf32>
    %572 = math.tanh %571 : vector<2x64xf32>
    %cst_71 = arith.constant 1.000000e+00 : f32
    %573 = vector.broadcast %cst_71 : f32 to vector<2x64xf32>
    %574 = arith.subf %573, %567 : vector<2x64xf32>
    %575 = arith.mulf %574, %572 : vector<2x64xf32>
    %576 = arith.mulf %567, %547 : vector<2x64xf32>
    %577 = arith.addf %575, %576 : vector<2x64xf32>
    %578 = arith.truncf %577 : vector<2x64xf32> to vector<2x64xbf16>
    %cst_72 = arith.constant dense<0.000000e+00> : vector<2x192xf32>
    %579 = tpu.matmul %578, %349, %cst_72 {dimension_numbers = #tpu.dot_dimension_numbers<[1], [0], [0], [1], [0, 0, 1, 1], [], []>} : vector<2x64xbf16>, vector<64x192xbf16>, vector<2x192xf32> -> vector<2x192xf32>
    %580 = vector.broadcast %350 : vector<1x192xf32> to vector<2x192xf32>
    %581 = arith.addf %579, %580 : vector<2x192xf32>
    %582 = vector.extract_strided_slice %408 {offsets = [0, 0], sizes = [2, 64], strides = [1, 1]} : vector<2x192xf32> to vector<2x64xf32>
    %583 = vector.extract_strided_slice %581 {offsets = [0, 0], sizes = [2, 64], strides = [1, 1]} : vector<2x192xf32> to vector<2x64xf32>
    %584 = arith.addf %582, %583 : vector<2x64xf32>
    %585 = arith.negf %584 : vector<2x64xf32>
    %586 = math.exp %585 : vector<2x64xf32>
    %cst_73 = arith.constant 1.000000e+00 : f32
    %587 = vector.broadcast %cst_73 : f32 to vector<2x64xf32>
    %588 = arith.addf %587, %586 : vector<2x64xf32>
    %589 = arith.divf %587, %588 : vector<2x64xf32>
    %590 = vector.extract_strided_slice %408 {offsets = [0, 64], sizes = [2, 64], strides = [1, 1]} : vector<2x192xf32> to vector<2x64xf32>
    %591 = vector.extract_strided_slice %581 {offsets = [0, 64], sizes = [2, 64], strides = [1, 1]} : vector<2x192xf32> to vector<2x64xf32>
    %592 = arith.addf %590, %591 : vector<2x64xf32>
    %593 = arith.negf %592 : vector<2x64xf32>
    %594 = math.exp %593 : vector<2x64xf32>
    %cst_74 = arith.constant 1.000000e+00 : f32
    %595 = vector.broadcast %cst_74 : f32 to vector<2x64xf32>
    %596 = arith.addf %595, %594 : vector<2x64xf32>
    %597 = arith.divf %595, %596 : vector<2x64xf32>
    %598 = vector.extract_strided_slice %408 {offsets = [0, 128], sizes = [2, 64], strides = [1, 1]} : vector<2x192xf32> to vector<2x64xf32>
    %599 = vector.extract_strided_slice %581 {offsets = [0, 128], sizes = [2, 64], strides = [1, 1]} : vector<2x192xf32> to vector<2x64xf32>
    %600 = arith.mulf %589, %599 : vector<2x64xf32>
    %601 = arith.addf %598, %600 : vector<2x64xf32>
    %602 = math.tanh %601 : vector<2x64xf32>
    %cst_75 = arith.constant 1.000000e+00 : f32
    %603 = vector.broadcast %cst_75 : f32 to vector<2x64xf32>
    %604 = arith.subf %603, %597 : vector<2x64xf32>
    %605 = arith.mulf %604, %602 : vector<2x64xf32>
    %606 = arith.mulf %597, %577 : vector<2x64xf32>
    %607 = arith.addf %605, %606 : vector<2x64xf32>
    %608 = arith.truncf %607 : vector<2x64xf32> to vector<2x64xbf16>
    %cst_76 = arith.constant dense<0.000000e+00> : vector<2x192xf32>
    %609 = tpu.matmul %608, %349, %cst_76 {dimension_numbers = #tpu.dot_dimension_numbers<[1], [0], [0], [1], [0, 0, 1, 1], [], []>} : vector<2x64xbf16>, vector<64x192xbf16>, vector<2x192xf32> -> vector<2x192xf32>
    %610 = vector.broadcast %350 : vector<1x192xf32> to vector<2x192xf32>
    %611 = arith.addf %609, %610 : vector<2x192xf32>
    %612 = vector.extract_strided_slice %417 {offsets = [0, 0], sizes = [2, 64], strides = [1, 1]} : vector<2x192xf32> to vector<2x64xf32>
    %613 = vector.extract_strided_slice %611 {offsets = [0, 0], sizes = [2, 64], strides = [1, 1]} : vector<2x192xf32> to vector<2x64xf32>
    %614 = arith.addf %612, %613 : vector<2x64xf32>
    %615 = arith.negf %614 : vector<2x64xf32>
    %616 = math.exp %615 : vector<2x64xf32>
    %cst_77 = arith.constant 1.000000e+00 : f32
    %617 = vector.broadcast %cst_77 : f32 to vector<2x64xf32>
    %618 = arith.addf %617, %616 : vector<2x64xf32>
    %619 = arith.divf %617, %618 : vector<2x64xf32>
    %620 = vector.extract_strided_slice %417 {offsets = [0, 64], sizes = [2, 64], strides = [1, 1]} : vector<2x192xf32> to vector<2x64xf32>
    %621 = vector.extract_strided_slice %611 {offsets = [0, 64], sizes = [2, 64], strides = [1, 1]} : vector<2x192xf32> to vector<2x64xf32>
    %622 = arith.addf %620, %621 : vector<2x64xf32>
    %623 = arith.negf %622 : vector<2x64xf32>
    %624 = math.exp %623 : vector<2x64xf32>
    %cst_78 = arith.constant 1.000000e+00 : f32
    %625 = vector.broadcast %cst_78 : f32 to vector<2x64xf32>
    %626 = arith.addf %625, %624 : vector<2x64xf32>
    %627 = arith.divf %625, %626 : vector<2x64xf32>
    %628 = vector.extract_strided_slice %417 {offsets = [0, 128], sizes = [2, 64], strides = [1, 1]} : vector<2x192xf32> to vector<2x64xf32>
    %629 = vector.extract_strided_slice %611 {offsets = [0, 128], sizes = [2, 64], strides = [1, 1]} : vector<2x192xf32> to vector<2x64xf32>
    %630 = arith.mulf %619, %629 : vector<2x64xf32>
    %631 = arith.addf %628, %630 : vector<2x64xf32>
    %632 = math.tanh %631 : vector<2x64xf32>
    %cst_79 = arith.constant 1.000000e+00 : f32
    %633 = vector.broadcast %cst_79 : f32 to vector<2x64xf32>
    %634 = arith.subf %633, %627 : vector<2x64xf32>
    %635 = arith.mulf %634, %632 : vector<2x64xf32>
    %636 = arith.mulf %627, %607 : vector<2x64xf32>
    %637 = arith.addf %635, %636 : vector<2x64xf32>
    %638 = arith.truncf %637 : vector<2x64xf32> to vector<2x64xbf16>
    %cst_80 = arith.constant dense<0.000000e+00> : vector<2x192xf32>
    %639 = tpu.matmul %638, %349, %cst_80 {dimension_numbers = #tpu.dot_dimension_numbers<[1], [0], [0], [1], [0, 0, 1, 1], [], []>} : vector<2x64xbf16>, vector<64x192xbf16>, vector<2x192xf32> -> vector<2x192xf32>
    %640 = vector.broadcast %350 : vector<1x192xf32> to vector<2x192xf32>
    %641 = arith.addf %639, %640 : vector<2x192xf32>
    %642 = vector.extract_strided_slice %426 {offsets = [0, 0], sizes = [2, 64], strides = [1, 1]} : vector<2x192xf32> to vector<2x64xf32>
    %643 = vector.extract_strided_slice %641 {offsets = [0, 0], sizes = [2, 64], strides = [1, 1]} : vector<2x192xf32> to vector<2x64xf32>
    %644 = arith.addf %642, %643 : vector<2x64xf32>
    %645 = arith.negf %644 : vector<2x64xf32>
    %646 = math.exp %645 : vector<2x64xf32>
    %cst_81 = arith.constant 1.000000e+00 : f32
    %647 = vector.broadcast %cst_81 : f32 to vector<2x64xf32>
    %648 = arith.addf %647, %646 : vector<2x64xf32>
    %649 = arith.divf %647, %648 : vector<2x64xf32>
    %650 = vector.extract_strided_slice %426 {offsets = [0, 64], sizes = [2, 64], strides = [1, 1]} : vector<2x192xf32> to vector<2x64xf32>
    %651 = vector.extract_strided_slice %641 {offsets = [0, 64], sizes = [2, 64], strides = [1, 1]} : vector<2x192xf32> to vector<2x64xf32>
    %652 = arith.addf %650, %651 : vector<2x64xf32>
    %653 = arith.negf %652 : vector<2x64xf32>
    %654 = math.exp %653 : vector<2x64xf32>
    %cst_82 = arith.constant 1.000000e+00 : f32
    %655 = vector.broadcast %cst_82 : f32 to vector<2x64xf32>
    %656 = arith.addf %655, %654 : vector<2x64xf32>
    %657 = arith.divf %655, %656 : vector<2x64xf32>
    %658 = vector.extract_strided_slice %426 {offsets = [0, 128], sizes = [2, 64], strides = [1, 1]} : vector<2x192xf32> to vector<2x64xf32>
    %659 = vector.extract_strided_slice %641 {offsets = [0, 128], sizes = [2, 64], strides = [1, 1]} : vector<2x192xf32> to vector<2x64xf32>
    %660 = arith.mulf %649, %659 : vector<2x64xf32>
    %661 = arith.addf %658, %660 : vector<2x64xf32>
    %662 = math.tanh %661 : vector<2x64xf32>
    %cst_83 = arith.constant 1.000000e+00 : f32
    %663 = vector.broadcast %cst_83 : f32 to vector<2x64xf32>
    %664 = arith.subf %663, %657 : vector<2x64xf32>
    %665 = arith.mulf %664, %662 : vector<2x64xf32>
    %666 = arith.mulf %657, %637 : vector<2x64xf32>
    %667 = arith.addf %665, %666 : vector<2x64xf32>
    %668 = vector.extract_strided_slice %457 {offsets = [0, 0], sizes = [2, 32], strides = [1, 1]} : vector<2x64xf32> to vector<2x32xf32>
    %669 = vector.extract_strided_slice %667 {offsets = [0, 32], sizes = [2, 32], strides = [1, 1]} : vector<2x64xf32> to vector<2x32xf32>
    %670 = tpu.concatenate %668, %669 in 1 : vector<2x32xf32>, vector<2x32xf32> -> vector<2x64xf32>
    %671 = vector.extract_strided_slice %487 {offsets = [0, 0], sizes = [2, 32], strides = [1, 1]} : vector<2x64xf32> to vector<2x32xf32>
    %672 = vector.extract_strided_slice %637 {offsets = [0, 32], sizes = [2, 32], strides = [1, 1]} : vector<2x64xf32> to vector<2x32xf32>
    %673 = tpu.concatenate %671, %672 in 1 : vector<2x32xf32>, vector<2x32xf32> -> vector<2x64xf32>
    %674 = vector.extract_strided_slice %517 {offsets = [0, 0], sizes = [2, 32], strides = [1, 1]} : vector<2x64xf32> to vector<2x32xf32>
    %675 = vector.extract_strided_slice %607 {offsets = [0, 32], sizes = [2, 32], strides = [1, 1]} : vector<2x64xf32> to vector<2x32xf32>
    %676 = tpu.concatenate %674, %675 in 1 : vector<2x32xf32>, vector<2x32xf32> -> vector<2x64xf32>
    %677 = vector.extract_strided_slice %547 {offsets = [0, 0], sizes = [2, 32], strides = [1, 1]} : vector<2x64xf32> to vector<2x32xf32>
    %678 = vector.extract_strided_slice %577 {offsets = [0, 32], sizes = [2, 32], strides = [1, 1]} : vector<2x64xf32> to vector<2x32xf32>
    %679 = tpu.concatenate %677, %678 in 1 : vector<2x32xf32>, vector<2x32xf32> -> vector<2x64xf32>
    %680 = vector.extract_strided_slice %577 {offsets = [0, 0], sizes = [2, 32], strides = [1, 1]} : vector<2x64xf32> to vector<2x32xf32>
    %681 = vector.extract_strided_slice %547 {offsets = [0, 32], sizes = [2, 32], strides = [1, 1]} : vector<2x64xf32> to vector<2x32xf32>
    %682 = tpu.concatenate %680, %681 in 1 : vector<2x32xf32>, vector<2x32xf32> -> vector<2x64xf32>
    %683 = vector.extract_strided_slice %607 {offsets = [0, 0], sizes = [2, 32], strides = [1, 1]} : vector<2x64xf32> to vector<2x32xf32>
    %684 = vector.extract_strided_slice %517 {offsets = [0, 32], sizes = [2, 32], strides = [1, 1]} : vector<2x64xf32> to vector<2x32xf32>
    %685 = tpu.concatenate %683, %684 in 1 : vector<2x32xf32>, vector<2x32xf32> -> vector<2x64xf32>
    %686 = vector.extract_strided_slice %637 {offsets = [0, 0], sizes = [2, 32], strides = [1, 1]} : vector<2x64xf32> to vector<2x32xf32>
    %687 = vector.extract_strided_slice %487 {offsets = [0, 32], sizes = [2, 32], strides = [1, 1]} : vector<2x64xf32> to vector<2x32xf32>
    %688 = tpu.concatenate %686, %687 in 1 : vector<2x32xf32>, vector<2x32xf32> -> vector<2x64xf32>
    %689 = vector.extract_strided_slice %667 {offsets = [0, 0], sizes = [2, 32], strides = [1, 1]} : vector<2x64xf32> to vector<2x32xf32>
    %690 = vector.extract_strided_slice %457 {offsets = [0, 32], sizes = [2, 32], strides = [1, 1]} : vector<2x64xf32> to vector<2x32xf32>
    %691 = tpu.concatenate %689, %690 in 1 : vector<2x32xf32>, vector<2x32xf32> -> vector<2x64xf32>
    %692 = tpu.concatenate %670, %673, %676, %679, %682, %685, %688, %691 in 0 : vector<2x64xf32>, vector<2x64xf32>, vector<2x64xf32>, vector<2x64xf32>, vector<2x64xf32>, vector<2x64xf32>, vector<2x64xf32>, vector<2x64xf32> -> vector<16x64xf32>
    %693 = arith.truncf %692 : vector<16x64xf32> to vector<16x64xbf16>
    %c0_84 = arith.constant 0 : index
    %c0_85 = arith.constant 0 : index
    %694 = vector.load %arg9[%c0_84, %c0_85] : memref<64x128xbf16, #tpu.memory_space<vmem>>, vector<64x128xbf16>
    %cst_86 = arith.constant dense<0.000000e+00> : vector<16x128xf32>
    %695 = tpu.matmul %693, %694, %cst_86 {dimension_numbers = #tpu.dot_dimension_numbers<[1], [0], [0], [1], [0, 0, 1, 1], [], []>} : vector<16x64xbf16>, vector<64x128xbf16>, vector<16x128xf32> -> vector<16x128xf32>
    %c0_87 = arith.constant 0 : index
    %c0_88 = arith.constant 0 : index
    %696 = vector.load %arg10[%c0_87, %c0_88] : memref<1x128xf32, #tpu.memory_space<vmem>>, vector<1x128xf32>
    %697 = vector.broadcast %696 : vector<1x128xf32> to vector<16x128xf32>
    %698 = arith.addf %695, %697 : vector<16x128xf32>
    %cst_89 = arith.constant dense<0xFF800000> : vector<16xf32>
    %699 = vector.multi_reduction <maximumf>, %698, %cst_89 [1] : vector<16x128xf32> to vector<16xf32>
    %700 = vector.shape_cast %699 : vector<16xf32> to vector<16x1xf32>
    %701 = vector.broadcast %700 : vector<16x1xf32> to vector<16x128xf32>
    %702 = arith.subf %698, %701 : vector<16x128xf32>
    %703 = math.exp %702 : vector<16x128xf32>
    %cst_90 = arith.constant dense<0.000000e+00> : vector<16xf32>
    %704 = vector.multi_reduction <add>, %703, %cst_90 [1] : vector<16x128xf32> to vector<16xf32>
    %705 = vector.shape_cast %704 : vector<16xf32> to vector<16x1xf32>
    %706 = math.log %705 : vector<16x1xf32>
    %707 = arith.addf %700, %706 : vector<16x1xf32>
    %708 = vector.broadcast %707 : vector<16x1xf32> to vector<16x128xf32>
    %709 = arith.subf %698, %708 : vector<16x128xf32>
    %c0_91 = arith.constant 0 : index
    %c0_92 = arith.constant 0 : index
    %710 = vector.load %arg11[%c0_91, %c0_92] : memref<16x128xf32, #tpu.memory_space<vmem>>, vector<16x128xf32>
    tpu.vector_store %arg11[%c0_91, %c0_92], %709 {strides = array<i32>} : memref<16x128xf32, #tpu.memory_space<vmem>>, vector<16x128xf32>,
    return
  }
}

</mosaic_0001>

<llo_original>
// kernel: crnn_forward.2
$region0: #{crnn_forward.2}
  #allocation0 [shape = 'u32[]', space=smem, size = 0x4, offset = 0x4, fixed_abs, tag = 'smem constant byte address 0x4 - core index']
  #allocation1 [shape = 'u32[144,128]{1,0:T(1,128)}', space=vmem, size = 0x12000, scoped, tag = 'internal scratch']
  %s0 = inlined_call_operand.vmem [shape: f32[64,192], index: 0, kind: input, shape index: {}]
  %s1 = inlined_call_operand.vmem [shape: bf16[192,16], index: 1, kind: input, shape index: {}]
  %s2 = inlined_call_operand.vmem [shape: f32[1,16], index: 2, kind: input, shape index: {}]
  %s3 = inlined_call_operand.vmem [shape: bf16[16,8], index: 3, kind: input, shape index: {}]
  %s4 = inlined_call_operand.vmem [shape: f32[64,8], index: 4, kind: output, shape index: {}]
  %s5 = sld [smem:[#allocation0]]
  $region26: #{crnn_forward.2} parent=0
    _
  %s7 = ssub.s32 1, %s5
  %s8 = scalar_select 0, %s7, %s5
  // Predicated region
  $region2: #{crnn_forward.2} parent=0 // pred_check
    _
  $region3: #{crnn_forward.2} parent=0 // pred_check_branch
    %10 = sbr.rel (0) target = $region5
  $region4: #{crnn_forward.2} parent=0 // pred_region
    _
  $region5: #{crnn_forward.2} parent=0 // pred_fallthru
    _
  // Predicated region
  $region6: #{crnn_forward.2} parent=0 // pred_check
    _
  $region7: #{crnn_forward.2} parent=0 // pred_check_branch
    %12 = sbr.rel (0) target = $region9
  $region8: #{crnn_forward.2} parent=0 // pred_region
    _
  $region9: #{crnn_forward.2} parent=0 // pred_fallthru
    _
  // Predicated region
  $region10: #{crnn_forward.2} parent=0 // pred_check
    _
  $region11: #{crnn_forward.2} parent=0 // pred_check_branch
    %14 = sbr.rel (0) target = $region13
  $region12: #{crnn_forward.2} parent=0 // pred_region
    _
  $region13: #{crnn_forward.2} parent=0 // pred_fallthru
    _
  // Predicated region
  $region14: #{crnn_forward.2} parent=0 // pred_check
    _
  $region15: #{crnn_forward.2} parent=0 // pred_check_branch
    %16 = sbr.rel (0) target = $region17
  $region16: #{crnn_forward.2} parent=0 // pred_region
    _
  $region17: #{crnn_forward.2} parent=0 // pred_fallthru
    _
  %v18 = vld [vmem:[%s0] sm:$0xff]
  %v19 = vld [vmem:[%s0 + $0x8] sm:$0xff]
  %v20 = vld [vmem:[%s0 + $0x10] sm:$0xff]
  %v21 = vld [vmem:[%s0 + $0x18] sm:$0xff]
  %v22 = vld [vmem:[%s0 + $0x20] sm:$0xff]
  %v23 = vld [vmem:[%s0 + $0x28] sm:$0xff]
  %v24 = vld [vmem:[%s0 + $0x30] sm:$0xff]
  %v25 = vld [vmem:[%s0 + $0x38] sm:$0xff]
  %v26 = vld [vmem:[%s0 + $0x40] sm:$0xff]
  %v27 = vld [vmem:[%s0 + $0x48] sm:$0xff]
  %v28 = vld [vmem:[%s0 + $0x50] sm:$0xff]
  %v29 = vld [vmem:[%s0 + $0x58] sm:$0xff]
  %v30 = vld [vmem:[%s0 + $0x60] sm:$0xff]
  %v31 = vld [vmem:[%s0 + $0x68] sm:$0xff]
  %v32 = vld [vmem:[%s0 + $0x70] sm:$0xff]
  %v33 = vld [vmem:[%s0 + $0x78] sm:$0xff]
  %v34 = vpack.c.bf16 %v20, %v18
  %v35 = vpack.c.bf16 %v21, %v19
  %v36 = vpack.c.bf16 %v24, %v22
  %v37 = vpack.c.bf16 %v25, %v23
  %v38 = vpack.c.bf16 %v28, %v26
  %v39 = vpack.c.bf16 %v29, %v27
  %v40 = vpack.c.bf16 %v32, %v30
  %v41 = vpack.c.bf16 %v33, %v31
  %v42 = vld [vmem:[%s1] sm:$0xf]
  %v43 = vld [vmem:[%s1 + $0x4] sm:$0xf]
  %v44 = vld [vmem:[%s1 + $0x8] sm:$0xf]
  %v45 = vld [vmem:[%s1 + $0xc] sm:$0xf]
  %v46 = vld [vmem:[%s1 + $0x10] sm:$0xf]
  %v47 = vld [vmem:[%s1 + $0x14] sm:$0xf]
  %v48 = vld [vmem:[%s1 + $0x18] sm:$0xf]
  %v49 = vld [vmem:[%s1 + $0x1c] sm:$0xf]
  %v50 = vld [vmem:[%s1 + $0x20] sm:$0xf]
  %v51 = vld [vmem:[%s1 + $0x24] sm:$0xf]
  %v52 = vld [vmem:[%s1 + $0x28] sm:$0xf]
  %v53 = vld [vmem:[%s1 + $0x2c] sm:$0xf]
  %v54 = vld [vmem:[%s1 + $0x30] sm:$0xf]
  %v55 = vld [vmem:[%s1 + $0x34] sm:$0xf]
  %v56 = vld [vmem:[%s1 + $0x38] sm:$0xf]
  %v57 = vld [vmem:[%s1 + $0x3c] sm:$0xf]
  %v58 = vld [vmem:[%s1 + $0x40] sm:$0xf]
  %v59 = vld [vmem:[%s1 + $0x44] sm:$0xf]
  %v60 = vld [vmem:[%s1 + $0x48] sm:$0xf]
  %v61 = vld [vmem:[%s1 + $0x4c] sm:$0xf]
  %v62 = vld [vmem:[%s1 + $0x50] sm:$0xf]
  %v63 = vld [vmem:[%s1 + $0x54] sm:$0xf]
  %v64 = vld [vmem:[%s1 + $0x58] sm:$0xf]
  %v65 = vld [vmem:[%s1 + $0x5c] sm:$0xf]
  %v66 = vld [vmem:[%s2] sm:$0x1]
  %v68 = vlaneseq
  %v69 = vshrl.u32 %v68, 7
  %v70 = vsub.s32 0, %v69
  %v71 = vrot.slane %v66, %v70
  %v97 = vunpack.c.l.b16 %v42
  %v98 = vunpack.c.l.b16 %v43
  %v99 = vunpack.c.l.b16 %v44
  %v100 = vunpack.c.l.b16 %v45
  %v101 = vunpack.c.l.b16 %v46
  %v102 = vunpack.c.l.b16 %v47
  %v103 = vunpack.c.l.b16 %v48
  %v104 = vunpack.c.l.b16 %v49
  %v105 = vunpack.c.l.b16 %v50
  %v106 = vunpack.c.l.b16 %v51
  %v107 = vunpack.c.l.b16 %v52
  %v108 = vunpack.c.l.b16 %v53
  %v109 = vunpack.c.l.b16 %v54
  %v110 = vunpack.c.l.b16 %v55
  %v111 = vunpack.c.l.b16 %v56
  %v112 = vunpack.c.l.b16 %v57
  %v113 = vunpack.c.l.b16 %v58
  %v114 = vunpack.c.l.b16 %v59
  %v115 = vunpack.c.l.b16 %v60
  %v116 = vunpack.c.l.b16 %v61
  %v117 = vunpack.c.l.b16 %v62
  %v118 = vunpack.c.l.b16 %v63
  %v119 = vunpack.c.l.b16 %v64
  %v120 = vunpack.c.l.b16 %v65
  %v121 = vpack.c.b16 %v98, %v97
  %v122 = vpack.c.b16 %v100, %v99
  %v123 = vpack.c.b16 %v102, %v101
  %v124 = vpack.c.b16 %v104, %v103
  %v125 = vpack.c.b16 %v106, %v105
  %v126 = vpack.c.b16 %v108, %v107
  %v127 = vpack.c.b16 %v110, %v109
  %v128 = vpack.c.b16 %v112, %v111
  %v129 = vpack.c.b16 %v114, %v113
  %v130 = vpack.c.b16 %v116, %v115
  %v131 = vpack.c.b16 %v118, %v117
  %v132 = vpack.c.b16 %v120, %v119
  %vm145 = vcmask 523264
  %v147 = vsel %vm145, %v35, 0
  %v150 = vsel %vm145, %v37, 0
  %v153 = vsel %vm145, %v39, 0
  %v156 = vsel %vm145, %v41, 0
  %158 = vmatprep.subr.bf16.mxu0 0
  %159 = vmatpush1.bf16.msra.mxu0 %v128
  %160 = vmatprep.subr.bf16.mxu0 0
  %161 = vmatpush1.bf16.msra.mxu0 %v127
  %162 = vmatprep.subr.bf16.mxu0 0
  %163 = vmatpush1.bf16.msra.mxu0 %v126
  %164 = vmatprep.subr.bf16.mxu0 0
  %165 = vmatpush1.bf16.msra.mxu0 %v125
  %166 = vmatprep.subr.bf16.mxu0 0
  %167 = vmatpush1.bf16.msra.mxu0 %v124
  %168 = vmatprep.subr.bf16.mxu0 0
  %169 = vmatpush1.bf16.msra.mxu0 %v123
  %170 = vmatprep.subr.bf16.mxu0 0
  %171 = vmatpush1.bf16.msra.mxu0 %v122
  %172 = vmatprep.subr.bf16.mxu0 0
  %173 = vmatpush1.bf16.msra.mxu0 %v121
  %174 = vmatprep.subr.bf16.mxu0 0
  %175 = vmatpush2.bf16.msra.mxu0 0
  %176 = vmatprep.subr.bf16.mxu0 0
  %177 = vmatpush2.bf16.msra.mxu0 0
  %178 = vmatprep.subr.bf16.mxu0 0
  %179 = vmatpush2.bf16.msra.mxu0 0
  %180 = vmatprep.subr.bf16.mxu0 0
  %181 = vmatpush2.bf16.msra.mxu0 0
  %182 = vmatprep.subr.bf16.mxu0 0
  %183 = vmatpush2.bf16.msra.mxu0 %v132
  %184 = vmatprep.subr.bf16.mxu0 0
  %185 = vmatpush2.bf16.msra.mxu0 %v131
  %186 = vmatprep.subr.bf16.mxu0 0
  %187 = vmatpush2.bf16.msra.mxu0 %v130
  %188 = vmatprep.subr.bf16.mxu0 0
  %189 = vmatpush2.bf16.msra.mxu0 %v129
  %190 = vmatprep.mubr.bf16.mxu0 %v147
  %191 = vmatmul.mubr.bf16.gmra.mxu0 %v34
  %v192 = vpop.f32.mrf.mxu0
  %v193 = vadd.f32 %v71, %v192
  %v194 = vpop.f32.mrf.mxu0
  %v195 = vpop.f32.mrf.mxu0
  %v196 = vadd.f32 %v71, %v195
  %v197 = vpop.f32.mrf.mxu0
  %198 = vmatprep.mubr.bf16.mxu0 %v150
  %199 = vmatmul.mubr.bf16.gmra.mxu0 %v36
  %v200 = vpop.f32.mrf.mxu0
  %v201 = vadd.f32 %v71, %v200
  %v202 = vpop.f32.mrf.mxu0
  %v203 = vpop.f32.mrf.mxu0
  %v204 = vadd.f32 %v71, %v203
  %v205 = vpop.f32.mrf.mxu0
  %206 = vmatprep.mubr.bf16.mxu0 %v153
  %207 = vmatmul.mubr.bf16.gmra.mxu0 %v38
  %v208 = vpop.f32.mrf.mxu0
  %v209 = vadd.f32 %v71, %v208
  %v210 = vpop.f32.mrf.mxu0
  %v211 = vpop.f32.mrf.mxu0
  %v212 = vadd.f32 %v71, %v211
  %v213 = vpop.f32.mrf.mxu0
  %214 = vmatprep.mubr.bf16.mxu0 %v156
  %215 = vmatmul.mubr.bf16.gmra.mxu0 %v40
  %v216 = vpop.f32.mrf.mxu0
  %v217 = vadd.f32 %v71, %v216
  %v218 = vpop.f32.mrf.mxu0
  %v219 = vpop.f32.mrf.mxu0
  %v220 = vadd.f32 %v71, %v219
  %v221 = vpop.f32.mrf.mxu0
  %222 = vdwg.mxu0
  %v223 = vmax.f32 %v193, 0.0
  %v224 = vmax.f32 %v196, 0.0
  %v225 = vmax.f32 %v201, 0.0
  %v226 = vmax.f32 %v204, 0.0
  %v227 = vmax.f32 %v209, 0.0
  %v228 = vmax.f32 %v212, 0.0
  %v229 = vmax.f32 %v217, 0.0
  %v230 = vmax.f32 %v220, 0.0
  %v231 = vpack.c.bf16 %v224, %v223
  %v232 = vpack.c.bf16 %v226, %v225
  %v233 = vpack.c.bf16 %v228, %v227
  %v234 = vpack.c.bf16 %v230, %v229
  %v235 = vld [vmem:[%s3] sm:$0xf]
  %v236 = vld [vmem:[%s3 + $0x4] sm:$0xf]
  %v239 = vunpack.c.l.b16 %v235
  %v240 = vunpack.c.l.b16 %v236
  %v241 = vpack.c.b16 %v240, %v239
  %vm243 = vcmask 130048
  %v245 = vsel %vm243, %v231, 0
  %v248 = vsel %vm243, %v232, 0
  %v251 = vsel %vm243, %v233, 0
  %v254 = vsel %vm243, %v234, 0
  %256 = vmatprep.subr.bf16.mxu0 0
  %257 = vmatpush1.bf16.msra.mxu0 0
  %258 = vmatprep.subr.bf16.mxu0 0
  %259 = vmatpush1.bf16.msra.mxu0 0
  %260 = vmatprep.subr.bf16.mxu0 0
  %261 = vmatpush1.bf16.msra.mxu0 0
  %262 = vmatprep.subr.bf16.mxu0 0
  %263 = vmatpush1.bf16.msra.mxu0 0
  %264 = vmatprep.subr.bf16.mxu0 0
  %265 = vmatpush1.bf16.msra.mxu0 0
  %266 = vmatprep.subr.bf16.mxu0 0
  %267 = vmatpush1.bf16.msra.mxu0 0
  %268 = vmatprep.subr.bf16.mxu0 0
  %269 = vmatpush1.bf16.msra.mxu0 0
  %270 = vmatprep.subr.bf16.mxu0 0
  %271 = vmatpush1.bf16.msra.mxu0 %v241
  %272 = vmatprep.subr.bf16.mxu0 0
  %273 = vmatpush2.bf16.msra.mxu0 0
  %274 = vmatprep.subr.bf16.mxu0 0
  %275 = vmatpush2.bf16.msra.mxu0 0
  %276 = vmatprep.subr.bf16.mxu0 0
  %277 = vmatpush2.bf16.msra.mxu0 0
  %278 = vmatprep.subr.bf16.mxu0 0
  %279 = vmatpush2.bf16.msra.mxu0 0
  %280 = vmatprep.subr.bf16.mxu0 0
  %281 = vmatpush2.bf16.msra.mxu0 0
  %282 = vmatprep.subr.bf16.mxu0 0
  %283 = vmatpush2.bf16.msra.mxu0 0
  %284 = vmatprep.subr.bf16.mxu0 0
  %285 = vmatpush2.bf16.msra.mxu0 0
  %286 = vmatprep.subr.bf16.mxu0 0
  %287 = vmatpush2.bf16.msra.mxu0 0
  %288 = vmatprep.mubr.bf16.mxu0 0
  %289 = vmatmul.mubr.bf16.gmra.mxu0 %v245
  %v290 = vpop.f32.mrf.mxu0
  %v291 = vadd.f32 0.0, %v290
  %v292 = vpop.f32.mrf.mxu0
  %v293 = vpop.f32.mrf.mxu0
  %v294 = vadd.f32 0.0, %v293
  %v295 = vpop.f32.mrf.mxu0
  %296 = vmatprep.mubr.bf16.mxu0 0
  %297 = vmatmul.mubr.bf16.gmra.mxu0 %v248
  %v298 = vpop.f32.mrf.mxu0
  %v299 = vadd.f32 0.0, %v298
  %v300 = vpop.f32.mrf.mxu0
  %v301 = vpop.f32.mrf.mxu0
  %v302 = vadd.f32 0.0, %v301
  %v303 = vpop.f32.mrf.mxu0
  %304 = vmatprep.mubr.bf16.mxu0 0
  %305 = vmatmul.mubr.bf16.gmra.mxu0 %v251
  %v306 = vpop.f32.mrf.mxu0
  %v307 = vadd.f32 0.0, %v306
  %v308 = vpop.f32.mrf.mxu0
  %v309 = vpop.f32.mrf.mxu0
  %v310 = vadd.f32 0.0, %v309
  %v311 = vpop.f32.mrf.mxu0
  %312 = vmatprep.mubr.bf16.mxu0 0
  %313 = vmatmul.mubr.bf16.gmra.mxu0 %v254
  %v314 = vpop.f32.mrf.mxu0
  %v315 = vadd.f32 0.0, %v314
  %v316 = vpop.f32.mrf.mxu0
  %v317 = vpop.f32.mrf.mxu0
  %v318 = vadd.f32 0.0, %v317
  %v319 = vpop.f32.mrf.mxu0
  %320 = vdwg.mxu0
  %vm321 = vcmask 64512
  %322 = vst.msk [vmem:[%s4] sm:$0xff] %vm321, %v291
  %323 = vst.msk [vmem:[%s4 + $0x8] sm:$0xff] %vm321, %v294
  %324 = vst.msk [vmem:[%s4 + $0x10] sm:$0xff] %vm321, %v299
  %325 = vst.msk [vmem:[%s4 + $0x18] sm:$0xff] %vm321, %v302
  %326 = vst.msk [vmem:[%s4 + $0x20] sm:$0xff] %vm321, %v307
  %327 = vst.msk [vmem:[%s4 + $0x28] sm:$0xff] %vm321, %v310
  %328 = vst.msk [vmem:[%s4 + $0x30] sm:$0xff] %vm321, %v315
  %329 = vst.msk [vmem:[%s4 + $0x38] sm:$0xff] %vm321, %v318
  // Predicated region
  $region18: #{crnn_forward.2} parent=0 // pred_check
    _
  $region19: #{crnn_forward.2} parent=0 // pred_check_branch
    %331 = sbr.rel (0) target = $region21
  $region20: #{crnn_forward.2} parent=0 // pred_region
    _
  $region21: #{crnn_forward.2} parent=0 // pred_fallthru
    _
  // Predicated region
  $region22: #{crnn_forward.2} parent=0 // pred_check
    _
  $region23: #{crnn_forward.2} parent=0 // pred_check_branch
    %333 = sbr.rel (0) target = $region25
  $region24: #{crnn_forward.2} parent=0 // pred_region
    _
  $region25: #{crnn_forward.2} parent=0 // pred_fallthru
    _

// kernel: crnn_forward.3
$region0: #{crnn_forward.3}
  #allocation0 [shape = 'u32[]', space=smem, size = 0x4, offset = 0x4, fixed_abs, tag = 'smem constant byte address 0x4 - core index']
  #allocation1 [shape = 'u32[144,128]{1,0:T(1,128)}', space=vmem, size = 0x12000, scoped, tag = 'internal scratch']
  %s0 = inlined_call_operand.vmem [shape: f32[16,32], index: 0, kind: input, shape index: {}]
  %s1 = inlined_call_operand.vmem [shape: bf16[32,192], index: 1, kind: input, shape index: {}]
  %s2 = inlined_call_operand.vmem [shape: f32[1,192], index: 2, kind: input, shape index: {}]
  %s3 = inlined_call_operand.vmem [shape: bf16[64,192], index: 3, kind: input, shape index: {}]
  %s4 = inlined_call_operand.vmem [shape: f32[1,192], index: 4, kind: input, shape index: {}]
  %s5 = inlined_call_operand.vmem [shape: bf16[64,192], index: 5, kind: input, shape index: {}]
  %s6 = inlined_call_operand.vmem [shape: f32[1,192], index: 6, kind: input, shape index: {}]
  %s7 = inlined_call_operand.vmem [shape: bf16[64,192], index: 7, kind: input, shape index: {}]
  %s8 = inlined_call_operand.vmem [shape: f32[1,192], index: 8, kind: input, shape index: {}]
  %s9 = inlined_call_operand.vmem [shape: bf16[64,128], index: 9, kind: input, shape index: {}]
  %s10 = inlined_call_operand.vmem [shape: f32[1,128], index: 10, kind: input, shape index: {}]
  %s11 = inlined_call_operand.hbm [shape: f32[16,128], index: 11, kind: output, shape index: {}]
  %s12 = sld [smem:[#allocation0]]
  $region54: #{crnn_forward.3} parent=0
    _
  %s14 = ssub.s32 1, %s12
  %s15 = scalar_select 0, %s14, %s12
  $region1: #{crnn_forward.3} parent=0
    #allocation2 [shape = 'u8[8192]{0}', space=vmem, size = 0x2000, scoped, tag = 'output window, operand 0, single buffered']
    #allocation3 [shape = 's32[1]{0}', space=sflag, size = 0x4, scoped, tag = 'scoped memory for crnn_forward.3']
    %16 = vsyncpa [#allocation3], 0
    // Predicated region
    $region2: #{crnn_forward.3} parent=1 // pred_check
      _
    $region3: #{crnn_forward.3} parent=1 // pred_check_branch
      %18 = sbr.rel (0) target = $region5
    $region4: #{crnn_forward.3} parent=1 // pred_region
      _
    $region5: #{crnn_forward.3} parent=1 // pred_fallthru
      _
    // Predicated region
    $region6: #{crnn_forward.3} parent=1 // pred_check
      _
    $region7: #{crnn_forward.3} parent=1 // pred_check_branch
      %20 = sbr.rel (0) target = $region9
    $region8: #{crnn_forward.3} parent=1 // pred_region
      _
    $region9: #{crnn_forward.3} parent=1 // pred_fallthru
      _
    // Predicated region
    $region10: #{crnn_forward.3} parent=1 // pred_check
      _
    $region11: #{crnn_forward.3} parent=1 // pred_check_branch
      %22 = sbr.rel (0) target = $region13
    $region12: #{crnn_forward.3} parent=1 // pred_region
      _
    $region13: #{crnn_forward.3} parent=1 // pred_fallthru
      _
    // Predicated region
    $region14: #{crnn_forward.3} parent=1 // pred_check
      _
    $region15: #{crnn_forward.3} parent=1 // pred_check_branch
      %24 = sbr.rel (0) target = $region17
    $region16: #{crnn_forward.3} parent=1 // pred_region
      _
    $region17: #{crnn_forward.3} parent=1 // pred_fallthru
      _
    // Predicated region
    $region18: #{crnn_forward.3} parent=1 // pred_check
      _
    $region19: #{crnn_forward.3} parent=1 // pred_check_branch
      %26 = sbr.rel (0) target = $region21
    $region20: #{crnn_forward.3} parent=1 // pred_region
      _
    $region21: #{crnn_forward.3} parent=1 // pred_fallthru
      _
    // Predicated region
    $region22: #{crnn_forward.3} parent=1 // pred_check
      _
    $region23: #{crnn_forward.3} parent=1 // pred_check_branch
      %28 = sbr.rel (0) target = $region25
    $region24: #{crnn_forward.3} parent=1 // pred_region
      _
    $region25: #{crnn_forward.3} parent=1 // pred_fallthru
      _
    // Predicated region
    $region26: #{crnn_forward.3} parent=1 // pred_check
      _
    $region27: #{crnn_forward.3} parent=1 // pred_check_branch
      %30 = sbr.rel (0) target = $region29
    $region28: #{crnn_forward.3} parent=1 // pred_region
      _
    $region29: #{crnn_forward.3} parent=1 // pred_fallthru
      _
    // Predicated region
    $region30: #{crnn_forward.3} parent=1 // pred_check
      _
    $region31: #{crnn_forward.3} parent=1 // pred_check_branch
      %32 = sbr.rel (0) target = $region33
    $region32: #{crnn_forward.3} parent=1 // pred_region
      _
    $region33: #{crnn_forward.3} parent=1 // pred_fallthru
      _
    // Predicated region
    $region34: #{crnn_forward.3} parent=1 // pred_check
      _
    $region35: #{crnn_forward.3} parent=1 // pred_check_branch
      %34 = sbr.rel (0) target = $region37
    $region36: #{crnn_forward.3} parent=1 // pred_region
      _
    $region37: #{crnn_forward.3} parent=1 // pred_fallthru
      _
    // Predicated region
    $region38: #{crnn_forward.3} parent=1 // pred_check
      _
    $region39: #{crnn_forward.3} parent=1 // pred_check_branch
      %36 = sbr.rel (0) target = $region41
    $region40: #{crnn_forward.3} parent=1 // pred_region
      _
    $region41: #{crnn_forward.3} parent=1 // pred_fallthru
      _
    // Predicated region
    $region42: #{crnn_forward.3} parent=1 // pred_check
      _
    $region43: #{crnn_forward.3} parent=1 // pred_check_branch
      %38 = sbr.rel (0) target = $region45
    $region44: #{crnn_forward.3} parent=1 // pred_region
      _
    $region45: #{crnn_forward.3} parent=1 // pred_fallthru
      _
    %v40 = vld [vmem:[%s0] sm:$0xff]
    %v41 = vld [vmem:[%s0 + $0x8] sm:$0xff]
    %v42 = vld [vmem:[%s1] sm:$0xff]
    %v43 = vld [vmem:[%s1 + $0x8] sm:$0xff]
    %v44 = vld [vmem:[%s1 + $0x10] sm:$0xff]
    %v45 = vld [vmem:[%s1 + $0x18] sm:$0xff]
    %v46 = vld [vmem:[%s2] sm:$0x3]
    %v47 = vld [vmem:[%s3] sm:$0xff]
    %v48 = vld [vmem:[%s3 + $0x8] sm:$0xff]
    %v49 = vld [vmem:[%s3 + $0x10] sm:$0xff]
    %v50 = vld [vmem:[%s3 + $0x18] sm:$0xff]
    %v51 = vld [vmem:[%s3 + $0x20] sm:$0xff]
    %v52 = vld [vmem:[%s3 + $0x28] sm:$0xff]
    %v53 = vld [vmem:[%s3 + $0x30] sm:$0xff]
    %v54 = vld [vmem:[%s3 + $0x38] sm:$0xff]
    %v55 = vld [vmem:[%s4] sm:$0x3]
    %v56 = vpack.c.bf16 %v41, %v40
    %v58 = vlaneseq
    %v59 = vshrl.u32 %v58, 7
    %v60 = vsub.s32 0, %v59
    %v61 = vrot.slane %v46, %v60
    %v62 = vlaneseq
    %v63 = vshrl.u32 %v62, 7
    %v64 = vsub.s32 1, %v63
    %v65 = vrot.slane %v46, %v64
    %v72 = vunpack.c.l.b16 %v42
    %v73 = vunpack.c.h.b16 %v42
    %v74 = vunpack.c.l.b16 %v43
    %v75 = vunpack.c.h.b16 %v43
    %v76 = vunpack.c.l.b16 %v44
    %v77 = vunpack.c.h.b16 %v44
    %v78 = vunpack.c.l.b16 %v45
    %v79 = vunpack.c.h.b16 %v45
    %v80 = vpack.c.b16 %v74, %v72
    %v81 = vpack.c.b16 %v75, %v73
    %v82 = vpack.c.b16 %v78, %v76
    %v83 = vpack.c.b16 %v79, %v77
    %vm88 = vcmask 261120
    %v90 = vsel %vm88, %v56, 0
    %92 = vmatprep.subr.bf16.mxu0 0
    %93 = vmatpush1.bf16.msra.mxu0 0
    %94 = vmatprep.subr.bf16.mxu0 0
    %95 = vmatpush1.bf16.msra.mxu0 0
    %96 = vmatprep.subr.bf16.mxu0 0
    %97 = vmatpush1.bf16.msra.mxu0 0
    %98 = vmatprep.subr.bf16.mxu0 0
    %99 = vmatpush1.bf16.msra.mxu0 0
    %100 = vmatprep.subr.bf16.mxu0 0
    %101 = vmatpush1.bf16.msra.mxu0 0
    %102 = vmatprep.subr.bf16.mxu0 0
    %103 = vmatpush1.bf16.msra.mxu0 0
    %104 = vmatprep.subr.bf16.mxu0 %v83
    %105 = vmatpush1.bf16.msra.mxu0 %v82
    %106 = vmatprep.subr.bf16.mxu0 %v81
    %107 = vmatpush1.bf16.msra.mxu0 %v80
    %108 = vmatprep.subr.bf16.mxu0 0
    %109 = vmatpush2.bf16.msra.mxu0 0
    %110 = vmatprep.subr.bf16.mxu0 0
    %111 = vmatpush2.bf16.msra.mxu0 0
    %112 = vmatprep.subr.bf16.mxu0 0
    %113 = vmatpush2.bf16.msra.mxu0 0
    %114 = vmatprep.subr.bf16.mxu0 0
    %115 = vmatpush2.bf16.msra.mxu0 0
    %116 = vmatprep.subr.bf16.mxu0 0
    %117 = vmatpush2.bf16.msra.mxu0 0
    %118 = vmatprep.subr.bf16.mxu0 0
    %119 = vmatpush2.bf16.msra.mxu0 0
    %120 = vmatprep.subr.bf16.mxu0 0
    %121 = vmatpush2.bf16.msra.mxu0 0
    %122 = vmatprep.subr.bf16.mxu0 0
    %123 = vmatpush2.bf16.msra.mxu0 0
    %124 = vmatprep.mubr.bf16.mxu0 0
    %125 = vmatmul.mubr.bf16.gmra.mxu0 %v90
    %v126 = vpop.f32.mrf.mxu0
    %v127 = vadd.f32 %v61, %v126
    %v128 = vpop.f32.mrf.mxu0
    %v129 = vadd.f32 %v65, %v128
    %v130 = vpop.f32.mrf.mxu0
    %v131 = vadd.f32 %v61, %v130
    %v132 = vpop.f32.mrf.mxu0
    %v133 = vadd.f32 %v65, %v132
    %134 = vdwg.mxu0
    %v136 = vrot.slane %v131, 6
    %137 = vrot.lane.b32.xlu0 %v136, 64
    %v138 = vpop.permute.xlu0 %137
    %141 = vrot.lane.b32.xlu0 %v127, 32
    %v142 = vpop.permute.xlu0 %141
    %v145 = vrot.slane %v133, 6
    %146 = vrot.lane.b32.xlu0 %v145, 96
    %v147 = vpop.permute.xlu0 %146
    %149 = vrot.lane.b32.xlu0 %v127, 64
    %v150 = vpop.permute.xlu0 %149
    %v153 = vsel %vm88, %v127, %v138
    %vm154 = vcmask 523264
    %v155 = vsel %vm154, %v153, %v142
    %vm156 = vcmask 785408
    %v157 = vsel %vm156, %v155, %v147
    %v158 = vsel %vm88, %v150, %v145
    %v159 = vrot.slane %v131, 2
    %160 = vrot.lane.b32.xlu0 %v159, 64
    %v161 = vpop.permute.xlu0 %160
    %v163 = vrot.slane %v133, 2
    %164 = vrot.lane.b32.xlu0 %v163, 96
    %v165 = vpop.permute.xlu0 %164
    %v168 = vsel %vm88, %v127, %v161
    %v169 = vsel %vm154, %v168, %v142
    %v170 = vsel %vm156, %v169, %v165
    %v171 = vsel %vm88, %v150, %v163
    %v172 = vrot.slane %v127, 6
    %173 = vrot.lane.b32.xlu0 %v172, 64
    %v174 = vpop.permute.xlu0 %173
    %176 = vrot.lane.b32.xlu0 %v131, 32
    %v177 = vpop.permute.xlu0 %176
    %v180 = vrot.slane %v129, 6
    %181 = vrot.lane.b32.xlu0 %v180, 96
    %v182 = vpop.permute.xlu0 %181
    %184 = vrot.lane.b32.xlu0 %v131, 64
    %v185 = vpop.permute.xlu0 %184
    %v188 = vsel %vm88, %v131, %v174
    %v189 = vsel %vm154, %v188, %v177
    %v190 = vsel %vm156, %v189, %v182
    %v191 = vsel %vm88, %v185, %v180
    %v192 = vrot.slane %v127, 2
    %193 = vrot.lane.b32.xlu0 %v192, 64
    %v194 = vpop.permute.xlu0 %193
    %v196 = vrot.slane %v129, 2
    %197 = vrot.lane.b32.xlu0 %v196, 96
    %v198 = vpop.permute.xlu0 %197
    %v201 = vsel %vm88, %v131, %v194
    %v202 = vsel %vm154, %v201, %v177
    %v203 = vsel %vm156, %v202, %v198
    %v204 = vsel %vm88, %v185, %v196
    %v206 = vlaneseq
    %v207 = vshrl.u32 %v206, 7
    %v208 = vsub.s32 0, %v207
    %v209 = vrot.slane %v55, %v208
    %v210 = vlaneseq
    %v211 = vshrl.u32 %v210, 7
    %v212 = vsub.s32 1, %v211
    %v213 = vrot.slane %v55, %v212
    %v224 = vunpack.c.l.b16 %v47
    %v225 = vunpack.c.h.b16 %v47
    %v226 = vunpack.c.l.b16 %v48
    %v227 = vunpack.c.h.b16 %v48
    %v228 = vunpack.c.l.b16 %v49
    %v229 = vunpack.c.h.b16 %v49
    %v230 = vunpack.c.l.b16 %v50
    %v231 = vunpack.c.h.b16 %v50
    %v232 = vunpack.c.l.b16 %v51
    %v233 = vunpack.c.h.b16 %v51
    %v234 = vunpack.c.l.b16 %v52
    %v235 = vunpack.c.h.b16 %v52
    %v236 = vunpack.c.l.b16 %v53
    %v237 = vunpack.c.h.b16 %v53
    %v238 = vunpack.c.l.b16 %v54
    %v239 = vunpack.c.h.b16 %v54
    %v240 = vpack.c.b16 %v226, %v224
    %v241 = vpack.c.b16 %v227, %v225
    %v242 = vpack.c.b16 %v230, %v228
    %v243 = vpack.c.b16 %v231, %v229
    %v244 = vpack.c.b16 %v234, %v232
    %v245 = vpack.c.b16 %v235, %v233
    %v246 = vpack.c.b16 %v238, %v236
    %v247 = vpack.c.b16 %v239, %v237
    %v257 = vsel %vm154, 0, 0
    %259 = vmatprep.subr.bf16.mxu0 0
    %260 = vmatpush1.bf16.msra.mxu0 0
    %261 = vmatprep.subr.bf16.mxu0 0
    %262 = vmatpush1.bf16.msra.mxu0 0
    %263 = vmatprep.subr.bf16.mxu0 0
    %264 = vmatpush1.bf16.msra.mxu0 0
    %265 = vmatprep.subr.bf16.mxu0 0
    %266 = vmatpush1.bf16.msra.mxu0 0
    %267 = vmatprep.subr.bf16.mxu0 %v247
    %268 = vmatpush1.bf16.msra.mxu0 %v246
    %269 = vmatprep.subr.bf16.mxu0 %v245
    %270 = vmatpush1.bf16.msra.mxu0 %v244
    %271 = vmatprep.subr.bf16.mxu0 %v243
    %272 = vmatpush1.bf16.msra.mxu0 %v242
    %273 = vmatprep.subr.bf16.mxu0 %v241
    %274 = vmatpush1.bf16.msra.mxu0 %v240
    %275 = vmatprep.subr.bf16.mxu0 0
    %276 = vmatpush2.bf16.msra.mxu0 0
    %277 = vmatprep.subr.bf16.mxu0 0
    %278 = vmatpush2.bf16.msra.mxu0 0
    %279 = vmatprep.subr.bf16.mxu0 0
    %280 = vmatpush2.bf16.msra.mxu0 0
    %281 = vmatprep.subr.bf16.mxu0 0
    %282 = vmatpush2.bf16.msra.mxu0 0
    %283 = vmatprep.subr.bf16.mxu0 0
    %284 = vmatpush2.bf16.msra.mxu0 0
    %285 = vmatprep.subr.bf16.mxu0 0
    %286 = vmatpush2.bf16.msra.mxu0 0
    %287 = vmatprep.subr.bf16.mxu0 0
    %288 = vmatpush2.bf16.msra.mxu0 0
    %289 = vmatprep.subr.bf16.mxu0 0
    %290 = vmatpush2.bf16.msra.mxu0 0
    %291 = vmatprep.mubr.bf16.mxu0 0
    %292 = vmatmul.mubr.bf16.gmra.mxu0 %v257
    %v293 = vpop.f32.mrf.mxu0
    %v294 = vadd.f32 %v209, %v293
    %v295 = vpop.f32.mrf.mxu0
    %v296 = vadd.f32 %v213, %v295
    %v297 = vpop.f32.mrf.mxu0
    %v298 = vpop.f32.mrf.mxu0
    %299 = vdwg.mxu0
    %v300 = vadd.f32 %v157, %v294
    %v301 = vxor.u32 %v300, 2147483648
    %v302 = vmul.f32 %v301, 1.442695
    %v303 = vpow.pop %v302
    %v304 = vadd.f32 %v303, 1.0
    %v305 = vrcp.pop %v304
    %v306 = vmul.f32 1.0, %v305
    %v307 = vmul.f32 %v306, %v296
    %v308 = vadd.f32 %v158, %v307
    %v309 = vtanh.pop %v308
    %v310 = vsub.f32 1.0, %v306
    %312 = vrot.lane.b32.xlu0 %v309, 64
    %v313 = vpop.permute.xlu0 %312
    %v315 = vmul.f32 %v310, %v313
    %v316 = vmul.f32 %v306, 0.0
    %v317 = vadd.f32 %v315, %v316
    %v318 = vpack.c.bf16 %v317, %v317
    %320 = vrot.lane.b32.xlu0 %v318, 64
    %v321 = vpop.permute.xlu0 %320
    %v323 = vsel %vm154, %v321, 0
    %325 = vmatprep.subr.bf16.mxu0 0
    %326 = vmatpush1.bf16.msra.mxu0 0
    %327 = vmatprep.subr.bf16.mxu0 0
    %328 = vmatpush1.bf16.msra.mxu0 0
    %329 = vmatprep.subr.bf16.mxu0 0
    %330 = vmatpush1.bf16.msra.mxu0 0
    %331 = vmatprep.subr.bf16.mxu0 0
    %332 = vmatpush1.bf16.msra.mxu0 0
    %333 = vmatprep.subr.bf16.mxu0 %v247
    %334 = vmatpush1.bf16.msra.mxu0 %v246
    %335 = vmatprep.subr.bf16.mxu0 %v245
    %336 = vmatpush1.bf16.msra.mxu0 %v244
    %337 = vmatprep.subr.bf16.mxu0 %v243
    %338 = vmatpush1.bf16.msra.mxu0 %v242
    %339 = vmatprep.subr.bf16.mxu0 %v241
    %340 = vmatpush1.bf16.msra.mxu0 %v240
    %341 = vmatprep.subr.bf16.mxu0 0
    %342 = vmatpush2.bf16.msra.mxu0 0
    %343 = vmatprep.subr.bf16.mxu0 0
    %344 = vmatpush2.bf16.msra.mxu0 0
    %345 = vmatprep.subr.bf16.mxu0 0
    %346 = vmatpush2.bf16.msra.mxu0 0
    %347 = vmatprep.subr.bf16.mxu0 0
    %348 = vmatpush2.bf16.msra.mxu0 0
    %349 = vmatprep.subr.bf16.mxu0 0
    %350 = vmatpush2.bf16.msra.mxu0 0
    %351 = vmatprep.subr.bf16.mxu0 0
    %352 = vmatpush2.bf16.msra.mxu0 0
    %353 = vmatprep.subr.bf16.mxu0 0
    %354 = vmatpush2.bf16.msra.mxu0 0
    %355 = vmatprep.subr.bf16.mxu0 0
    %356 = vmatpush2.bf16.msra.mxu0 0
    %357 = vmatprep.mubr.bf16.mxu0 0
    %358 = vmatmul.mubr.bf16.gmra.mxu0 %v323
    %v359 = vpop.f32.mrf.mxu0
    %v360 = vadd.f32 %v209, %v359
    %v361 = vpop.f32.mrf.mxu0
    %v362 = vadd.f32 %v213, %v361
    %v363 = vpop.f32.mrf.mxu0
    %v364 = vpop.f32.mrf.mxu0
    %365 = vdwg.mxu0
    %v367 = vrot.slane %v360, 6
    %v369 = vadd.f32 %v170, %v367
    %v370 = vxor.u32 %v369, 2147483648
    %v371 = vmul.f32 %v370, 1.442695
    %v372 = vpow.pop %v371
    %v373 = vadd.f32 %v372, 1.0
    %v374 = vrcp.pop %v373
    %v375 = vmul.f32 1.0, %v374
    %v377 = vrot.slane %v362, 6
    %v379 = vmul.f32 %v375, %v377
    %v380 = vadd.f32 %v171, %v379
    %v381 = vtanh.pop %v380
    %v382 = vsub.f32 1.0, %v375
    %384 = vrot.lane.b32.xlu0 %v381, 64
    %v385 = vpop.permute.xlu0 %384
    %v387 = vmul.f32 %v382, %v385
    %v389 = vrot.slane %v317, 6
    %v391 = vmul.f32 %v375, %v389
    %v392 = vadd.f32 %v387, %v391
    %v393 = vpack.c.bf16 %v392, %v392
    %v395 = vrot.slane %v393, 1
    %396 = vrot.lane.b32.xlu0 %v395, 64
    %v397 = vpop.permute.xlu0 %396
    %v399 = vsel %vm154, %v397, 0
    %401 = vmatprep.subr.bf16.mxu0 0
    %402 = vmatpush1.bf16.msra.mxu0 0
    %403 = vmatprep.subr.bf16.mxu0 0
    %404 = vmatpush1.bf16.msra.mxu0 0
    %405 = vmatprep.subr.bf16.mxu0 0
    %406 = vmatpush1.bf16.msra.mxu0 0
    %407 = vmatprep.subr.bf16.mxu0 0
    %408 = vmatpush1.bf16.msra.mxu0 0
    %409 = vmatprep.subr.bf16.mxu0 %v247
    %410 = vmatpush1.bf16.msra.mxu0 %v246
    %411 = vmatprep.subr.bf16.mxu0 %v245
    %412 = vmatpush1.bf16.msra.mxu0 %v244
    %413 = vmatprep.subr.bf16.mxu0 %v243
    %414 = vmatpush1.bf16.msra.mxu0 %v242
    %415 = vmatprep.subr.bf16.mxu0 %v241
    %416 = vmatpush1.bf16.msra.mxu0 %v240
    %417 = vmatprep.subr.bf16.mxu0 0
    %418 = vmatpush2.bf16.msra.mxu0 0
    %419 = vmatprep.subr.bf16.mxu0 0
    %420 = vmatpush2.bf16.msra.mxu0 0
    %421 = vmatprep.subr.bf16.mxu0 0
    %422 = vmatpush2.bf16.msra.mxu0 0
    %423 = vmatprep.subr.bf16.mxu0 0
    %424 = vmatpush2.bf16.msra.mxu0 0
    %425 = vmatprep.subr.bf16.mxu0 0
    %426 = vmatpush2.bf16.msra.mxu0 0
    %427 = vmatprep.subr.bf16.mxu0 0
    %428 = vmatpush2.bf16.msra.mxu0 0
    %429 = vmatprep.subr.bf16.mxu0 0
    %430 = vmatpush2.bf16.msra.mxu0 0
    %431 = vmatprep.subr.bf16.mxu0 0
    %432 = vmatpush2.bf16.msra.mxu0 0
    %433 = vmatprep.mubr.bf16.mxu0 0
    %434 = vmatmul.mubr.bf16.gmra.mxu0 %v399
    %v435 = vpop.f32.mrf.mxu0
    %v436 = vadd.f32 %v209, %v435
    %v437 = vpop.f32.mrf.mxu0
    %v438 = vadd.f32 %v213, %v437
    %v439 = vpop.f32.mrf.mxu0
    %v440 = vpop.f32.mrf.mxu0
    %441 = vdwg.mxu0
    %v443 = vrot.slane %v436, 4
    %v445 = vadd.f32 %v157, %v443
    %v446 = vxor.u32 %v445, 2147483648
    %v447 = vmul.f32 %v446, 1.442695
    %v448 = vpow.pop %v447
    %v449 = vadd.f32 %v448, 1.0
    %v450 = vrcp.pop %v449
    %v451 = vmul.f32 1.0, %v450
    %v453 = vrot.slane %v438, 4
    %v455 = vmul.f32 %v451, %v453
    %v456 = vadd.f32 %v158, %v455
    %v457 = vtanh.pop %v456
    %v458 = vsub.f32 1.0, %v451
    %460 = vrot.lane.b32.xlu0 %v457, 64
    %v461 = vpop.permute.xlu0 %460
    %v463 = vmul.f32 %v458, %v461
    %v465 = vrot.slane %v392, 6
    %v467 = vmul.f32 %v451, %v465
    %v468 = vadd.f32 %v463, %v467
    %v469 = vpack.c.bf16 %v468, %v468
    %v471 = vrot.slane %v469, 2
    %472 = vrot.lane.b32.xlu0 %v471, 64
    %v473 = vpop.permute.xlu0 %472
    %v475 = vsel %vm154, %v473, 0
    %477 = vmatprep.subr.bf16.mxu0 0
    %478 = vmatpush1.bf16.msra.mxu0 0
    %479 = vmatprep.subr.bf16.mxu0 0
    %480 = vmatpush1.bf16.msra.mxu0 0
    %481 = vmatprep.subr.bf16.mxu0 0
    %482 = vmatpush1.bf16.msra.mxu0 0
    %483 = vmatprep.subr.bf16.mxu0 0
    %484 = vmatpush1.bf16.msra.mxu0 0
    %485 = vmatprep.subr.bf16.mxu0 %v247
    %486 = vmatpush1.bf16.msra.mxu0 %v246
    %487 = vmatprep.subr.bf16.mxu0 %v245
    %488 = vmatpush1.bf16.msra.mxu0 %v244
    %489 = vmatprep.subr.bf16.mxu0 %v243
    %490 = vmatpush1.bf16.msra.mxu0 %v242
    %491 = vmatprep.subr.bf16.mxu0 %v241
    %492 = vmatpush1.bf16.msra.mxu0 %v240
    %493 = vmatprep.subr.bf16.mxu0 0
    %494 = vmatpush2.bf16.msra.mxu0 0
    %495 = vmatprep.subr.bf16.mxu0 0
    %496 = vmatpush2.bf16.msra.mxu0 0
    %497 = vmatprep.subr.bf16.mxu0 0
    %498 = vmatpush2.bf16.msra.mxu0 0
    %499 = vmatprep.subr.bf16.mxu0 0
    %500 = vmatpush2.bf16.msra.mxu0 0
    %501 = vmatprep.subr.bf16.mxu0 0
    %502 = vmatpush2.bf16.msra.mxu0 0
    %503 = vmatprep.subr.bf16.mxu0 0
    %504 = vmatpush2.bf16.msra.mxu0 0
    %505 = vmatprep.subr.bf16.mxu0 0
    %506 = vmatpush2.bf16.msra.mxu0 0
    %507 = vmatprep.subr.bf16.mxu0 0
    %508 = vmatpush2.bf16.msra.mxu0 0
    %509 = vmatprep.mubr.bf16.mxu0 0
    %510 = vmatmul.mubr.bf16.gmra.mxu0 %v475
    %v511 = vpop.f32.mrf.mxu0
    %v512 = vadd.f32 %v209, %v511
    %v513 = vpop.f32.mrf.mxu0
    %v514 = vadd.f32 %v213, %v513
    %v515 = vpop.f32.mrf.mxu0
    %v516 = vpop.f32.mrf.mxu0
    %517 = vdwg.mxu0
    %v519 = vrot.slane %v512, 2
    %v521 = vadd.f32 %v170, %v519
    %v522 = vxor.u32 %v521, 2147483648
    %v523 = vmul.f32 %v522, 1.442695
    %v524 = vpow.pop %v523
    %v525 = vadd.f32 %v524, 1.0
    %v526 = vrcp.pop %v525
    %v527 = vmul.f32 1.0, %v526
    %v529 = vrot.slane %v514, 2
    %v531 = vmul.f32 %v527, %v529
    %v532 = vadd.f32 %v171, %v531
    %v533 = vtanh.pop %v532
    %v534 = vsub.f32 1.0, %v527
    %536 = vrot.lane.b32.xlu0 %v533, 64
    %v537 = vpop.permute.xlu0 %536
    %v539 = vmul.f32 %v534, %v537
    %v541 = vrot.slane %v468, 6
    %v543 = vmul.f32 %v527, %v541
    %v544 = vadd.f32 %v539, %v543
    %v545 = vpack.c.bf16 %v544, %v544
    %v547 = vrot.slane %v545, 3
    %548 = vrot.lane.b32.xlu0 %v547, 64
    %v549 = vpop.permute.xlu0 %548
    %v551 = vsel %vm154, %v549, 0
    %553 = vmatprep.subr.bf16.mxu0 0
    %554 = vmatpush1.bf16.msra.mxu0 0
    %555 = vmatprep.subr.bf16.mxu0 0
    %556 = vmatpush1.bf16.msra.mxu0 0
    %557 = vmatprep.subr.bf16.mxu0 0
    %558 = vmatpush1.bf16.msra.mxu0 0
    %559 = vmatprep.subr.bf16.mxu0 0
    %560 = vmatpush1.bf16.msra.mxu0 0
    %561 = vmatprep.subr.bf16.mxu0 %v247
    %562 = vmatpush1.bf16.msra.mxu0 %v246
    %563 = vmatprep.subr.bf16.mxu0 %v245
    %564 = vmatpush1.bf16.msra.mxu0 %v244
    %565 = vmatprep.subr.bf16.mxu0 %v243
    %566 = vmatpush1.bf16.msra.mxu0 %v242
    %567 = vmatprep.subr.bf16.mxu0 %v241
    %568 = vmatpush1.bf16.msra.mxu0 %v240
    %569 = vmatprep.subr.bf16.mxu0 0
    %570 = vmatpush2.bf16.msra.mxu0 0
    %571 = vmatprep.subr.bf16.mxu0 0
    %572 = vmatpush2.bf16.msra.mxu0 0
    %573 = vmatprep.subr.bf16.mxu0 0
    %574 = vmatpush2.bf16.msra.mxu0 0
    %575 = vmatprep.subr.bf16.mxu0 0
    %576 = vmatpush2.bf16.msra.mxu0 0
    %577 = vmatprep.subr.bf16.mxu0 0
    %578 = vmatpush2.bf16.msra.mxu0 0
    %579 = vmatprep.subr.bf16.mxu0 0
    %580 = vmatpush2.bf16.msra.mxu0 0
    %581 = vmatprep.subr.bf16.mxu0 0
    %582 = vmatpush2.bf16.msra.mxu0 0
    %583 = vmatprep.subr.bf16.mxu0 0
    %584 = vmatpush2.bf16.msra.mxu0 0
    %585 = vmatprep.mubr.bf16.mxu0 0
    %586 = vmatmul.mubr.bf16.gmra.mxu0 %v551
    %v587 = vpop.f32.mrf.mxu0
    %v588 = vadd.f32 %v209, %v587
    %v589 = vpop.f32.mrf.mxu0
    %v590 = vadd.f32 %v213, %v589
    %v591 = vpop.f32.mrf.mxu0
    %v592 = vpop.f32.mrf.mxu0
    %593 = vdwg.mxu0
    %v594 = vadd.f32 %v190, %v588
    %v595 = vxor.u32 %v594, 2147483648
    %v596 = vmul.f32 %v595, 1.442695
    %v597 = vpow.pop %v596
    %v598 = vadd.f32 %v597, 1.0
    %v599 = vrcp.pop %v598
    %v600 = vmul.f32 1.0, %v599
    %v601 = vmul.f32 %v600, %v590
    %v602 = vadd.f32 %v191, %v601
    %v603 = vtanh.pop %v602
    %v604 = vsub.f32 1.0, %v600
    %606 = vrot.lane.b32.xlu0 %v603, 64
    %v607 = vpop.permute.xlu0 %606
    %v609 = vmul.f32 %v604, %v607
    %v611 = vrot.slane %v544, 6
    %v613 = vmul.f32 %v600, %v611
    %v614 = vadd.f32 %v609, %v613
    %v615 = vpack.c.bf16 %v614, %v614
    %617 = vrot.lane.b32.xlu0 %v615, 64
    %v618 = vpop.permute.xlu0 %617
    %v620 = vsel %vm154, %v618, 0
    %622 = vmatprep.subr.bf16.mxu0 0
    %623 = vmatpush1.bf16.msra.mxu0 0
    %624 = vmatprep.subr.bf16.mxu0 0
    %625 = vmatpush1.bf16.msra.mxu0 0
    %626 = vmatprep.subr.bf16.mxu0 0
    %627 = vmatpush1.bf16.msra.mxu0 0
    %628 = vmatprep.subr.bf16.mxu0 0
    %629 = vmatpush1.bf16.msra.mxu0 0
    %630 = vmatprep.subr.bf16.mxu0 %v247
    %631 = vmatpush1.bf16.msra.mxu0 %v246
    %632 = vmatprep.subr.bf16.mxu0 %v245
    %633 = vmatpush1.bf16.msra.mxu0 %v244
    %634 = vmatprep.subr.bf16.mxu0 %v243
    %635 = vmatpush1.bf16.msra.mxu0 %v242
    %636 = vmatprep.subr.bf16.mxu0 %v241
    %637 = vmatpush1.bf16.msra.mxu0 %v240
    %638 = vmatprep.subr.bf16.mxu0 0
    %639 = vmatpush2.bf16.msra.mxu0 0
    %640 = vmatprep.subr.bf16.mxu0 0
    %641 = vmatpush2.bf16.msra.mxu0 0
    %642 = vmatprep.subr.bf16.mxu0 0
    %643 = vmatpush2.bf16.msra.mxu0 0
    %644 = vmatprep.subr.bf16.mxu0 0
    %645 = vmatpush2.bf16.msra.mxu0 0
    %646 = vmatprep.subr.bf16.mxu0 0
    %647 = vmatpush2.bf16.msra.mxu0 0
    %648 = vmatprep.subr.bf16.mxu0 0
    %649 = vmatpush2.bf16.msra.mxu0 0
    %650 = vmatprep.subr.bf16.mxu0 0
    %651 = vmatpush2.bf16.msra.mxu0 0
    %652 = vmatprep.subr.bf16.mxu0 0
    %653 = vmatpush2.bf16.msra.mxu0 0
    %654 = vmatprep.mubr.bf16.mxu0 0
    %655 = vmatmul.mubr.bf16.gmra.mxu0 %v620
    %v656 = vpop.f32.mrf.mxu0
    %v657 = vadd.f32 %v209, %v656
    %v658 = vpop.f32.mrf.mxu0
    %v659 = vadd.f32 %v213, %v658
    %v660 = vpop.f32.mrf.mxu0
    %v661 = vpop.f32.mrf.mxu0
    %662 = vdwg.mxu0
    %v664 = vrot.slane %v657, 6
    %v666 = vadd.f32 %v203, %v664
    %v667 = vxor.u32 %v666, 2147483648
    %v668 = vmul.f32 %v667, 1.442695
    %v669 = vpow.pop %v668
    %v670 = vadd.f32 %v669, 1.0
    %v671 = vrcp.pop %v670
    %v672 = vmul.f32 1.0, %v671
    %v674 = vrot.slane %v659, 6
    %v676 = vmul.f32 %v672, %v674
    %v677 = vadd.f32 %v204, %v676
    %v678 = vtanh.pop %v677
    %v679 = vsub.f32 1.0, %v672
    %681 = vrot.lane.b32.xlu0 %v678, 64
    %v682 = vpop.permute.xlu0 %681
    %v684 = vmul.f32 %v679, %v682
    %v686 = vrot.slane %v614, 6
    %v688 = vmul.f32 %v672, %v686
    %v689 = vadd.f32 %v684, %v688
    %v690 = vpack.c.bf16 %v689, %v689
    %v692 = vrot.slane %v690, 1
    %693 = vrot.lane.b32.xlu0 %v692, 64
    %v694 = vpop.permute.xlu0 %693
    %v696 = vsel %vm154, %v694, 0
    %698 = vmatprep.subr.bf16.mxu0 0
    %699 = vmatpush1.bf16.msra.mxu0 0
    %700 = vmatprep.subr.bf16.mxu0 0
    %701 = vmatpush1.bf16.msra.mxu0 0
    %702 = vmatprep.subr.bf16.mxu0 0
    %703 = vmatpush1.bf16.msra.mxu0 0
    %704 = vmatprep.subr.bf16.mxu0 0
    %705 = vmatpush1.bf16.msra.mxu0 0
    %706 = vmatprep.subr.bf16.mxu0 %v247
    %707 = vmatpush1.bf16.msra.mxu0 %v246
    %708 = vmatprep.subr.bf16.mxu0 %v245
    %709 = vmatpush1.bf16.msra.mxu0 %v244
    %710 = vmatprep.subr.bf16.mxu0 %v243
    %711 = vmatpush1.bf16.msra.mxu0 %v242
    %712 = vmatprep.subr.bf16.mxu0 %v241
    %713 = vmatpush1.bf16.msra.mxu0 %v240
    %714 = vmatprep.subr.bf16.mxu0 0
    %715 = vmatpush2.bf16.msra.mxu0 0
    %716 = vmatprep.subr.bf16.mxu0 0
    %717 = vmatpush2.bf16.msra.mxu0 0
    %718 = vmatprep.subr.bf16.mxu0 0
    %719 = vmatpush2.bf16.msra.mxu0 0
    %720 = vmatprep.subr.bf16.mxu0 0
    %721 = vmatpush2.bf16.msra.mxu0 0
    %722 = vmatprep.subr.bf16.mxu0 0
    %723 = vmatpush2.bf16.msra.mxu0 0
    %724 = vmatprep.subr.bf16.mxu0 0
    %725 = vmatpush2.bf16.msra.mxu0 0
    %726 = vmatprep.subr.bf16.mxu0 0
    %727 = vmatpush2.bf16.msra.mxu0 0
    %728 = vmatprep.subr.bf16.mxu0 0
    %729 = vmatpush2.bf16.msra.mxu0 0
    %730 = vmatprep.mubr.bf16.mxu0 0
    %731 = vmatmul.mubr.bf16.gmra.mxu0 %v696
    %v732 = vpop.f32.mrf.mxu0
    %v733 = vadd.f32 %v209, %v732
    %v734 = vpop.f32.mrf.mxu0
    %v735 = vadd.f32 %v213, %v734
    %v736 = vpop.f32.mrf.mxu0
    %v737 = vpop.f32.mrf.mxu0
    %738 = vdwg.mxu0
    %v740 = vrot.slane %v733, 4
    %v742 = vadd.f32 %v190, %v740
    %v743 = vxor.u32 %v742, 2147483648
    %v744 = vmul.f32 %v743, 1.442695
    %v745 = vpow.pop %v744
    %v746 = vadd.f32 %v745, 1.0
    %v747 = vrcp.pop %v746
    %v748 = vmul.f32 1.0, %v747
    %v750 = vrot.slane %v735, 4
    %v752 = vmul.f32 %v748, %v750
    %v753 = vadd.f32 %v191, %v752
    %v754 = vtanh.pop %v753
    %v755 = vsub.f32 1.0, %v748
    %757 = vrot.lane.b32.xlu0 %v754, 64
    %v758 = vpop.permute.xlu0 %757
    %v760 = vmul.f32 %v755, %v758
    %v762 = vrot.slane %v689, 6
    %v764 = vmul.f32 %v748, %v762
    %v765 = vadd.f32 %v760, %v764
    %v766 = vpack.c.bf16 %v765, %v765
    %v768 = vrot.slane %v766, 2
    %769 = vrot.lane.b32.xlu0 %v768, 64
    %v770 = vpop.permute.xlu0 %769
    %v772 = vsel %vm154, %v770, 0
    %774 = vmatprep.subr.bf16.mxu0 0
    %775 = vmatpush1.bf16.msra.mxu0 0
    %776 = vmatprep.subr.bf16.mxu0 0
    %777 = vmatpush1.bf16.msra.mxu0 0
    %778 = vmatprep.subr.bf16.mxu0 0
    %779 = vmatpush1.bf16.msra.mxu0 0
    %780 = vmatprep.subr.bf16.mxu0 0
    %781 = vmatpush1.bf16.msra.mxu0 0
    %782 = vmatprep.subr.bf16.mxu0 %v247
    %783 = vmatpush1.bf16.msra.mxu0 %v246
    %784 = vmatprep.subr.bf16.mxu0 %v245
    %785 = vmatpush1.bf16.msra.mxu0 %v244
    %786 = vmatprep.subr.bf16.mxu0 %v243
    %787 = vmatpush1.bf16.msra.mxu0 %v242
    %788 = vmatprep.subr.bf16.mxu0 %v241
    %789 = vmatpush1.bf16.msra.mxu0 %v240
    %790 = vmatprep.subr.bf16.mxu0 0
    %791 = vmatpush2.bf16.msra.mxu0 0
    %792 = vmatprep.subr.bf16.mxu0 0
    %793 = vmatpush2.bf16.msra.mxu0 0
    %794 = vmatprep.subr.bf16.mxu0 0
    %795 = vmatpush2.bf16.msra.mxu0 0
    %796 = vmatprep.subr.bf16.mxu0 0
    %797 = vmatpush2.bf16.msra.mxu0 0
    %798 = vmatprep.subr.bf16.mxu0 0
    %799 = vmatpush2.bf16.msra.mxu0 0
    %800 = vmatprep.subr.bf16.mxu0 0
    %801 = vmatpush2.bf16.msra.mxu0 0
    %802 = vmatprep.subr.bf16.mxu0 0
    %803 = vmatpush2.bf16.msra.mxu0 0
    %804 = vmatprep.subr.bf16.mxu0 0
    %805 = vmatpush2.bf16.msra.mxu0 0
    %806 = vmatprep.mubr.bf16.mxu0 0
    %807 = vmatmul.mubr.bf16.gmra.mxu0 %v772
    %v808 = vpop.f32.mrf.mxu0
    %v809 = vadd.f32 %v209, %v808
    %v810 = vpop.f32.mrf.mxu0
    %v811 = vadd.f32 %v213, %v810
    %v812 = vpop.f32.mrf.mxu0
    %v813 = vpop.f32.mrf.mxu0
    %814 = vdwg.mxu0
    %v816 = vrot.slane %v809, 2
    %v818 = vadd.f32 %v203, %v816
    %v819 = vxor.u32 %v818, 2147483648
    %v820 = vmul.f32 %v819, 1.442695
    %v821 = vpow.pop %v820
    %v822 = vadd.f32 %v821, 1.0
    %v823 = vrcp.pop %v822
    %v824 = vmul.f32 1.0, %v823
    %v826 = vrot.slane %v811, 2
    %v828 = vmul.f32 %v824, %v826
    %v829 = vadd.f32 %v204, %v828
    %v830 = vtanh.pop %v829
    %v831 = vsub.f32 1.0, %v824
    %833 = vrot.lane.b32.xlu0 %v830, 64
    %v834 = vpop.permute.xlu0 %833
    %v836 = vmul.f32 %v831, %v834
    %v838 = vrot.slane %v765, 6
    %v840 = vmul.f32 %v824, %v838
    %v841 = vadd.f32 %v836, %v840
    %842 = vrot.lane.b32.xlu0 %v317, 64
    %v843 = vpop.permute.xlu0 %842
    %v846 = vrot.slane %v841, 6
    %847 = vrot.lane.b32.xlu0 %v846, 64
    %v848 = vpop.permute.xlu0 %847
    %v850 = vsel %vm88, %v843, %v848
    %851 = vrot.lane.b32.xlu0 %v392, 64
    %v852 = vpop.permute.xlu0 %851
    %v854 = vrot.slane %v765, 2
    %855 = vrot.lane.b32.xlu0 %v854, 64
    %v856 = vpop.permute.xlu0 %855
    %v858 = vsel %vm88, %v852, %v856
    %859 = vrot.lane.b32.xlu0 %v468, 64
    %v860 = vpop.permute.xlu0 %859
    %862 = vrot.lane.b32.xlu0 %v762, 64
    %v863 = vpop.permute.xlu0 %862
    %v865 = vsel %vm88, %v860, %v863
    %866 = vrot.lane.b32.xlu0 %v544, 64
    %v867 = vpop.permute.xlu0 %866
    %v869 = vrot.slane %v614, 2
    %870 = vrot.lane.b32.xlu0 %v869, 64
    %v871 = vpop.permute.xlu0 %870
    %v873 = vsel %vm88, %v867, %v871
    %874 = vrot.lane.b32.xlu0 %v614, 64
    %v875 = vpop.permute.xlu0 %874
    %877 = vrot.lane.b32.xlu0 %v611, 64
    %v878 = vpop.permute.xlu0 %877
    %v880 = vsel %vm88, %v875, %v878
    %881 = vrot.lane.b32.xlu0 %v689, 64
    %v882 = vpop.permute.xlu0 %881
    %v884 = vrot.slane %v468, 2
    %885 = vrot.lane.b32.xlu0 %v884, 64
    %v886 = vpop.permute.xlu0 %885
    %v888 = vsel %vm88, %v882, %v886
    %889 = vrot.lane.b32.xlu0 %v765, 64
    %v890 = vpop.permute.xlu0 %889
    %892 = vrot.lane.b32.xlu0 %v465, 64
    %v893 = vpop.permute.xlu0 %892
    %v895 = vsel %vm88, %v890, %v893
    %896 = vrot.lane.b32.xlu0 %v841, 64
    %v897 = vpop.permute.xlu0 %896
    %v899 = vrot.slane %v317, 2
    %900 = vrot.lane.b32.xlu0 %v899, 64
    %v901 = vpop.permute.xlu0 %900
    %v903 = vsel %vm88, %v897, %v901
    %vm904 = vcmask 1041408
    %v905 = vsel %vm904, %v850, %v858
    %vm906 = vcmask 1043456
    %v907 = vsel %vm906, %v905, %v865
    %vm908 = vcmask 1045504
    %v909 = vsel %vm908, %v907, %v873
    %v910 = vsel %vm904, %v880, %v888
    %v911 = vsel %vm906, %v910, %v895
    %v912 = vsel %vm908, %v911, %v903
    %v913 = vld [vmem:[%s5] sm:$0xff]
    %v914 = vld [vmem:[%s5 + $0x8] sm:$0xff]
    %v915 = vld [vmem:[%s5 + $0x10] sm:$0xff]
    %v916 = vld [vmem:[%s5 + $0x18] sm:$0xff]
    %v917 = vld [vmem:[%s5 + $0x20] sm:$0xff]
    %v918 = vld [vmem:[%s5 + $0x28] sm:$0xff]
    %v919 = vld [vmem:[%s5 + $0x30] sm:$0xff]
    %v920 = vld [vmem:[%s5 + $0x38] sm:$0xff]
    %v921 = vld [vmem:[%s6] sm:$0x3]
    %v922 = vld [vmem:[%s7] sm:$0xff]
    %v923 = vld [vmem:[%s7 + $0x8] sm:$0xff]
    %v924 = vld [vmem:[%s7 + $0x10] sm:$0xff]
    %v925 = vld [vmem:[%s7 + $0x18] sm:$0xff]
    %v926 = vld [vmem:[%s7 + $0x20] sm:$0xff]
    %v927 = vld [vmem:[%s7 + $0x28] sm:$0xff]
    %v928 = vld [vmem:[%s7 + $0x30] sm:$0xff]
    %v929 = vld [vmem:[%s7 + $0x38] sm:$0xff]
    %v930 = vld [vmem:[%s8] sm:$0x3]
    %v931 = vpack.c.bf16 %v912, %v909
    %v933 = vlaneseq
    %v934 = vshrl.u32 %v933, 7
    %v935 = vsub.s32 0, %v934
    %v936 = vrot.slane %v921, %v935
    %v937 = vlaneseq
    %v938 = vshrl.u32 %v937, 7
    %v939 = vsub.s32 1, %v938
    %v940 = vrot.slane %v921, %v939
    %v951 = vunpack.c.l.b16 %v913
    %v952 = vunpack.c.h.b16 %v913
    %v953 = vunpack.c.l.b16 %v914
    %v954 = vunpack.c.h.b16 %v914
    %v955 = vunpack.c.l.b16 %v915
    %v956 = vunpack.c.h.b16 %v915
    %v957 = vunpack.c.l.b16 %v916
    %v958 = vunpack.c.h.b16 %v916
    %v959 = vunpack.c.l.b16 %v917
    %v960 = vunpack.c.h.b16 %v917
    %v961 = vunpack.c.l.b16 %v918
    %v962 = vunpack.c.h.b16 %v918
    %v963 = vunpack.c.l.b16 %v919
    %v964 = vunpack.c.h.b16 %v919
    %v965 = vunpack.c.l.b16 %v920
    %v966 = vunpack.c.h.b16 %v920
    %v967 = vpack.c.b16 %v953, %v951
    %v968 = vpack.c.b16 %v954, %v952
    %v969 = vpack.c.b16 %v957, %v955
    %v970 = vpack.c.b16 %v958, %v956
    %v971 = vpack.c.b16 %v961, %v959
    %v972 = vpack.c.b16 %v962, %v960
    %v973 = vpack.c.b16 %v965, %v963
    %v974 = vpack.c.b16 %v966, %v964
    %v984 = vsel %vm154, %v931, 0
    %986 = vmatprep.subr.bf16.mxu0 0
    %987 = vmatpush1.bf16.msra.mxu0 0
    %988 = vmatprep.subr.bf16.mxu0 0
    %989 = vmatpush1.bf16.msra.mxu0 0
    %990 = vmatprep.subr.bf16.mxu0 0
    %991 = vmatpush1.bf16.msra.mxu0 0
    %992 = vmatprep.subr.bf16.mxu0 0
    %993 = vmatpush1.bf16.msra.mxu0 0
    %994 = vmatprep.subr.bf16.mxu0 %v974
    %995 = vmatpush1.bf16.msra.mxu0 %v973
    %996 = vmatprep.subr.bf16.mxu0 %v972
    %997 = vmatpush1.bf16.msra.mxu0 %v971
    %998 = vmatprep.subr.bf16.mxu0 %v970
    %999 = vmatpush1.bf16.msra.mxu0 %v969
    %1000 = vmatprep.subr.bf16.mxu0 %v968
    %1001 = vmatpush1.bf16.msra.mxu0 %v967
    %1002 = vmatprep.subr.bf16.mxu0 0
    %1003 = vmatpush2.bf16.msra.mxu0 0
    %1004 = vmatprep.subr.bf16.mxu0 0
    %1005 = vmatpush2.bf16.msra.mxu0 0
    %1006 = vmatprep.subr.bf16.mxu0 0
    %1007 = vmatpush2.bf16.msra.mxu0 0
    %1008 = vmatprep.subr.bf16.mxu0 0
    %1009 = vmatpush2.bf16.msra.mxu0 0
    %1010 = vmatprep.subr.bf16.mxu0 0
    %1011 = vmatpush2.bf16.msra.mxu0 0
    %1012 = vmatprep.subr.bf16.mxu0 0
    %1013 = vmatpush2.bf16.msra.mxu0 0
    %1014 = vmatprep.subr.bf16.mxu0 0
    %1015 = vmatpush2.bf16.msra.mxu0 0
    %1016 = vmatprep.subr.bf16.mxu0 0
    %1017 = vmatpush2.bf16.msra.mxu0 0
    %1018 = vmatprep.mubr.bf16.mxu0 0
    %1019 = vmatmul.mubr.bf16.gmra.mxu0 %v984
    %v1020 = vpop.f32.mrf.mxu0
    %v1021 = vadd.f32 %v936, %v1020
    %v1022 = vpop.f32.mrf.mxu0
    %v1023 = vadd.f32 %v940, %v1022
    %v1024 = vpop.f32.mrf.mxu0
    %v1025 = vadd.f32 %v936, %v1024
    %v1026 = vpop.f32.mrf.mxu0
    %v1027 = vadd.f32 %v940, %v1026
    %1028 = vdwg.mxu0
    %v1030 = vrot.slane %v1025, 6
    %1031 = vrot.lane.b32.xlu0 %v1030, 64
    %v1032 = vpop.permute.xlu0 %1031
    %1035 = vrot.lane.b32.xlu0 %v1021, 32
    %v1036 = vpop.permute.xlu0 %1035
    %v1039 = vrot.slane %v1027, 6
    %1040 = vrot.lane.b32.xlu0 %v1039, 96
    %v1041 = vpop.permute.xlu0 %1040
    %1043 = vrot.lane.b32.xlu0 %v1021, 64
    %v1044 = vpop.permute.xlu0 %1043
    %v1047 = vsel %vm88, %v1021, %v1032
    %v1048 = vsel %vm154, %v1047, %v1036
    %v1049 = vsel %vm156, %v1048, %v1041
    %v1050 = vsel %vm88, %v1044, %v1039
    %v1051 = vrot.slane %v1025, 2
    %1052 = vrot.lane.b32.xlu0 %v1051, 64
    %v1053 = vpop.permute.xlu0 %1052
    %v1055 = vrot.slane %v1027, 2
    %1056 = vrot.lane.b32.xlu0 %v1055, 96
    %v1057 = vpop.permute.xlu0 %1056
    %v1060 = vsel %vm88, %v1021, %v1053
    %v1061 = vsel %vm154, %v1060, %v1036
    %v1062 = vsel %vm156, %v1061, %v1057
    %v1063 = vsel %vm88, %v1044, %v1055
    %v1064 = vrot.slane %v1021, 6
    %1065 = vrot.lane.b32.xlu0 %v1064, 64
    %v1066 = vpop.permute.xlu0 %1065
    %1068 = vrot.lane.b32.xlu0 %v1025, 32
    %v1069 = vpop.permute.xlu0 %1068
    %v1072 = vrot.slane %v1023, 6
    %1073 = vrot.lane.b32.xlu0 %v1072, 96
    %v1074 = vpop.permute.xlu0 %1073
    %1076 = vrot.lane.b32.xlu0 %v1025, 64
    %v1077 = vpop.permute.xlu0 %1076
    %v1080 = vsel %vm88, %v1025, %v1066
    %v1081 = vsel %vm154, %v1080, %v1069
    %v1082 = vsel %vm156, %v1081, %v1074
    %v1083 = vsel %vm88, %v1077, %v1072
    %v1084 = vrot.slane %v1021, 2
    %1085 = vrot.lane.b32.xlu0 %v1084, 64
    %v1086 = vpop.permute.xlu0 %1085
    %v1088 = vrot.slane %v1023, 2
    %1089 = vrot.lane.b32.xlu0 %v1088, 96
    %v1090 = vpop.permute.xlu0 %1089
    %v1093 = vsel %vm88, %v1025, %v1086
    %v1094 = vsel %vm154, %v1093, %v1069
    %v1095 = vsel %vm156, %v1094, %v1090
    %v1096 = vsel %vm88, %v1077, %v1088
    %v1098 = vlaneseq
    %v1099 = vshrl.u32 %v1098, 7
    %v1100 = vsub.s32 0, %v1099
    %v1101 = vrot.slane %v930, %v1100
    %v1102 = vlaneseq
    %v1103 = vshrl.u32 %v1102, 7
    %v1104 = vsub.s32 1, %v1103
    %v1105 = vrot.slane %v930, %v1104
    %v1116 = vunpack.c.l.b16 %v922
    %v1117 = vunpack.c.h.b16 %v922
    %v1118 = vunpack.c.l.b16 %v923
    %v1119 = vunpack.c.h.b16 %v923
    %v1120 = vunpack.c.l.b16 %v924
    %v1121 = vunpack.c.h.b16 %v924
    %v1122 = vunpack.c.l.b16 %v925
    %v1123 = vunpack.c.h.b16 %v925
    %v1124 = vunpack.c.l.b16 %v926
    %v1125 = vunpack.c.h.b16 %v926
    %v1126 = vunpack.c.l.b16 %v927
    %v1127 = vunpack.c.h.b16 %v927
    %v1128 = vunpack.c.l.b16 %v928
    %v1129 = vunpack.c.h.b16 %v928
    %v1130 = vunpack.c.l.b16 %v929
    %v1131 = vunpack.c.h.b16 %v929
    %v1132 = vpack.c.b16 %v1118, %v1116
    %v1133 = vpack.c.b16 %v1119, %v1117
    %v1134 = vpack.c.b16 %v1122, %v1120
    %v1135 = vpack.c.b16 %v1123, %v1121
    %v1136 = vpack.c.b16 %v1126, %v1124
    %v1137 = vpack.c.b16 %v1127, %v1125
    %v1138 = vpack.c.b16 %v1130, %v1128
    %v1139 = vpack.c.b16 %v1131, %v1129
    %1148 = vmatprep.subr.bf16.mxu0 0
    %1149 = vmatpush1.bf16.msra.mxu0 0
    %1150 = vmatprep.subr.bf16.mxu0 0
    %1151 = vmatpush1.bf16.msra.mxu0 0
    %1152 = vmatprep.subr.bf16.mxu0 0
    %1153 = vmatpush1.bf16.msra.mxu0 0
    %1154 = vmatprep.subr.bf16.mxu0 0
    %1155 = vmatpush1.bf16.msra.mxu0 0
    %1156 = vmatprep.subr.bf16.mxu0 %v1139
    %1157 = vmatpush1.bf16.msra.mxu0 %v1138
    %1158 = vmatprep.subr.bf16.mxu0 %v1137
    %1159 = vmatpush1.bf16.msra.mxu0 %v1136
    %1160 = vmatprep.subr.bf16.mxu0 %v1135
    %1161 = vmatpush1.bf16.msra.mxu0 %v1134
    %1162 = vmatprep.subr.bf16.mxu0 %v1133
    %1163 = vmatpush1.bf16.msra.mxu0 %v1132
    %1164 = vmatprep.subr.bf16.mxu0 0
    %1165 = vmatpush2.bf16.msra.mxu0 0
    %1166 = vmatprep.subr.bf16.mxu0 0
    %1167 = vmatpush2.bf16.msra.mxu0 0
    %1168 = vmatprep.subr.bf16.mxu0 0
    %1169 = vmatpush2.bf16.msra.mxu0 0
    %1170 = vmatprep.subr.bf16.mxu0 0
    %1171 = vmatpush2.bf16.msra.mxu0 0
    %1172 = vmatprep.subr.bf16.mxu0 0
    %1173 = vmatpush2.bf16.msra.mxu0 0
    %1174 = vmatprep.subr.bf16.mxu0 0
    %1175 = vmatpush2.bf16.msra.mxu0 0
    %1176 = vmatprep.subr.bf16.mxu0 0
    %1177 = vmatpush2.bf16.msra.mxu0 0
    %1178 = vmatprep.subr.bf16.mxu0 0
    %1179 = vmatpush2.bf16.msra.mxu0 0
    %1180 = vmatprep.mubr.bf16.mxu0 0
    %1181 = vmatmul.mubr.bf16.gmra.mxu0 %v257
    %v1182 = vpop.f32.mrf.mxu0
    %v1183 = vadd.f32 %v1101, %v1182
    %v1184 = vpop.f32.mrf.mxu0
    %v1185 = vadd.f32 %v1105, %v1184
    %v1186 = vpop.f32.mrf.mxu0
    %v1187 = vpop.f32.mrf.mxu0
    %1188 = vdwg.mxu0
    %v1189 = vadd.f32 %v1049, %v1183
    %v1190 = vxor.u32 %v1189, 2147483648
    %v1191 = vmul.f32 %v1190, 1.442695
    %v1192 = vpow.pop %v1191
    %v1193 = vadd.f32 %v1192, 1.0
    %v1194 = vrcp.pop %v1193
    %v1195 = vmul.f32 1.0, %v1194
    %v1196 = vmul.f32 %v1195, %v1185
    %v1197 = vadd.f32 %v1050, %v1196
    %v1198 = vtanh.pop %v1197
    %v1199 = vsub.f32 1.0, %v1195
    %1201 = vrot.lane.b32.xlu0 %v1198, 64
    %v1202 = vpop.permute.xlu0 %1201
    %v1204 = vmul.f32 %v1199, %v1202
    %v1205 = vmul.f32 %v1195, 0.0
    %v1206 = vadd.f32 %v1204, %v1205
    %v1207 = vpack.c.bf16 %v1206, %v1206
    %1209 = vrot.lane.b32.xlu0 %v1207, 64
    %v1210 = vpop.permute.xlu0 %1209
    %v1212 = vsel %vm154, %v1210, 0
    %1214 = vmatprep.subr.bf16.mxu0 0
    %1215 = vmatpush1.bf16.msra.mxu0 0
    %1216 = vmatprep.subr.bf16.mxu0 0
    %1217 = vmatpush1.bf16.msra.mxu0 0
    %1218 = vmatprep.subr.bf16.mxu0 0
    %1219 = vmatpush1.bf16.msra.mxu0 0
    %1220 = vmatprep.subr.bf16.mxu0 0
    %1221 = vmatpush1.bf16.msra.mxu0 0
    %1222 = vmatprep.subr.bf16.mxu0 %v1139
    %1223 = vmatpush1.bf16.msra.mxu0 %v1138
    %1224 = vmatprep.subr.bf16.mxu0 %v1137
    %1225 = vmatpush1.bf16.msra.mxu0 %v1136
    %1226 = vmatprep.subr.bf16.mxu0 %v1135
    %1227 = vmatpush1.bf16.msra.mxu0 %v1134
    %1228 = vmatprep.subr.bf16.mxu0 %v1133
    %1229 = vmatpush1.bf16.msra.mxu0 %v1132
    %1230 = vmatprep.subr.bf16.mxu0 0
    %1231 = vmatpush2.bf16.msra.mxu0 0
    %1232 = vmatprep.subr.bf16.mxu0 0
    %1233 = vmatpush2.bf16.msra.mxu0 0
    %1234 = vmatprep.subr.bf16.mxu0 0
    %1235 = vmatpush2.bf16.msra.mxu0 0
    %1236 = vmatprep.subr.bf16.mxu0 0
    %1237 = vmatpush2.bf16.msra.mxu0 0
    %1238 = vmatprep.subr.bf16.mxu0 0
    %1239 = vmatpush2.bf16.msra.mxu0 0
    %1240 = vmatprep.subr.bf16.mxu0 0
    %1241 = vmatpush2.bf16.msra.mxu0 0
    %1242 = vmatprep.subr.bf16.mxu0 0
    %1243 = vmatpush2.bf16.msra.mxu0 0
    %1244 = vmatprep.subr.bf16.mxu0 0
    %1245 = vmatpush2.bf16.msra.mxu0 0
    %1246 = vmatprep.mubr.bf16.mxu0 0
    %1247 = vmatmul.mubr.bf16.gmra.mxu0 %v1212
    %v1248 = vpop.f32.mrf.mxu0
    %v1249 = vadd.f32 %v1101, %v1248
    %v1250 = vpop.f32.mrf.mxu0
    %v1251 = vadd.f32 %v1105, %v1250
    %v1252 = vpop.f32.mrf.mxu0
    %v1253 = vpop.f32.mrf.mxu0
    %1254 = vdwg.mxu0
    %v1256 = vrot.slane %v1249, 6
    %v1258 = vadd.f32 %v1062, %v1256
    %v1259 = vxor.u32 %v1258, 2147483648
    %v1260 = vmul.f32 %v1259, 1.442695
    %v1261 = vpow.pop %v1260
    %v1262 = vadd.f32 %v1261, 1.0
    %v1263 = vrcp.pop %v1262
    %v1264 = vmul.f32 1.0, %v1263
    %v1266 = vrot.slane %v1251, 6
    %v1268 = vmul.f32 %v1264, %v1266
    %v1269 = vadd.f32 %v1063, %v1268
    %v1270 = vtanh.pop %v1269
    %v1271 = vsub.f32 1.0, %v1264
    %1273 = vrot.lane.b32.xlu0 %v1270, 64
    %v1274 = vpop.permute.xlu0 %1273
    %v1276 = vmul.f32 %v1271, %v1274
    %v1278 = vrot.slane %v1206, 6
    %v1280 = vmul.f32 %v1264, %v1278
    %v1281 = vadd.f32 %v1276, %v1280
    %v1282 = vpack.c.bf16 %v1281, %v1281
    %v1284 = vrot.slane %v1282, 1
    %1285 = vrot.lane.b32.xlu0 %v1284, 64
    %v1286 = vpop.permute.xlu0 %1285
    %v1288 = vsel %vm154, %v1286, 0
    %1290 = vmatprep.subr.bf16.mxu0 0
    %1291 = vmatpush1.bf16.msra.mxu0 0
    %1292 = vmatprep.subr.bf16.mxu0 0
    %1293 = vmatpush1.bf16.msra.mxu0 0
    %1294 = vmatprep.subr.bf16.mxu0 0
    %1295 = vmatpush1.bf16.msra.mxu0 0
    %1296 = vmatprep.subr.bf16.mxu0 0
    %1297 = vmatpush1.bf16.msra.mxu0 0
    %1298 = vmatprep.subr.bf16.mxu0 %v1139
    %1299 = vmatpush1.bf16.msra.mxu0 %v1138
    %1300 = vmatprep.subr.bf16.mxu0 %v1137
    %1301 = vmatpush1.bf16.msra.mxu0 %v1136
    %1302 = vmatprep.subr.bf16.mxu0 %v1135
    %1303 = vmatpush1.bf16.msra.mxu0 %v1134
    %1304 = vmatprep.subr.bf16.mxu0 %v1133
    %1305 = vmatpush1.bf16.msra.mxu0 %v1132
    %1306 = vmatprep.subr.bf16.mxu0 0
    %1307 = vmatpush2.bf16.msra.mxu0 0
    %1308 = vmatprep.subr.bf16.mxu0 0
    %1309 = vmatpush2.bf16.msra.mxu0 0
    %1310 = vmatprep.subr.bf16.mxu0 0
    %1311 = vmatpush2.bf16.msra.mxu0 0
    %1312 = vmatprep.subr.bf16.mxu0 0
    %1313 = vmatpush2.bf16.msra.mxu0 0
    %1314 = vmatprep.subr.bf16.mxu0 0
    %1315 = vmatpush2.bf16.msra.mxu0 0
    %1316 = vmatprep.subr.bf16.mxu0 0
    %1317 = vmatpush2.bf16.msra.mxu0 0
    %1318 = vmatprep.subr.bf16.mxu0 0
    %1319 = vmatpush2.bf16.msra.mxu0 0
    %1320 = vmatprep.subr.bf16.mxu0 0
    %1321 = vmatpush2.bf16.msra.mxu0 0
    %1322 = vmatprep.mubr.bf16.mxu0 0
    %1323 = vmatmul.mubr.bf16.gmra.mxu0 %v1288
    %v1324 = vpop.f32.mrf.mxu0
    %v1325 = vadd.f32 %v1101, %v1324
    %v1326 = vpop.f32.mrf.mxu0
    %v1327 = vadd.f32 %v1105, %v1326
    %v1328 = vpop.f32.mrf.mxu0
    %v1329 = vpop.f32.mrf.mxu0
    %1330 = vdwg.mxu0
    %v1332 = vrot.slane %v1325, 4
    %v1334 = vadd.f32 %v1049, %v1332
    %v1335 = vxor.u32 %v1334, 2147483648
    %v1336 = vmul.f32 %v1335, 1.442695
    %v1337 = vpow.pop %v1336
    %v1338 = vadd.f32 %v1337, 1.0
    %v1339 = vrcp.pop %v1338
    %v1340 = vmul.f32 1.0, %v1339
    %v1342 = vrot.slane %v1327, 4
    %v1344 = vmul.f32 %v1340, %v1342
    %v1345 = vadd.f32 %v1050, %v1344
    %v1346 = vtanh.pop %v1345
    %v1347 = vsub.f32 1.0, %v1340
    %1349 = vrot.lane.b32.xlu0 %v1346, 64
    %v1350 = vpop.permute.xlu0 %1349
    %v1352 = vmul.f32 %v1347, %v1350
    %v1354 = vrot.slane %v1281, 6
    %v1356 = vmul.f32 %v1340, %v1354
    %v1357 = vadd.f32 %v1352, %v1356
    %v1358 = vpack.c.bf16 %v1357, %v1357
    %v1360 = vrot.slane %v1358, 2
    %1361 = vrot.lane.b32.xlu0 %v1360, 64
    %v1362 = vpop.permute.xlu0 %1361
    %v1364 = vsel %vm154, %v1362, 0
    %1366 = vmatprep.subr.bf16.mxu0 0
    %1367 = vmatpush1.bf16.msra.mxu0 0
    %1368 = vmatprep.subr.bf16.mxu0 0
    %1369 = vmatpush1.bf16.msra.mxu0 0
    %1370 = vmatprep.subr.bf16.mxu0 0
    %1371 = vmatpush1.bf16.msra.mxu0 0
    %1372 = vmatprep.subr.bf16.mxu0 0
    %1373 = vmatpush1.bf16.msra.mxu0 0
    %1374 = vmatprep.subr.bf16.mxu0 %v1139
    %1375 = vmatpush1.bf16.msra.mxu0 %v1138
    %1376 = vmatprep.subr.bf16.mxu0 %v1137
    %1377 = vmatpush1.bf16.msra.mxu0 %v1136
    %1378 = vmatprep.subr.bf16.mxu0 %v1135
    %1379 = vmatpush1.bf16.msra.mxu0 %v1134
    %1380 = vmatprep.subr.bf16.mxu0 %v1133
    %1381 = vmatpush1.bf16.msra.mxu0 %v1132
    %1382 = vmatprep.subr.bf16.mxu0 0
    %1383 = vmatpush2.bf16.msra.mxu0 0
    %1384 = vmatprep.subr.bf16.mxu0 0
    %1385 = vmatpush2.bf16.msra.mxu0 0
    %1386 = vmatprep.subr.bf16.mxu0 0
    %1387 = vmatpush2.bf16.msra.mxu0 0
    %1388 = vmatprep.subr.bf16.mxu0 0
    %1389 = vmatpush2.bf16.msra.mxu0 0
    %1390 = vmatprep.subr.bf16.mxu0 0
    %1391 = vmatpush2.bf16.msra.mxu0 0
    %1392 = vmatprep.subr.bf16.mxu0 0
    %1393 = vmatpush2.bf16.msra.mxu0 0
    %1394 = vmatprep.subr.bf16.mxu0 0
    %1395 = vmatpush2.bf16.msra.mxu0 0
    %1396 = vmatprep.subr.bf16.mxu0 0
    %1397 = vmatpush2.bf16.msra.mxu0 0
    %1398 = vmatprep.mubr.bf16.mxu0 0
    %1399 = vmatmul.mubr.bf16.gmra.mxu0 %v1364
    %v1400 = vpop.f32.mrf.mxu0
    %v1401 = vadd.f32 %v1101, %v1400
    %v1402 = vpop.f32.mrf.mxu0
    %v1403 = vadd.f32 %v1105, %v1402
    %v1404 = vpop.f32.mrf.mxu0
    %v1405 = vpop.f32.mrf.mxu0
    %1406 = vdwg.mxu0
    %v1408 = vrot.slane %v1401, 2
    %v1410 = vadd.f32 %v1062, %v1408
    %v1411 = vxor.u32 %v1410, 2147483648
    %v1412 = vmul.f32 %v1411, 1.442695
    %v1413 = vpow.pop %v1412
    %v1414 = vadd.f32 %v1413, 1.0
    %v1415 = vrcp.pop %v1414
    %v1416 = vmul.f32 1.0, %v1415
    %v1418 = vrot.slane %v1403, 2
    %v1420 = vmul.f32 %v1416, %v1418
    %v1421 = vadd.f32 %v1063, %v1420
    %v1422 = vtanh.pop %v1421
    %v1423 = vsub.f32 1.0, %v1416
    %1425 = vrot.lane.b32.xlu0 %v1422, 64
    %v1426 = vpop.permute.xlu0 %1425
    %v1428 = vmul.f32 %v1423, %v1426
    %v1430 = vrot.slane %v1357, 6
    %v1432 = vmul.f32 %v1416, %v1430
    %v1433 = vadd.f32 %v1428, %v1432
    %v1434 = vpack.c.bf16 %v1433, %v1433
    %v1436 = vrot.slane %v1434, 3
    %1437 = vrot.lane.b32.xlu0 %v1436, 64
    %v1438 = vpop.permute.xlu0 %1437
    %v1440 = vsel %vm154, %v1438, 0
    %1442 = vmatprep.subr.bf16.mxu0 0
    %1443 = vmatpush1.bf16.msra.mxu0 0
    %1444 = vmatprep.subr.bf16.mxu0 0
    %1445 = vmatpush1.bf16.msra.mxu0 0
    %1446 = vmatprep.subr.bf16.mxu0 0
    %1447 = vmatpush1.bf16.msra.mxu0 0
    %1448 = vmatprep.subr.bf16.mxu0 0
    %1449 = vmatpush1.bf16.msra.mxu0 0
    %1450 = vmatprep.subr.bf16.mxu0 %v1139
    %1451 = vmatpush1.bf16.msra.mxu0 %v1138
    %1452 = vmatprep.subr.bf16.mxu0 %v1137
    %1453 = vmatpush1.bf16.msra.mxu0 %v1136
    %1454 = vmatprep.subr.bf16.mxu0 %v1135
    %1455 = vmatpush1.bf16.msra.mxu0 %v1134
    %1456 = vmatprep.subr.bf16.mxu0 %v1133
    %1457 = vmatpush1.bf16.msra.mxu0 %v1132
    %1458 = vmatprep.subr.bf16.mxu0 0
    %1459 = vmatpush2.bf16.msra.mxu0 0
    %1460 = vmatprep.subr.bf16.mxu0 0
    %1461 = vmatpush2.bf16.msra.mxu0 0
    %1462 = vmatprep.subr.bf16.mxu0 0
    %1463 = vmatpush2.bf16.msra.mxu0 0
    %1464 = vmatprep.subr.bf16.mxu0 0
    %1465 = vmatpush2.bf16.msra.mxu0 0
    %1466 = vmatprep.subr.bf16.mxu0 0
    %1467 = vmatpush2.bf16.msra.mxu0 0
    %1468 = vmatprep.subr.bf16.mxu0 0
    %1469 = vmatpush2.bf16.msra.mxu0 0
    %1470 = vmatprep.subr.bf16.mxu0 0
    %1471 = vmatpush2.bf16.msra.mxu0 0
    %1472 = vmatprep.subr.bf16.mxu0 0
    %1473 = vmatpush2.bf16.msra.mxu0 0
    %1474 = vmatprep.mubr.bf16.mxu0 0
    %1475 = vmatmul.mubr.bf16.gmra.mxu0 %v1440
    %v1476 = vpop.f32.mrf.mxu0
    %v1477 = vadd.f32 %v1101, %v1476
    %v1478 = vpop.f32.mrf.mxu0
    %v1479 = vadd.f32 %v1105, %v1478
    %v1480 = vpop.f32.mrf.mxu0
    %v1481 = vpop.f32.mrf.mxu0
    %1482 = vdwg.mxu0
    %v1483 = vadd.f32 %v1082, %v1477
    %v1484 = vxor.u32 %v1483, 2147483648
    %v1485 = vmul.f32 %v1484, 1.442695
    %v1486 = vpow.pop %v1485
    %v1487 = vadd.f32 %v1486, 1.0
    %v1488 = vrcp.pop %v1487
    %v1489 = vmul.f32 1.0, %v1488
    %v1490 = vmul.f32 %v1489, %v1479
    %v1491 = vadd.f32 %v1083, %v1490
    %v1492 = vtanh.pop %v1491
    %v1493 = vsub.f32 1.0, %v1489
    %1495 = vrot.lane.b32.xlu0 %v1492, 64
    %v1496 = vpop.permute.xlu0 %1495
    %v1498 = vmul.f32 %v1493, %v1496
    %v1500 = vrot.slane %v1433, 6
    %v1502 = vmul.f32 %v1489, %v1500
    %v1503 = vadd.f32 %v1498, %v1502
    %v1504 = vpack.c.bf16 %v1503, %v1503
    %1506 = vrot.lane.b32.xlu0 %v1504, 64
    %v1507 = vpop.permute.xlu0 %1506
    %v1509 = vsel %vm154, %v1507, 0
    %1511 = vmatprep.subr.bf16.mxu0 0
    %1512 = vmatpush1.bf16.msra.mxu0 0
    %1513 = vmatprep.subr.bf16.mxu0 0
    %1514 = vmatpush1.bf16.msra.mxu0 0
    %1515 = vmatprep.subr.bf16.mxu0 0
    %1516 = vmatpush1.bf16.msra.mxu0 0
    %1517 = vmatprep.subr.bf16.mxu0 0
    %1518 = vmatpush1.bf16.msra.mxu0 0
    %1519 = vmatprep.subr.bf16.mxu0 %v1139
    %1520 = vmatpush1.bf16.msra.mxu0 %v1138
    %1521 = vmatprep.subr.bf16.mxu0 %v1137
    %1522 = vmatpush1.bf16.msra.mxu0 %v1136
    %1523 = vmatprep.subr.bf16.mxu0 %v1135
    %1524 = vmatpush1.bf16.msra.mxu0 %v1134
    %1525 = vmatprep.subr.bf16.mxu0 %v1133
    %1526 = vmatpush1.bf16.msra.mxu0 %v1132
    %1527 = vmatprep.subr.bf16.mxu0 0
    %1528 = vmatpush2.bf16.msra.mxu0 0
    %1529 = vmatprep.subr.bf16.mxu0 0
    %1530 = vmatpush2.bf16.msra.mxu0 0
    %1531 = vmatprep.subr.bf16.mxu0 0
    %1532 = vmatpush2.bf16.msra.mxu0 0
    %1533 = vmatprep.subr.bf16.mxu0 0
    %1534 = vmatpush2.bf16.msra.mxu0 0
    %1535 = vmatprep.subr.bf16.mxu0 0
    %1536 = vmatpush2.bf16.msra.mxu0 0
    %1537 = vmatprep.subr.bf16.mxu0 0
    %1538 = vmatpush2.bf16.msra.mxu0 0
    %1539 = vmatprep.subr.bf16.mxu0 0
    %1540 = vmatpush2.bf16.msra.mxu0 0
    %1541 = vmatprep.subr.bf16.mxu0 0
    %1542 = vmatpush2.bf16.msra.mxu0 0
    %1543 = vmatprep.mubr.bf16.mxu0 0
    %1544 = vmatmul.mubr.bf16.gmra.mxu0 %v1509
    %v1545 = vpop.f32.mrf.mxu0
    %v1546 = vadd.f32 %v1101, %v1545
    %v1547 = vpop.f32.mrf.mxu0
    %v1548 = vadd.f32 %v1105, %v1547
    %v1549 = vpop.f32.mrf.mxu0
    %v1550 = vpop.f32.mrf.mxu0
    %1551 = vdwg.mxu0
    %v1553 = vrot.slane %v1546, 6
    %v1555 = vadd.f32 %v1095, %v1553
    %v1556 = vxor.u32 %v1555, 2147483648
    %v1557 = vmul.f32 %v1556, 1.442695
    %v1558 = vpow.pop %v1557
    %v1559 = vadd.f32 %v1558, 1.0
    %v1560 = vrcp.pop %v1559
    %v1561 = vmul.f32 1.0, %v1560
    %v1563 = vrot.slane %v1548, 6
    %v1565 = vmul.f32 %v1561, %v1563
    %v1566 = vadd.f32 %v1096, %v1565
    %v1567 = vtanh.pop %v1566
    %v1568 = vsub.f32 1.0, %v1561
    %1570 = vrot.lane.b32.xlu0 %v1567, 64
    %v1571 = vpop.permute.xlu0 %1570
    %v1573 = vmul.f32 %v1568, %v1571
    %v1575 = vrot.slane %v1503, 6
    %v1577 = vmul.f32 %v1561, %v1575
    %v1578 = vadd.f32 %v1573, %v1577
    %v1579 = vpack.c.bf16 %v1578, %v1578
    %v1581 = vrot.slane %v1579, 1
    %1582 = vrot.lane.b32.xlu0 %v1581, 64
    %v1583 = vpop.permute.xlu0 %1582
    %v1585 = vsel %vm154, %v1583, 0
    %1587 = vmatprep.subr.bf16.mxu0 0
    %1588 = vmatpush1.bf16.msra.mxu0 0
    %1589 = vmatprep.subr.bf16.mxu0 0
    %1590 = vmatpush1.bf16.msra.mxu0 0
    %1591 = vmatprep.subr.bf16.mxu0 0
    %1592 = vmatpush1.bf16.msra.mxu0 0
    %1593 = vmatprep.subr.bf16.mxu0 0
    %1594 = vmatpush1.bf16.msra.mxu0 0
    %1595 = vmatprep.subr.bf16.mxu0 %v1139
    %1596 = vmatpush1.bf16.msra.mxu0 %v1138
    %1597 = vmatprep.subr.bf16.mxu0 %v1137
    %1598 = vmatpush1.bf16.msra.mxu0 %v1136
    %1599 = vmatprep.subr.bf16.mxu0 %v1135
    %1600 = vmatpush1.bf16.msra.mxu0 %v1134
    %1601 = vmatprep.subr.bf16.mxu0 %v1133
    %1602 = vmatpush1.bf16.msra.mxu0 %v1132
    %1603 = vmatprep.subr.bf16.mxu0 0
    %1604 = vmatpush2.bf16.msra.mxu0 0
    %1605 = vmatprep.subr.bf16.mxu0 0
    %1606 = vmatpush2.bf16.msra.mxu0 0
    %1607 = vmatprep.subr.bf16.mxu0 0
    %1608 = vmatpush2.bf16.msra.mxu0 0
    %1609 = vmatprep.subr.bf16.mxu0 0
    %1610 = vmatpush2.bf16.msra.mxu0 0
    %1611 = vmatprep.subr.bf16.mxu0 0
    %1612 = vmatpush2.bf16.msra.mxu0 0
    %1613 = vmatprep.subr.bf16.mxu0 0
    %1614 = vmatpush2.bf16.msra.mxu0 0
    %1615 = vmatprep.subr.bf16.mxu0 0
    %1616 = vmatpush2.bf16.msra.mxu0 0
    %1617 = vmatprep.subr.bf16.mxu0 0
    %1618 = vmatpush2.bf16.msra.mxu0 0
    %1619 = vmatprep.mubr.bf16.mxu0 0
    %1620 = vmatmul.mubr.bf16.gmra.mxu0 %v1585
    %v1621 = vpop.f32.mrf.mxu0
    %v1622 = vadd.f32 %v1101, %v1621
    %v1623 = vpop.f32.mrf.mxu0
    %v1624 = vadd.f32 %v1105, %v1623
    %v1625 = vpop.f32.mrf.mxu0
    %v1626 = vpop.f32.mrf.mxu0
    %1627 = vdwg.mxu0
    %v1629 = vrot.slane %v1622, 4
    %v1631 = vadd.f32 %v1082, %v1629
    %v1632 = vxor.u32 %v1631, 2147483648
    %v1633 = vmul.f32 %v1632, 1.442695
    %v1634 = vpow.pop %v1633
    %v1635 = vadd.f32 %v1634, 1.0
    %v1636 = vrcp.pop %v1635
    %v1637 = vmul.f32 1.0, %v1636
    %v1639 = vrot.slane %v1624, 4
    %v1641 = vmul.f32 %v1637, %v1639
    %v1642 = vadd.f32 %v1083, %v1641
    %v1643 = vtanh.pop %v1642
    %v1644 = vsub.f32 1.0, %v1637
    %1646 = vrot.lane.b32.xlu0 %v1643, 64
    %v1647 = vpop.permute.xlu0 %1646
    %v1649 = vmul.f32 %v1644, %v1647
    %v1651 = vrot.slane %v1578, 6
    %v1653 = vmul.f32 %v1637, %v1651
    %v1654 = vadd.f32 %v1649, %v1653
    %v1655 = vpack.c.bf16 %v1654, %v1654
    %v1657 = vrot.slane %v1655, 2
    %1658 = vrot.lane.b32.xlu0 %v1657, 64
    %v1659 = vpop.permute.xlu0 %1658
    %v1661 = vsel %vm154, %v1659, 0
    %1663 = vmatprep.subr.bf16.mxu0 0
    %1664 = vmatpush1.bf16.msra.mxu0 0
    %1665 = vmatprep.subr.bf16.mxu0 0
    %1666 = vmatpush1.bf16.msra.mxu0 0
    %1667 = vmatprep.subr.bf16.mxu0 0
    %1668 = vmatpush1.bf16.msra.mxu0 0
    %1669 = vmatprep.subr.bf16.mxu0 0
    %1670 = vmatpush1.bf16.msra.mxu0 0
    %1671 = vmatprep.subr.bf16.mxu0 %v1139
    %1672 = vmatpush1.bf16.msra.mxu0 %v1138
    %1673 = vmatprep.subr.bf16.mxu0 %v1137
    %1674 = vmatpush1.bf16.msra.mxu0 %v1136
    %1675 = vmatprep.subr.bf16.mxu0 %v1135
    %1676 = vmatpush1.bf16.msra.mxu0 %v1134
    %1677 = vmatprep.subr.bf16.mxu0 %v1133
    %1678 = vmatpush1.bf16.msra.mxu0 %v1132
    %1679 = vmatprep.subr.bf16.mxu0 0
    %1680 = vmatpush2.bf16.msra.mxu0 0
    %1681 = vmatprep.subr.bf16.mxu0 0
    %1682 = vmatpush2.bf16.msra.mxu0 0
    %1683 = vmatprep.subr.bf16.mxu0 0
    %1684 = vmatpush2.bf16.msra.mxu0 0
    %1685 = vmatprep.subr.bf16.mxu0 0
    %1686 = vmatpush2.bf16.msra.mxu0 0
    %1687 = vmatprep.subr.bf16.mxu0 0
    %1688 = vmatpush2.bf16.msra.mxu0 0
    %1689 = vmatprep.subr.bf16.mxu0 0
    %1690 = vmatpush2.bf16.msra.mxu0 0
    %1691 = vmatprep.subr.bf16.mxu0 0
    %1692 = vmatpush2.bf16.msra.mxu0 0
    %1693 = vmatprep.subr.bf16.mxu0 0
    %1694 = vmatpush2.bf16.msra.mxu0 0
    %1695 = vmatprep.mubr.bf16.mxu0 0
    %1696 = vmatmul.mubr.bf16.gmra.mxu0 %v1661
    %v1697 = vpop.f32.mrf.mxu0
    %v1698 = vadd.f32 %v1101, %v1697
    %v1699 = vpop.f32.mrf.mxu0
    %v1700 = vadd.f32 %v1105, %v1699
    %v1701 = vpop.f32.mrf.mxu0
    %v1702 = vpop.f32.mrf.mxu0
    %1703 = vdwg.mxu0
    %v1705 = vrot.slane %v1698, 2
    %v1707 = vadd.f32 %v1095, %v1705
    %v1708 = vxor.u32 %v1707, 2147483648
    %v1709 = vmul.f32 %v1708, 1.442695
    %v1710 = vpow.pop %v1709
    %v1711 = vadd.f32 %v1710, 1.0
    %v1712 = vrcp.pop %v1711
    %v1713 = vmul.f32 1.0, %v1712
    %v1715 = vrot.slane %v1700, 2
    %v1717 = vmul.f32 %v1713, %v1715
    %v1718 = vadd.f32 %v1096, %v1717
    %v1719 = vtanh.pop %v1718
    %v1720 = vsub.f32 1.0, %v1713
    %1722 = vrot.lane.b32.xlu0 %v1719, 64
    %v1723 = vpop.permute.xlu0 %1722
    %v1725 = vmul.f32 %v1720, %v1723
    %v1727 = vrot.slane %v1654, 6
    %v1729 = vmul.f32 %v1713, %v1727
    %v1730 = vadd.f32 %v1725, %v1729
    %1731 = vrot.lane.b32.xlu0 %v1206, 64
    %v1732 = vpop.permute.xlu0 %1731
    %v1735 = vrot.slane %v1730, 6
    %1736 = vrot.lane.b32.xlu0 %v1735, 64
    %v1737 = vpop.permute.xlu0 %1736
    %v1739 = vsel %vm88, %v1732, %v1737
    %1740 = vrot.lane.b32.xlu0 %v1281, 64
    %v1741 = vpop.permute.xlu0 %1740
    %v1743 = vrot.slane %v1654, 2
    %1744 = vrot.lane.b32.xlu0 %v1743, 64
    %v1745 = vpop.permute.xlu0 %1744
    %v1747 = vsel %vm88, %v1741, %v1745
    %1748 = vrot.lane.b32.xlu0 %v1357, 64
    %v1749 = vpop.permute.xlu0 %1748
    %1751 = vrot.lane.b32.xlu0 %v1651, 64
    %v1752 = vpop.permute.xlu0 %1751
    %v1754 = vsel %vm88, %v1749, %v1752
    %1755 = vrot.lane.b32.xlu0 %v1433, 64
    %v1756 = vpop.permute.xlu0 %1755
    %v1758 = vrot.slane %v1503, 2
    %1759 = vrot.lane.b32.xlu0 %v1758, 64
    %v1760 = vpop.permute.xlu0 %1759
    %v1762 = vsel %vm88, %v1756, %v1760
    %1763 = vrot.lane.b32.xlu0 %v1503, 64
    %v1764 = vpop.permute.xlu0 %1763
    %1766 = vrot.lane.b32.xlu0 %v1500, 64
    %v1767 = vpop.permute.xlu0 %1766
    %v1769 = vsel %vm88, %v1764, %v1767
    %1770 = vrot.lane.b32.xlu0 %v1578, 64
    %v1771 = vpop.permute.xlu0 %1770
    %v1773 = vrot.slane %v1357, 2
    %1774 = vrot.lane.b32.xlu0 %v1773, 64
    %v1775 = vpop.permute.xlu0 %1774
    %v1777 = vsel %vm88, %v1771, %v1775
    %1778 = vrot.lane.b32.xlu0 %v1654, 64
    %v1779 = vpop.permute.xlu0 %1778
    %1781 = vrot.lane.b32.xlu0 %v1354, 64
    %v1782 = vpop.permute.xlu0 %1781
    %v1784 = vsel %vm88, %v1779, %v1782
    %1785 = vrot.lane.b32.xlu0 %v1730, 64
    %v1786 = vpop.permute.xlu0 %1785
    %v1788 = vrot.slane %v1206, 2
    %1789 = vrot.lane.b32.xlu0 %v1788, 64
    %v1790 = vpop.permute.xlu0 %1789
    %v1792 = vsel %vm88, %v1786, %v1790
    %v1793 = vsel %vm904, %v1739, %v1747
    %v1794 = vsel %vm906, %v1793, %v1754
    %v1795 = vsel %vm908, %v1794, %v1762
    %v1796 = vsel %vm904, %v1769, %v1777
    %v1797 = vsel %vm906, %v1796, %v1784
    %v1798 = vsel %vm908, %v1797, %v1792
    %v1799 = vpack.c.bf16 %v1798, %v1795
    %v1800 = vld [vmem:[%s9] sm:$0xf]
    %v1801 = vld [vmem:[%s9 + $0x4] sm:$0xf]
    %v1802 = vld [vmem:[%s9 + $0x8] sm:$0xf]
    %v1803 = vld [vmem:[%s9 + $0xc] sm:$0xf]
    %v1804 = vld [vmem:[%s9 + $0x10] sm:$0xf]
    %v1805 = vld [vmem:[%s9 + $0x14] sm:$0xf]
    %v1806 = vld [vmem:[%s9 + $0x18] sm:$0xf]
    %v1807 = vld [vmem:[%s9 + $0x1c] sm:$0xf]
    %v1808 = vld [vmem:[%s10] sm:$0x1]
    %v1810 = vlaneseq
    %v1811 = vshrl.u32 %v1810, 7
    %v1812 = vsub.s32 0, %v1811
    %v1813 = vrot.slane %v1808, %v1812
    %v1823 = vunpack.c.l.b16 %v1800
    %v1824 = vunpack.c.l.b16 %v1801
    %v1825 = vunpack.c.l.b16 %v1802
    %v1826 = vunpack.c.l.b16 %v1803
    %v1827 = vunpack.c.l.b16 %v1804
    %v1828 = vunpack.c.l.b16 %v1805
    %v1829 = vunpack.c.l.b16 %v1806
    %v1830 = vunpack.c.l.b16 %v1807
    %v1831 = vpack.c.b16 %v1824, %v1823
    %v1832 = vpack.c.b16 %v1826, %v1825
    %v1833 = vpack.c.b16 %v1828, %v1827
    %v1834 = vpack.c.b16 %v1830, %v1829
    %v1840 = vsel %vm154, %v1799, 0
    %1842 = vmatprep.subr.bf16.mxu0 0
    %1843 = vmatpush1.bf16.msra.mxu0 0
    %1844 = vmatprep.subr.bf16.mxu0 0
    %1845 = vmatpush1.bf16.msra.mxu0 0
    %1846 = vmatprep.subr.bf16.mxu0 0
    %1847 = vmatpush1.bf16.msra.mxu0 0
    %1848 = vmatprep.subr.bf16.mxu0 0
    %1849 = vmatpush1.bf16.msra.mxu0 0
    %1850 = vmatprep.subr.bf16.mxu0 0
    %1851 = vmatpush1.bf16.msra.mxu0 %v1834
    %1852 = vmatprep.subr.bf16.mxu0 0
    %1853 = vmatpush1.bf16.msra.mxu0 %v1833
    %1854 = vmatprep.subr.bf16.mxu0 0
    %1855 = vmatpush1.bf16.msra.mxu0 %v1832
    %1856 = vmatprep.subr.bf16.mxu0 0
    %1857 = vmatpush1.bf16.msra.mxu0 %v1831
    %1858 = vmatprep.subr.bf16.mxu0 0
    %1859 = vmatpush2.bf16.msra.mxu0 0
    %1860 = vmatprep.subr.bf16.mxu0 0
    %1861 = vmatpush2.bf16.msra.mxu0 0
    %1862 = vmatprep.subr.bf16.mxu0 0
    %1863 = vmatpush2.bf16.msra.mxu0 0
    %1864 = vmatprep.subr.bf16.mxu0 0
    %1865 = vmatpush2.bf16.msra.mxu0 0
    %1866 = vmatprep.subr.bf16.mxu0 0
    %1867 = vmatpush2.bf16.msra.mxu0 0
    %1868 = vmatprep.subr.bf16.mxu0 0
    %1869 = vmatpush2.bf16.msra.mxu0 0
    %1870 = vmatprep.subr.bf16.mxu0 0
    %1871 = vmatpush2.bf16.msra.mxu0 0
    %1872 = vmatprep.subr.bf16.mxu0 0
    %1873 = vmatpush2.bf16.msra.mxu0 0
    %1874 = vmatprep.mubr.bf16.mxu0 0
    %1875 = vmatmul.mubr.bf16.gmra.mxu0 %v1840
    %v1876 = vpop.f32.mrf.mxu0
    %v1877 = vadd.f32 %v1813, %v1876
    %v1878 = vpop.f32.mrf.mxu0
    %v1879 = vpop.f32.mrf.mxu0
    %v1880 = vadd.f32 %v1813, %v1879
    %v1881 = vpop.f32.mrf.mxu0
    %1882 = vdwg.mxu0
    %1883 = vmax.xlane.f32.xlu0 %v1877
    %v1884 = vpop.xlane.xlu0 %1883
    %1885 = vmax.xlane.f32.xlu0 %v1880
    %v1886 = vpop.xlane.xlu0 %1885
    %v1887 = vsub.f32 %v1877, %v1884
    %v1888 = vsub.f32 %v1880, %v1886
    %v1889 = vmul.f32 %v1887, 1.442695
    %v1890 = vpow.pop %v1889
    %v1891 = vmul.f32 %v1888, 1.442695
    %v1892 = vpow.pop %v1891
    %1893 = vadd.xlane.f32.xlu0 %v1890
    %v1894 = vpop.xlane.xlu0 %1893
    %1895 = vadd.xlane.f32.xlu0 %v1892
    %v1896 = vpop.xlane.xlu0 %1895
    %v1897 = vlog2.pop %v1894
    %v1898 = vmul.f32 %v1897, 0.6931472
    %v1899 = vlog2.pop %v1896
    %v1900 = vmul.f32 %v1899, 0.6931472
    %v1901 = vadd.f32 %v1884, %v1898
    %v1902 = vadd.f32 %v1886, %v1900
    %v1903 = vsub.f32 %v1877, %v1901
    %v1904 = vsub.f32 %v1880, %v1902
    %1905 = vst [vmem:[#allocation2] sm:$0xff] %v1903
    %1906 = vst [vmem:[#allocation2 + $0x8] sm:$0xff] %v1904
    // Predicated region
    $region46: #{crnn_forward.3} parent=1 // pred_check
      _
    $region47: #{crnn_forward.3} parent=1 // pred_check_branch
      %1908 = sbr.rel (0) target = $region49
    $region48: #{crnn_forward.3} parent=1 // pred_region
      %s1910 = ssub.s32 256, 256
      %1911 = vsyncadd [#allocation3], %s1910
      %s1912 = sshll.u32 [#allocation2], 4
      %s1913 = int_to_ptr.vmem [resolvable:$true] %s1912
      %1918 = dma.vmem_to_hbm [thread:$0]  %s1913, 256, %s11, [#allocation3], 128, 128, 8
    $region49: #{crnn_forward.3} parent=1 // pred_fallthru
      _
    // Predicated region
    $region50: #{crnn_forward.3} parent=1 // pred_check
      _
    $region51: #{crnn_forward.3} parent=1 // pred_check_branch
      %1920 = sbr.rel (0) target = $region53
    $region52: #{crnn_forward.3} parent=1 // pred_region
      %1921 = dma.done [#allocation3], 256
    $region53: #{crnn_forward.3} parent=1 // pred_fallthru
      _
    %1922 = vsyncpa [#allocation3], 1

</llo_original>
